<compile_context>
chip_gen: v7x
topology: tpu7x:2x2x1
jax: 0.10.0
libtpu: 0.0.40
codegen_flags: <defaults>
</compile_context>

<pallas_src>
import functools

import jax
import jax.numpy as jnp
from jax.experimental import pallas as pl
from jax.experimental.pallas import tpu as pltpu


# -----------------------------------------------------------------------------
# Fused image tower: stem conv + 3x (1x1 conv + ReLU + avg-pool-as-matmul).
# One batch element per grid step; all intermediates stay in VMEM.
# -----------------------------------------------------------------------------
def _img_tower_kernel(x_ref, sw_ref, sb_ref, c2_ref, c3_ref,
                      p1_ref, p2_ref, p3_ref, o_ref):
    f32 = jnp.float32
    x = x_ref[0]                                                    # [HW, Cin]
    x1 = jnp.dot(x, sw_ref[...], preferred_element_type=f32) + sb_ref[...]
    x1 = jnp.maximum(x1, 0.0)                                       # [HW, D]
    f1 = jnp.dot(p1_ref[...], x1, preferred_element_type=f32)       # [HW/4, D]
    h2 = jnp.maximum(
        jnp.dot(f1, c2_ref[...], preferred_element_type=f32), 0.0)
    f2 = jnp.dot(p2_ref[...], h2, preferred_element_type=f32)       # [HW/16, D]
    h3 = jnp.maximum(
        jnp.dot(f2, c3_ref[...], preferred_element_type=f32), 0.0)
    f3 = jnp.dot(p3_ref[...], h3, preferred_element_type=f32)       # [HW/64, D]
    o_ref[0] = f3.astype(o_ref.dtype)


def pallas_img_tower(x_pix, params, pool_mats):
    """x_pix:[B,HW,Cin] -> deepest feature map [B,HW/64,D] (f32)."""
    B, HW, Cin = x_pix.shape
    D = params["img_stem_w"].shape[1]
    p1, p2, p3 = pool_mats
    Pc = p3.shape[0]
    return pl.pallas_call(
        _img_tower_kernel,
        out_shape=jax.ShapeDtypeStruct((B, Pc, D), jnp.float32),
        grid=(B,),
        in_specs=[
            pl.BlockSpec((1, HW, Cin), lambda b: (b, 0, 0)),
            pl.BlockSpec((Cin, D), lambda b: (0, 0)),
            pl.BlockSpec((1, D), lambda b: (0, 0)),
            pl.BlockSpec((D, D), lambda b: (0, 0)),
            pl.BlockSpec((D, D), lambda b: (0, 0)),
            pl.BlockSpec(p1.shape, lambda b: (0, 0)),
            pl.BlockSpec(p2.shape, lambda b: (0, 0)),
            pl.BlockSpec(p3.shape, lambda b: (0, 0)),
        ],
        out_specs=pl.BlockSpec((1, Pc, D), lambda b: (b, 0, 0)),
        compiler_params=pltpu.CompilerParams(
            dimension_semantics=("parallel",)),
    )(x_pix, params["img_stem_w"], params["img_stem_b"].reshape(1, D),
      params["img_c2_w"], params["img_c3_w"], p1, p2, p3)


# -----------------------------------------------------------------------------
# Fused KAug + dual decoder kernel (one batch element per grid step).
#   KAug:    per-segment projection + masked self-attention + residual.
#   Decoder: masked text pool -> sigmoid gate -> gated fuse -> 5-ch grasp head
#            with per-channel activations -> nearest upsample (0/1 matmul).
# Decoder runs in transposed [channels, pixels] layout -> lane-dense output,
# no in-kernel transposes (gate folded into the fuse weight columns).
# -----------------------------------------------------------------------------
def _kaug_decoder_kernel(seq_ref, bias_ref, wgt_ref, vdt_ref,
                         txtw_ref, kgw_ref, qw_ref, kw_ref, vw_ref, ow_ref,
                         gw_ref, fwt_ref, hwt_ref, hb_ref, up_ref, o_ref, *, T):
    f32 = jnp.float32
    seq_raw = seq_ref[0]                               # [S, D]  rows<T words, >=T kg
    S, D = seq_raw.shape
    row = jax.lax.broadcasted_iota(jnp.int32, (S, 1), 0)

    # ---- KAug ----------------------------------------------------------------
    wproj = jnp.dot(seq_raw, txtw_ref[...], preferred_element_type=f32)
    kproj = jnp.dot(seq_raw, kgw_ref[...], preferred_element_type=f32)
    seq = jnp.where(row < T, wproj, kproj)             # [S, D]

    q = jnp.dot(seq, qw_ref[...], preferred_element_type=f32)
    k = jnp.dot(seq, kw_ref[...], preferred_element_type=f32)
    v = jnp.dot(seq, vw_ref[...], preferred_element_type=f32)

    s = jnp.dot(q, k.T, preferred_element_type=f32) * (1.0 / float(D) ** 0.5)
    s = s + bias_ref[0]                                # additive key-mask bias [1, S]
    s = s - jnp.max(s, axis=-1, keepdims=True)
    p = jnp.exp(s)
    p = p * pl.reciprocal(jnp.sum(p, axis=-1, keepdims=True), approx=True)
    attn = jnp.dot(p, v, preferred_element_type=f32)   # [S, D]
    wf = (seq + jnp.dot(attn, ow_ref[...], preferred_element_type=f32))[:T, :]  # [T, D]

    # ---- decoder: masked pool -> gate ----------------------------------------
    wgt = wgt_ref[0]                                   # [T, 1]  (1 = valid word)
    denom = jnp.sum(wgt, axis=0, keepdims=True) + 1e-6             # [1, 1]
    pooled = jnp.sum(wf * wgt, axis=0, keepdims=True) / denom      # [1, D]
    gate = jax.nn.sigmoid(
        jnp.dot(pooled, gw_ref[...], preferred_element_type=f32))  # [1, D]

    # ---- gated fuse + head, transposed layout ---------------------------------
    vdt = vdt_ref[0]                                   # [D, P] coarse pixels (transposed)
    gated_fw = fwt_ref[...] * gate                     # fuse_w.T @ diag(gate)
    fused_t = jnp.maximum(
        jnp.dot(gated_fw, vdt, preferred_element_type=f32), 0.0)   # [D, P]

    heads_t = jnp.dot(hwt_ref[...], fused_t,
                      preferred_element_type=f32) + hb_ref[...]    # [NH, P]

    # row 0: seg logits, 1: pos (sigmoid), 2/3: cos/sin (tanh), 4: width (sigmoid)
    r = jax.lax.broadcasted_iota(jnp.int32, heads_t.shape, 0)
    sig = jax.nn.sigmoid(heads_t)
    th = jnp.tanh(heads_t)
    act = jnp.where(r == 0, heads_t,
                    jnp.where((r == 2) | (r == 3), th, sig))       # [NH, P]

    # nearest-neighbour upsample = 0/1 selection matmul; lane-dense [NH, HW] store
    o_ref[0] = jnp.dot(act, up_ref[...],
                       preferred_element_type=f32).astype(o_ref.dtype)


def pallas_kaug_decoder(seq_raw, bias, wgt, v_deep_t, up_t, params, T):
    """seq_raw:[B,S,D], bias:[B,1,S], wgt:[B,T,1], v_deep_t:[B,D,P], up_t:[P,HW]
       -> [B, NH, HW] (NCHW-ready grasp maps)."""
    B, S, D = seq_raw.shape
    P = v_deep_t.shape[2]
    NH = params["dec_head_w"].shape[1]
    HW = up_t.shape[1]
    wspec = pl.BlockSpec((D, D), lambda b: (0, 0))
    return pl.pallas_call(
        functools.partial(_kaug_decoder_kernel, T=T),
        out_shape=jax.ShapeDtypeStruct((B, NH, HW), jnp.float32),
        grid=(B,),
        in_specs=[
            pl.BlockSpec((1, S, D), lambda b: (b, 0, 0)),
            pl.BlockSpec((1, 1, S), lambda b: (b, 0, 0)),
            pl.BlockSpec((1, T, 1), lambda b: (b, 0, 0)),
            pl.BlockSpec((1, D, P), lambda b: (b, 0, 0)),
            wspec, wspec, wspec, wspec, wspec, wspec,   # txt, kg, q, k, v, o
            wspec,                                      # gate
            wspec,                                      # fuse (transposed)
            pl.BlockSpec((NH, D), lambda b: (0, 0)),
            pl.BlockSpec((NH, 1), lambda b: (0, 0)),
            pl.BlockSpec((P, HW), lambda b: (0, 0)),
        ],
        out_specs=pl.BlockSpec((1, NH, HW), lambda b: (b, 0, 0)),
        compiler_params=pltpu.CompilerParams(
            dimension_semantics=("parallel",)),
    )(seq_raw.astype(jnp.float32), bias.astype(jnp.float32),
      wgt.astype(jnp.float32), v_deep_t.astype(jnp.float32),
      params["txt_proj_w"], params["kg_proj_w"],
      params["ka_q_w"], params["ka_k_w"], params["ka_v_w"], params["ka_o_w"],
      params["dec_gate_w"], params["dec_fuse_w"].T,
      params["dec_head_w"].T, params["dec_head_b"].reshape(NH, 1),
      up_t.astype(jnp.float32))


# -----------------------------------------------------------------------------
# Layout helper matrices (pure index math; XLA builds them from iota+compare).
# -----------------------------------------------------------------------------
def _pool_matrix(H, W):
    """[Ho*Wo, H*W] matrix computing 2x2 average pooling on flattened pixels."""
    Ho, Wo = H // 2, W // 2
    pix = jnp.arange(H * W)
    pi, pj = pix // W, pix % W
    blk = (pi // 2) * Wo + (pj // 2)
    return (jnp.arange(Ho * Wo)[:, None] == blk[None, :]).astype(jnp.float32) * 0.25


def _upsample_matrix_t(hh, ww, H, W):
    """[hh*ww, H*W] 0/1 matrix: nearest-neighbour upsample (transposed)."""
    fh, fw = H // hh, W // ww
    pix = jnp.arange(H * W)
    pi, pj = pix // W, pix % W
    coarse = (pi // fh) * ww + (pj // fw)
    return (jnp.arange(hh * ww)[:, None] == coarse[None, :]).astype(jnp.float32)


# -----------------------------------------------------------------------------
# Parameters (deterministic, synthetic — shapes follow the module's __init__)
# -----------------------------------------------------------------------------
def init_params(key, *, cin=3, dim=32, vocab=100, heads_out=5):
    ks = jax.random.split(key, 16)
    s = 0.05
    p = {
        # CLIP-like encoder
        "vocab_embed": jax.random.normal(ks[0], (vocab, dim)) * s,
        "txt_proj_w": jax.random.normal(ks[1], (dim, dim)) * s,
        "img_stem_w": jax.random.normal(ks[2], (cin, dim)) * s,
        "img_stem_b": jnp.zeros((dim,)),
        "img_c2_w": jax.random.normal(ks[3], (dim, dim)) * s,
        "img_c3_w": jax.random.normal(ks[4], (dim, dim)) * s,
        # KAug (knowledge augmentation: single attention layer)
        "kg_proj_w": jax.random.normal(ks[5], (dim, dim)) * s,
        "ka_q_w": jax.random.normal(ks[6], (dim, dim)) * s,
        "ka_k_w": jax.random.normal(ks[7], (dim, dim)) * s,
        "ka_v_w": jax.random.normal(ks[8], (dim, dim)) * s,
        "ka_o_w": jax.random.normal(ks[9], (dim, dim)) * s,
        # dual decoder
        "dec_gate_w": jax.random.normal(ks[10], (dim, dim)) * s,
        "dec_fuse_w": jax.random.normal(ks[11], (dim, dim)) * s,
        "dec_head_w": jax.random.normal(ks[12], (dim, heads_out)) * s,
        "dec_head_b": jnp.zeros((heads_out,)),
    }
    return jax.tree_util.tree_map(lambda a: a.astype(jnp.float32), p)


# -----------------------------------------------------------------------------
# Forward pass (mirrors KGgrasp.forward with use_kg=True)
# -----------------------------------------------------------------------------
def kggrasp_forward(params, images, words, kg_word_embedding):
    B, Cin, H, W = images.shape
    T = words.shape[1]
    D = params["txt_proj_w"].shape[0]

    # ---------------- encoder: image tower (deepest map feeds the decoder) ----
    x_pix = jnp.transpose(images, (0, 2, 3, 1)).reshape(B, H * W, Cin)
    x_pix = x_pix.astype(jnp.float32)
    pool_mats = (_pool_matrix(H, W),
                 _pool_matrix(H // 2, W // 2),
                 _pool_matrix(H // 4, W // 4))
    f3 = pallas_img_tower(x_pix, params, pool_mats)          # [B, (H/8)*(W/8), D]
    # NOTE: logits_per_image / sent from the CLIP encoder are not consumed by
    #       forward()'s outputs, so that dead matmul is deliberately not emitted.

    # ---------------- mask construction (use_kg branch) -----------------------
    word_mask = jnp.zeros(words.shape, dtype=bool)            # [B, T]
    kg_mask = (kg_word_embedding.mean(axis=-1) == 0)          # [B, K]
    mask = jnp.concatenate([word_mask, kg_mask], axis=-1)     # [B, T+K]
    attn_bias = jnp.where(mask, -1e9, 0.0).astype(jnp.float32)[:, None, :]

    # ---------------- text tower tokens (gather stays in XLA) -----------------
    tok = jnp.take(params["vocab_embed"], words, axis=0)      # [B, T, D]
    seq_raw = jnp.concatenate(
        [tok, kg_word_embedding.astype(jnp.float32)], axis=1)  # [B, T+K, D]
    wgt = (1.0 - mask[:, :T].astype(jnp.float32))[:, :, None]  # [B, T, 1]

    # ---------------- fused KAug + dual decoder --------------------------------
    hh, ww = H // 8, W // 8
    v_deep_t = jnp.transpose(f3, (0, 2, 1))                   # [B, D, P]
    up_t = _upsample_matrix_t(hh, ww, H, W)                   # [P, H*W]
    heads = pallas_kaug_decoder(seq_raw, attn_bias, wgt, v_deep_t,
                                up_t, params, T)              # [B, 5, H*W]
    heads = heads.reshape(B, 5, H, W)                         # already NCHW

    seg_mask = heads[:, 0:1]
    pos = heads[:, 1:2]
    cos = heads[:, 2:3]
    sin = heads[:, 3:4]
    width = heads[:, 4:5]
    return seg_mask, pos, cos, sin, width


# -----------------------------------------------------------------------------
if __name__ == "__main__":
    B, Cin, H, W = 2, 3, 16, 16
    T, D, K_KG, VOCAB = 8, 32, 4, 100

    key = jax.random.PRNGKey(0)
    k_par, k_img, k_words, k_kg = jax.random.split(key, 4)

    params = init_params(k_par, cin=Cin, dim=D, vocab=VOCAB)

    images = jax.random.normal(k_img, (B, Cin, H, W), dtype=jnp.float32)
    words = jax.random.randint(k_words, (B, T), 0, VOCAB, dtype=jnp.int32)
    kg_word_embedding = jax.random.normal(k_kg, (B, K_KG, D), dtype=jnp.float32)
    # zero-out one KG entry so the kg_mask branch is actually exercised
    kg_word_embedding = kg_word_embedding.at[0, K_KG - 1, :].set(0.0)

    fwd = jax.jit(kggrasp_forward)
    seg_mask, pos, cos, sin, width = fwd(params, images, words,
                                         kg_word_embedding)
    for out in (seg_mask, pos, cos, sin, width):
        jax.block_until_ready(out)

    assert seg_mask.shape == (B, 1, H, W)
    assert pos.shape == cos.shape == sin.shape == width.shape == (B, 1, H, W)
    assert bool(jnp.all(jnp.isfinite(seg_mask)))
    assert bool(jnp.all((pos >= 0) & (pos <= 1)))
    assert bool(jnp.all((cos >= -1) & (cos <= 1)))
    print("KERNEL_OK")
</pallas_src>

<mosaic_0001>
module attributes {stable_mosaic.version = 11 : i64} {
  func.func @_img_tower_kernel(%arg0: i32, %arg1: memref<1x256x3xf32, #tpu.memory_space<vmem>>, %arg2: memref<3x32xf32, #tpu.memory_space<vmem>>, %arg3: memref<1x32xf32, #tpu.memory_space<vmem>>, %arg4: memref<32x32xf32, #tpu.memory_space<vmem>>, %arg5: memref<32x32xf32, #tpu.memory_space<vmem>>, %arg6: memref<64x256xf32, #tpu.memory_space<vmem>>, %arg7: memref<16x64xf32, #tpu.memory_space<vmem>>, %arg8: memref<4x16xf32, #tpu.memory_space<vmem>>, %arg9: memref<1x4x32xf32, #tpu.memory_space<vmem>>) attributes {dimension_semantics = [#tpu.dimension_semantics<parallel>], iteration_bounds = array<i64: 2>, scalar_prefetch = 0 : i64, scratch_operands = 0 : i64, tpu.core_type = #tpu.core_type<tc>, window_params = [{transform_indices = @transform_0, window_bounds = array<i64: 1, 256, 3>}, {pipeline_mode = #tpu.pipeline_mode<synchronous>, transform_indices = @transform_1, window_bounds = array<i64: 3, 32>}, {pipeline_mode = #tpu.pipeline_mode<synchronous>, transform_indices = @transform_2, window_bounds = array<i64: 1, 32>}, {pipeline_mode = #tpu.pipeline_mode<synchronous>, transform_indices = @transform_3, window_bounds = array<i64: 32, 32>}, {pipeline_mode = #tpu.pipeline_mode<synchronous>, transform_indices = @transform_4, window_bounds = array<i64: 32, 32>}, {pipeline_mode = #tpu.pipeline_mode<synchronous>, transform_indices = @transform_5, window_bounds = array<i64: 64, 256>}, {pipeline_mode = #tpu.pipeline_mode<synchronous>, transform_indices = @transform_6, window_bounds = array<i64: 16, 64>}, {pipeline_mode = #tpu.pipeline_mode<synchronous>, transform_indices = @transform_7, window_bounds = array<i64: 4, 16>}, {transform_indices = @transform_8, window_bounds = array<i64: 1, 4, 32>}]} {
    %c0 = arith.constant 0 : index
    %c0_0 = arith.constant 0 : index
    %c0_1 = arith.constant 0 : index
    %0 = vector.load %arg1[%c0, %c0_0, %c0_1] : memref<1x256x3xf32, #tpu.memory_space<vmem>>, vector<1x256x3xf32>
    %1 = vector.shape_cast %0 : vector<1x256x3xf32> to vector<256x3xf32>
    %c0_2 = arith.constant 0 : index
    %c0_3 = arith.constant 0 : index
    %2 = vector.load %arg2[%c0_2, %c0_3] : memref<3x32xf32, #tpu.memory_space<vmem>>, vector<3x32xf32>
    %cst = arith.constant dense<0.000000e+00> : vector<256x32xf32>
    %3 = tpu.matmul %1, %2, %cst {dimension_numbers = #tpu.dot_dimension_numbers<[1], [0], [0], [1], [0, 0, 1, 1], [], []>} : vector<256x3xf32>, vector<3x32xf32>, vector<256x32xf32> -> vector<256x32xf32>
    %c0_4 = arith.constant 0 : index
    %c0_5 = arith.constant 0 : index
    %4 = vector.load %arg3[%c0_4, %c0_5] : memref<1x32xf32, #tpu.memory_space<vmem>>, vector<1x32xf32>
    %5 = vector.broadcast %4 : vector<1x32xf32> to vector<256x32xf32>
    %6 = arith.addf %3, %5 : vector<256x32xf32>
    %cst_6 = arith.constant 0.000000e+00 : f32
    %7 = vector.broadcast %cst_6 : f32 to vector<256x32xf32>
    %8 = arith.maximumf %6, %7 : vector<256x32xf32>
    %c0_7 = arith.constant 0 : index
    %c0_8 = arith.constant 0 : index
    %9 = vector.load %arg6[%c0_7, %c0_8] : memref<64x256xf32, #tpu.memory_space<vmem>>, vector<64x256xf32>
    %cst_9 = arith.constant dense<0.000000e+00> : vector<64x32xf32>
    %10 = tpu.matmul %9, %8, %cst_9 {dimension_numbers = #tpu.dot_dimension_numbers<[1], [0], [0], [1], [0, 0, 1, 1], [], []>} : vector<64x256xf32>, vector<256x32xf32>, vector<64x32xf32> -> vector<64x32xf32>
    %c0_10 = arith.constant 0 : index
    %c0_11 = arith.constant 0 : index
    %11 = vector.load %arg4[%c0_10, %c0_11] : memref<32x32xf32, #tpu.memory_space<vmem>>, vector<32x32xf32>
    %cst_12 = arith.constant dense<0.000000e+00> : vector<64x32xf32>
    %12 = tpu.matmul %10, %11, %cst_12 {dimension_numbers = #tpu.dot_dimension_numbers<[1], [0], [0], [1], [0, 0, 1, 1], [], []>} : vector<64x32xf32>, vector<32x32xf32>, vector<64x32xf32> -> vector<64x32xf32>
    %cst_13 = arith.constant 0.000000e+00 : f32
    %13 = vector.broadcast %cst_13 : f32 to vector<64x32xf32>
    %14 = arith.maximumf %12, %13 : vector<64x32xf32>
    %c0_14 = arith.constant 0 : index
    %c0_15 = arith.constant 0 : index
    %15 = vector.load %arg7[%c0_14, %c0_15] : memref<16x64xf32, #tpu.memory_space<vmem>>, vector<16x64xf32>
    %cst_16 = arith.constant dense<0.000000e+00> : vector<16x32xf32>
    %16 = tpu.matmul %15, %14, %cst_16 {dimension_numbers = #tpu.dot_dimension_numbers<[1], [0], [0], [1], [0, 0, 1, 1], [], []>} : vector<16x64xf32>, vector<64x32xf32>, vector<16x32xf32> -> vector<16x32xf32>
    %c0_17 = arith.constant 0 : index
    %c0_18 = arith.constant 0 : index
    %17 = vector.load %arg5[%c0_17, %c0_18] : memref<32x32xf32, #tpu.memory_space<vmem>>, vector<32x32xf32>
    %cst_19 = arith.constant dense<0.000000e+00> : vector<16x32xf32>
    %18 = tpu.matmul %16, %17, %cst_19 {dimension_numbers = #tpu.dot_dimension_numbers<[1], [0], [0], [1], [0, 0, 1, 1], [], []>} : vector<16x32xf32>, vector<32x32xf32>, vector<16x32xf32> -> vector<16x32xf32>
    %cst_20 = arith.constant 0.000000e+00 : f32
    %19 = vector.broadcast %cst_20 : f32 to vector<16x32xf32>
    %20 = arith.maximumf %18, %19 : vector<16x32xf32>
    %c0_21 = arith.constant 0 : index
    %c0_22 = arith.constant 0 : index
    %21 = vector.load %arg8[%c0_21, %c0_22] : memref<4x16xf32, #tpu.memory_space<vmem>>, vector<4x16xf32>
    %cst_23 = arith.constant dense<0.000000e+00> : vector<4x32xf32>
    %22 = tpu.matmul %21, %20, %cst_23 {dimension_numbers = #tpu.dot_dimension_numbers<[1], [0], [0], [1], [0, 0, 1, 1], [], []>} : vector<4x16xf32>, vector<16x32xf32>, vector<4x32xf32> -> vector<4x32xf32>
    %c0_24 = arith.constant 0 : index
    %c0_25 = arith.constant 0 : index
    %c0_26 = arith.constant 0 : index
    %23 = vector.load %arg9[%c0_24, %c0_25, %c0_26] : memref<1x4x32xf32, #tpu.memory_space<vmem>>, vector<1x4x32xf32>
    %24 = vector.shape_cast %23 : vector<1x4x32xf32> to vector<4x32xf32>
    %25 = vector.shape_cast %22 : vector<4x32xf32> to vector<1x4x32xf32>
    tpu.vector_store %arg9[%c0_24, %c0_25, %c0_26], %25 {strides = array<i32>} : memref<1x4x32xf32, #tpu.memory_space<vmem>>, vector<1x4x32xf32>,
    return
  }
  func.func @transform_0(%arg0: i32) -> (i32, i32, i32) {
    %c0_i32 = arith.constant 0 : i32
    %c0_i32_0 = arith.constant 0 : i32
    %c0_i32_1 = arith.constant 0 : i32
    return %arg0, %c0_i32, %c0_i32_0 : i32, i32, i32
  }
  func.func @transform_1(%arg0: i32) -> (i32, i32) {
    %c0_i32 = arith.constant 0 : i32
    %c0_i32_0 = arith.constant 0 : i32
    %c0_i32_1 = arith.constant 0 : i32
    return %c0_i32, %c0_i32_0 : i32, i32
  }
  func.func @transform_2(%arg0: i32) -> (i32, i32) {
    %c0_i32 = arith.constant 0 : i32
    %c0_i32_0 = arith.constant 0 : i32
    %c0_i32_1 = arith.constant 0 : i32
    return %c0_i32, %c0_i32_0 : i32, i32
  }
  func.func @transform_3(%arg0: i32) -> (i32, i32) {
    %c0_i32 = arith.constant 0 : i32
    %c0_i32_0 = arith.constant 0 : i32
    %c0_i32_1 = arith.constant 0 : i32
    return %c0_i32, %c0_i32_0 : i32, i32
  }
  func.func @transform_4(%arg0: i32) -> (i32, i32) {
    %c0_i32 = arith.constant 0 : i32
    %c0_i32_0 = arith.constant 0 : i32
    %c0_i32_1 = arith.constant 0 : i32
    return %c0_i32, %c0_i32_0 : i32, i32
  }
  func.func @transform_5(%arg0: i32) -> (i32, i32) {
    %c0_i32 = arith.constant 0 : i32
    %c0_i32_0 = arith.constant 0 : i32
    %c0_i32_1 = arith.constant 0 : i32
    return %c0_i32, %c0_i32_0 : i32, i32
  }
  func.func @transform_6(%arg0: i32) -> (i32, i32) {
    %c0_i32 = arith.constant 0 : i32
    %c0_i32_0 = arith.constant 0 : i32
    %c0_i32_1 = arith.constant 0 : i32
    return %c0_i32, %c0_i32_0 : i32, i32
  }
  func.func @transform_7(%arg0: i32) -> (i32, i32) {
    %c0_i32 = arith.constant 0 : i32
    %c0_i32_0 = arith.constant 0 : i32
    %c0_i32_1 = arith.constant 0 : i32
    return %c0_i32, %c0_i32_0 : i32, i32
  }
  func.func @transform_8(%arg0: i32) -> (i32, i32, i32) {
    %c0_i32 = arith.constant 0 : i32
    %c0_i32_0 = arith.constant 0 : i32
    %c0_i32_1 = arith.constant 0 : i32
    return %arg0, %c0_i32, %c0_i32_0 : i32, i32, i32
  }
}

module attributes {stable_mosaic.version = 11 : i64} {
  func.func @_kaug_decoder_kernel(%arg0: i32, %arg1: memref<1x12x32xf32, #tpu.memory_space<vmem>>, %arg2: memref<1x1x12xf32, #tpu.memory_space<vmem>>, %arg3: memref<1x8x1xf32, #tpu.memory_space<vmem>>, %arg4: memref<1x32x4xf32, #tpu.memory_space<vmem>>, %arg5: memref<32x32xf32, #tpu.memory_space<vmem>>, %arg6: memref<32x32xf32, #tpu.memory_space<vmem>>, %arg7: memref<32x32xf32, #tpu.memory_space<vmem>>, %arg8: memref<32x32xf32, #tpu.memory_space<vmem>>, %arg9: memref<32x32xf32, #tpu.memory_space<vmem>>, %arg10: memref<32x32xf32, #tpu.memory_space<vmem>>, %arg11: memref<32x32xf32, #tpu.memory_space<vmem>>, %arg12: memref<32x32xf32, #tpu.memory_space<vmem>>, %arg13: memref<5x32xf32, #tpu.memory_space<vmem>>, %arg14: memref<5x1xf32, #tpu.memory_space<vmem>>, %arg15: memref<4x256xf32, #tpu.memory_space<vmem>>, %arg16: memref<1x5x256xf32, #tpu.memory_space<vmem>>) attributes {dimension_semantics = [#tpu.dimension_semantics<parallel>], iteration_bounds = array<i64: 2>, scalar_prefetch = 0 : i64, scratch_operands = 0 : i64, tpu.core_type = #tpu.core_type<tc>, window_params = [{transform_indices = @transform_0, window_bounds = array<i64: 1, 12, 32>}, {transform_indices = @transform_1, window_bounds = array<i64: 1, 1, 12>}, {transform_indices = @transform_2, window_bounds = array<i64: 1, 8, 1>}, {transform_indices = @transform_3, window_bounds = array<i64: 1, 32, 4>}, {pipeline_mode = #tpu.pipeline_mode<synchronous>, transform_indices = @transform_4, window_bounds = array<i64: 32, 32>}, {pipeline_mode = #tpu.pipeline_mode<synchronous>, transform_indices = @transform_5, window_bounds = array<i64: 32, 32>}, {pipeline_mode = #tpu.pipeline_mode<synchronous>, transform_indices = @transform_6, window_bounds = array<i64: 32, 32>}, {pipeline_mode = #tpu.pipeline_mode<synchronous>, transform_indices = @transform_7, window_bounds = array<i64: 32, 32>}, {pipeline_mode = #tpu.pipeline_mode<synchronous>, transform_indices = @transform_8, window_bounds = array<i64: 32, 32>}, {pipeline_mode = #tpu.pipeline_mode<synchronous>, transform_indices = @transform_9, window_bounds = array<i64: 32, 32>}, {pipeline_mode = #tpu.pipeline_mode<synchronous>, transform_indices = @transform_10, window_bounds = array<i64: 32, 32>}, {pipeline_mode = #tpu.pipeline_mode<synchronous>, transform_indices = @transform_11, window_bounds = array<i64: 32, 32>}, {pipeline_mode = #tpu.pipeline_mode<synchronous>, transform_indices = @transform_12, window_bounds = array<i64: 5, 32>}, {pipeline_mode = #tpu.pipeline_mode<synchronous>, transform_indices = @transform_13, window_bounds = array<i64: 5, 1>}, {pipeline_mode = #tpu.pipeline_mode<synchronous>, transform_indices = @transform_14, window_bounds = array<i64: 4, 256>}, {transform_indices = @transform_15, window_bounds = array<i64: 1, 5, 256>}]} {
    %c0 = arith.constant 0 : index
    %c0_0 = arith.constant 0 : index
    %c0_1 = arith.constant 0 : index
    %0 = vector.load %arg1[%c0, %c0_0, %c0_1] : memref<1x12x32xf32, #tpu.memory_space<vmem>>, vector<1x12x32xf32>
    %1 = vector.shape_cast %0 : vector<1x12x32xf32> to vector<12x32xf32>
    %2 = tpu.iota {dimensions = array<i32: 0>} : vector<12x1xi32>
    %c0_2 = arith.constant 0 : index
    %c0_3 = arith.constant 0 : index
    %3 = vector.load %arg5[%c0_2, %c0_3] : memref<32x32xf32, #tpu.memory_space<vmem>>, vector<32x32xf32>
    %cst = arith.constant dense<0.000000e+00> : vector<12x32xf32>
    %4 = tpu.matmul %1, %3, %cst {dimension_numbers = #tpu.dot_dimension_numbers<[1], [0], [0], [1], [0, 0, 1, 1], [], []>} : vector<12x32xf32>, vector<32x32xf32>, vector<12x32xf32> -> vector<12x32xf32>
    %c0_4 = arith.constant 0 : index
    %c0_5 = arith.constant 0 : index
    %5 = vector.load %arg6[%c0_4, %c0_5] : memref<32x32xf32, #tpu.memory_space<vmem>>, vector<32x32xf32>
    %cst_6 = arith.constant dense<0.000000e+00> : vector<12x32xf32>
    %6 = tpu.matmul %1, %5, %cst_6 {dimension_numbers = #tpu.dot_dimension_numbers<[1], [0], [0], [1], [0, 0, 1, 1], [], []>} : vector<12x32xf32>, vector<32x32xf32>, vector<12x32xf32> -> vector<12x32xf32>
    %c8_i32 = arith.constant 8 : i32
    %7 = vector.broadcast %c8_i32 : i32 to vector<12x1xi32>
    %8 = arith.cmpi slt, %2, %7 : vector<12x1xi32>
    %9 = vector.shape_cast %8 : vector<12x1xi1> to vector<12x1xi1>
    %10 = vector.broadcast %9 : vector<12x1xi1> to vector<12x32xi1>
    %11 = arith.select %10, %4, %6 : vector<12x32xi1>, vector<12x32xf32>
    %c0_7 = arith.constant 0 : index
    %c0_8 = arith.constant 0 : index
    %12 = vector.load %arg7[%c0_7, %c0_8] : memref<32x32xf32, #tpu.memory_space<vmem>>, vector<32x32xf32>
    %cst_9 = arith.constant dense<0.000000e+00> : vector<12x32xf32>
    %13 = tpu.matmul %11, %12, %cst_9 {dimension_numbers = #tpu.dot_dimension_numbers<[1], [0], [0], [1], [0, 0, 1, 1], [], []>} : vector<12x32xf32>, vector<32x32xf32>, vector<12x32xf32> -> vector<12x32xf32>
    %c0_10 = arith.constant 0 : index
    %c0_11 = arith.constant 0 : index
    %14 = vector.load %arg8[%c0_10, %c0_11] : memref<32x32xf32, #tpu.memory_space<vmem>>, vector<32x32xf32>
    %cst_12 = arith.constant dense<0.000000e+00> : vector<12x32xf32>
    %15 = tpu.matmul %11, %14, %cst_12 {dimension_numbers = #tpu.dot_dimension_numbers<[1], [0], [0], [1], [0, 0, 1, 1], [], []>} : vector<12x32xf32>, vector<32x32xf32>, vector<12x32xf32> -> vector<12x32xf32>
    %c0_13 = arith.constant 0 : index
    %c0_14 = arith.constant 0 : index
    %16 = vector.load %arg9[%c0_13, %c0_14] : memref<32x32xf32, #tpu.memory_space<vmem>>, vector<32x32xf32>
    %cst_15 = arith.constant dense<0.000000e+00> : vector<12x32xf32>
    %17 = tpu.matmul %11, %16, %cst_15 {dimension_numbers = #tpu.dot_dimension_numbers<[1], [0], [0], [1], [0, 0, 1, 1], [], []>} : vector<12x32xf32>, vector<32x32xf32>, vector<12x32xf32> -> vector<12x32xf32>
    %18 = tpu.transpose %15, [1, 0] : vector<12x32xf32> -> vector<32x12xf32>
    %cst_16 = arith.constant dense<0.000000e+00> : vector<12x12xf32>
    %19 = tpu.matmul %13, %18, %cst_16 {dimension_numbers = #tpu.dot_dimension_numbers<[1], [0], [0], [1], [0, 0, 1, 1], [], []>} : vector<12x32xf32>, vector<32x12xf32>, vector<12x12xf32> -> vector<12x12xf32>
    %cst_17 = arith.constant 0.176776692 : f32
    %20 = vector.broadcast %cst_17 : f32 to vector<12x12xf32>
    %21 = arith.mulf %19, %20 : vector<12x12xf32>
    %c0_18 = arith.constant 0 : index
    %c0_19 = arith.constant 0 : index
    %c0_20 = arith.constant 0 : index
    %22 = vector.load %arg2[%c0_18, %c0_19, %c0_20] : memref<1x1x12xf32, #tpu.memory_space<vmem>>, vector<1x1x12xf32>
    %23 = vector.shape_cast %22 : vector<1x1x12xf32> to vector<1x12xf32>
    %24 = vector.broadcast %23 : vector<1x12xf32> to vector<12x12xf32>
    %25 = arith.addf %21, %24 : vector<12x12xf32>
    %cst_21 = arith.constant dense<0xFF800000> : vector<12xf32>
    %26 = vector.multi_reduction <maximumf>, %25, %cst_21 [1] : vector<12x12xf32> to vector<12xf32>
    %27 = vector.shape_cast %26 : vector<12xf32> to vector<12x1xf32>
    %28 = vector.broadcast %27 : vector<12x1xf32> to vector<12x12xf32>
    %29 = arith.subf %25, %28 : vector<12x12xf32>
    %30 = math.exp %29 : vector<12x12xf32>
    %cst_22 = arith.constant dense<0.000000e+00> : vector<12xf32>
    %31 = vector.multi_reduction <add>, %30, %cst_22 [1] : vector<12x12xf32> to vector<12xf32>
    %32 = vector.shape_cast %31 : vector<12xf32> to vector<12x1xf32>
    %33 = tpu.reciprocal %32 {approx = true} : vector<12x1xf32> -> vector<12x1xf32>
    %34 = vector.broadcast %33 : vector<12x1xf32> to vector<12x12xf32>
    %35 = arith.mulf %30, %34 : vector<12x12xf32>
    %cst_23 = arith.constant dense<0.000000e+00> : vector<12x32xf32>
    %36 = tpu.matmul %35, %17, %cst_23 {dimension_numbers = #tpu.dot_dimension_numbers<[1], [0], [0], [1], [0, 0, 1, 1], [], []>} : vector<12x12xf32>, vector<12x32xf32>, vector<12x32xf32> -> vector<12x32xf32>
    %c0_24 = arith.constant 0 : index
    %c0_25 = arith.constant 0 : index
    %37 = vector.load %arg10[%c0_24, %c0_25] : memref<32x32xf32, #tpu.memory_space<vmem>>, vector<32x32xf32>
    %cst_26 = arith.constant dense<0.000000e+00> : vector<12x32xf32>
    %38 = tpu.matmul %36, %37, %cst_26 {dimension_numbers = #tpu.dot_dimension_numbers<[1], [0], [0], [1], [0, 0, 1, 1], [], []>} : vector<12x32xf32>, vector<32x32xf32>, vector<12x32xf32> -> vector<12x32xf32>
    %39 = arith.addf %11, %38 : vector<12x32xf32>
    %40 = vector.extract_strided_slice %39 {offsets = [0, 0], sizes = [8, 32], strides = [1, 1]} : vector<12x32xf32> to vector<8x32xf32>
    %c0_27 = arith.constant 0 : index
    %c0_28 = arith.constant 0 : index
    %c0_29 = arith.constant 0 : index
    %41 = vector.load %arg3[%c0_27, %c0_28, %c0_29] : memref<1x8x1xf32, #tpu.memory_space<vmem>>, vector<1x8x1xf32>
    %42 = vector.shape_cast %41 : vector<1x8x1xf32> to vector<8x1xf32>
    %cst_30 = arith.constant dense<0.000000e+00> : vector<1xf32>
    %43 = vector.multi_reduction <add>, %42, %cst_30 [0] : vector<8x1xf32> to vector<1xf32>
    %44 = vector.shape_cast %43 : vector<1xf32> to vector<1x1xf32>
    %cst_31 = arith.constant 9.99999997E-7 : f32
    %45 = vector.broadcast %cst_31 : f32 to vector<1x1xf32>
    %46 = arith.addf %44, %45 : vector<1x1xf32>
    %47 = vector.broadcast %42 : vector<8x1xf32> to vector<8x32xf32>
    %48 = arith.mulf %40, %47 : vector<8x32xf32>
    %cst_32 = arith.constant dense<0.000000e+00> : vector<32xf32>
    %49 = vector.multi_reduction <add>, %48, %cst_32 [0] : vector<8x32xf32> to vector<32xf32>
    %50 = vector.shape_cast %49 : vector<32xf32> to vector<1x32xf32>
    %51 = vector.broadcast %46 : vector<1x1xf32> to vector<1x32xf32>
    %52 = arith.divf %50, %51 : vector<1x32xf32>
    %c0_33 = arith.constant 0 : index
    %c0_34 = arith.constant 0 : index
    %53 = vector.load %arg11[%c0_33, %c0_34] : memref<32x32xf32, #tpu.memory_space<vmem>>, vector<32x32xf32>
    %cst_35 = arith.constant dense<0.000000e+00> : vector<1x32xf32>
    %54 = tpu.matmul %52, %53, %cst_35 {dimension_numbers = #tpu.dot_dimension_numbers<[1], [0], [0], [1], [0, 0, 1, 1], [], []>} : vector<1x32xf32>, vector<32x32xf32>, vector<1x32xf32> -> vector<1x32xf32>
    %55 = arith.negf %54 : vector<1x32xf32>
    %56 = math.exp %55 : vector<1x32xf32>
    %cst_36 = arith.constant 1.000000e+00 : f32
    %57 = vector.broadcast %cst_36 : f32 to vector<1x32xf32>
    %58 = arith.addf %57, %56 : vector<1x32xf32>
    %59 = arith.divf %57, %58 : vector<1x32xf32>
    %c0_37 = arith.constant 0 : index
    %c0_38 = arith.constant 0 : index
    %c0_39 = arith.constant 0 : index
    %60 = vector.load %arg4[%c0_37, %c0_38, %c0_39] : memref<1x32x4xf32, #tpu.memory_space<vmem>>, vector<1x32x4xf32>
    %61 = vector.shape_cast %60 : vector<1x32x4xf32> to vector<32x4xf32>
    %c0_40 = arith.constant 0 : index
    %c0_41 = arith.constant 0 : index
    %62 = vector.load %arg12[%c0_40, %c0_41] : memref<32x32xf32, #tpu.memory_space<vmem>>, vector<32x32xf32>
    %63 = vector.broadcast %59 : vector<1x32xf32> to vector<32x32xf32>
    %64 = arith.mulf %62, %63 : vector<32x32xf32>
    %cst_42 = arith.constant dense<0.000000e+00> : vector<32x4xf32>
    %65 = tpu.matmul %64, %61, %cst_42 {dimension_numbers = #tpu.dot_dimension_numbers<[1], [0], [0], [1], [0, 0, 1, 1], [], []>} : vector<32x32xf32>, vector<32x4xf32>, vector<32x4xf32> -> vector<32x4xf32>
    %cst_43 = arith.constant 0.000000e+00 : f32
    %66 = vector.broadcast %cst_43 : f32 to vector<32x4xf32>
    %67 = arith.maximumf %65, %66 : vector<32x4xf32>
    %c0_44 = arith.constant 0 : index
    %c0_45 = arith.constant 0 : index
    %68 = vector.load %arg13[%c0_44, %c0_45] : memref<5x32xf32, #tpu.memory_space<vmem>>, vector<5x32xf32>
    %cst_46 = arith.constant dense<0.000000e+00> : vector<5x4xf32>
    %69 = tpu.matmul %68, %67, %cst_46 {dimension_numbers = #tpu.dot_dimension_numbers<[1], [0], [0], [1], [0, 0, 1, 1], [], []>} : vector<5x32xf32>, vector<32x4xf32>, vector<5x4xf32> -> vector<5x4xf32>
    %c0_47 = arith.constant 0 : index
    %c0_48 = arith.constant 0 : index
    %70 = vector.load %arg14[%c0_47, %c0_48] : memref<5x1xf32, #tpu.memory_space<vmem>>, vector<5x1xf32>
    %71 = vector.broadcast %70 : vector<5x1xf32> to vector<5x4xf32>
    %72 = arith.addf %69, %71 : vector<5x4xf32>
    %73 = tpu.iota {dimensions = array<i32: 0>} : vector<5x4xi32>
    %74 = arith.negf %72 : vector<5x4xf32>
    %75 = math.exp %74 : vector<5x4xf32>
    %cst_49 = arith.constant 1.000000e+00 : f32
    %76 = vector.broadcast %cst_49 : f32 to vector<5x4xf32>
    %77 = arith.addf %76, %75 : vector<5x4xf32>
    %78 = arith.divf %76, %77 : vector<5x4xf32>
    %79 = math.tanh %72 : vector<5x4xf32>
    %c0_i32 = arith.constant 0 : i32
    %80 = vector.broadcast %c0_i32 : i32 to vector<5x4xi32>
    %81 = arith.cmpi eq, %73, %80 : vector<5x4xi32>
    %c2_i32 = arith.constant 2 : i32
    %82 = vector.broadcast %c2_i32 : i32 to vector<5x4xi32>
    %83 = arith.cmpi eq, %73, %82 : vector<5x4xi32>
    %c3_i32 = arith.constant 3 : i32
    %84 = vector.broadcast %c3_i32 : i32 to vector<5x4xi32>
    %85 = arith.cmpi eq, %73, %84 : vector<5x4xi32>
    %86 = arith.ori %83, %85 : vector<5x4xi1>
    %87 = arith.select %86, %79, %78 : vector<5x4xi1>, vector<5x4xf32>
    %88 = arith.select %81, %72, %87 : vector<5x4xi1>, vector<5x4xf32>
    %c0_50 = arith.constant 0 : index
    %c0_51 = arith.constant 0 : index
    %89 = vector.load %arg15[%c0_50, %c0_51] : memref<4x256xf32, #tpu.memory_space<vmem>>, vector<4x256xf32>
    %cst_52 = arith.constant dense<0.000000e+00> : vector<5x256xf32>
    %90 = tpu.matmul %88, %89, %cst_52 {dimension_numbers = #tpu.dot_dimension_numbers<[1], [0], [0], [1], [0, 0, 1, 1], [], []>} : vector<5x4xf32>, vector<4x256xf32>, vector<5x256xf32> -> vector<5x256xf32>
    %c0_53 = arith.constant 0 : index
    %c0_54 = arith.constant 0 : index
    %c0_55 = arith.constant 0 : index
    %91 = vector.load %arg16[%c0_53, %c0_54, %c0_55] : memref<1x5x256xf32, #tpu.memory_space<vmem>>, vector<1x5x256xf32>
    %92 = vector.shape_cast %91 : vector<1x5x256xf32> to vector<5x256xf32>
    %93 = vector.shape_cast %90 : vector<5x256xf32> to vector<1x5x256xf32>
    tpu.vector_store %arg16[%c0_53, %c0_54, %c0_55], %93 {strides = array<i32>} : memref<1x5x256xf32, #tpu.memory_space<vmem>>, vector<1x5x256xf32>,
    return
  }
  func.func @transform_0(%arg0: i32) -> (i32, i32, i32) {
    %c0_i32 = arith.constant 0 : i32
    %c0_i32_0 = arith.constant 0 : i32
    %c0_i32_1 = arith.constant 0 : i32
    return %arg0, %c0_i32, %c0_i32_0 : i32, i32, i32
  }
  func.func @transform_1(%arg0: i32) -> (i32, i32, i32) {
    %c0_i32 = arith.constant 0 : i32
    %c0_i32_0 = arith.constant 0 : i32
    %c0_i32_1 = arith.constant 0 : i32
    return %arg0, %c0_i32, %c0_i32_0 : i32, i32, i32
  }
  func.func @transform_2(%arg0: i32) -> (i32, i32, i32) {
    %c0_i32 = arith.constant 0 : i32
    %c0_i32_0 = arith.constant 0 : i32
    %c0_i32_1 = arith.constant 0 : i32
    return %arg0, %c0_i32, %c0_i32_0 : i32, i32, i32
  }
  func.func @transform_3(%arg0: i32) -> (i32, i32, i32) {
    %c0_i32 = arith.constant 0 : i32
    %c0_i32_0 = arith.constant 0 : i32
    %c0_i32_1 = arith.constant 0 : i32
    return %arg0, %c0_i32, %c0_i32_0 : i32, i32, i32
  }
  func.func @transform_4(%arg0: i32) -> (i32, i32) {
    %c0_i32 = arith.constant 0 : i32
    %c0_i32_0 = arith.constant 0 : i32
    %c0_i32_1 = arith.constant 0 : i32
    return %c0_i32, %c0_i32_0 : i32, i32
  }
  func.func @transform_5(%arg0: i32) -> (i32, i32) {
    %c0_i32 = arith.constant 0 : i32
    %c0_i32_0 = arith.constant 0 : i32
    %c0_i32_1 = arith.constant 0 : i32
    return %c0_i32, %c0_i32_0 : i32, i32
  }
  func.func @transform_6(%arg0: i32) -> (i32, i32) {
    %c0_i32 = arith.constant 0 : i32
    %c0_i32_0 = arith.constant 0 : i32
    %c0_i32_1 = arith.constant 0 : i32
    return %c0_i32, %c0_i32_0 : i32, i32
  }
  func.func @transform_7(%arg0: i32) -> (i32, i32) {
    %c0_i32 = arith.constant 0 : i32
    %c0_i32_0 = arith.constant 0 : i32
    %c0_i32_1 = arith.constant 0 : i32
    return %c0_i32, %c0_i32_0 : i32, i32
  }
  func.func @transform_8(%arg0: i32) -> (i32, i32) {
    %c0_i32 = arith.constant 0 : i32
    %c0_i32_0 = arith.constant 0 : i32
    %c0_i32_1 = arith.constant 0 : i32
    return %c0_i32, %c0_i32_0 : i32, i32
  }
  func.func @transform_9(%arg0: i32) -> (i32, i32) {
    %c0_i32 = arith.constant 0 : i32
    %c0_i32_0 = arith.constant 0 : i32
    %c0_i32_1 = arith.constant 0 : i32
    return %c0_i32, %c0_i32_0 : i32, i32
  }
  func.func @transform_10(%arg0: i32) -> (i32, i32) {
    %c0_i32 = arith.constant 0 : i32
    %c0_i32_0 = arith.constant 0 : i32
    %c0_i32_1 = arith.constant 0 : i32
    return %c0_i32, %c0_i32_0 : i32, i32
  }
  func.func @transform_11(%arg0: i32) -> (i32, i32) {
    %c0_i32 = arith.constant 0 : i32
    %c0_i32_0 = arith.constant 0 : i32
    %c0_i32_1 = arith.constant 0 : i32
    return %c0_i32, %c0_i32_0 : i32, i32
  }
  func.func @transform_12(%arg0: i32) -> (i32, i32) {
    %c0_i32 = arith.constant 0 : i32
    %c0_i32_0 = arith.constant 0 : i32
    %c0_i32_1 = arith.constant 0 : i32
    return %c0_i32, %c0_i32_0 : i32, i32
  }
  func.func @transform_13(%arg0: i32) -> (i32, i32) {
    %c0_i32 = arith.constant 0 : i32
    %c0_i32_0 = arith.constant 0 : i32
    %c0_i32_1 = arith.constant 0 : i32
    return %c0_i32, %c0_i32_0 : i32, i32
  }
  func.func @transform_14(%arg0: i32) -> (i32, i32) {
    %c0_i32 = arith.constant 0 : i32
    %c0_i32_0 = arith.constant 0 : i32
    %c0_i32_1 = arith.constant 0 : i32
    return %c0_i32, %c0_i32_0 : i32, i32
  }
  func.func @transform_15(%arg0: i32) -> (i32, i32, i32) {
    %c0_i32 = arith.constant 0 : i32
    %c0_i32_0 = arith.constant 0 : i32
    %c0_i32_1 = arith.constant 0 : i32
    return %arg0, %c0_i32, %c0_i32_0 : i32, i32, i32
  }
}

</mosaic_0001>

<llo_original>
// kernel: kggrasp_forward.3
$region0: #{kggrasp_forward.3}
  #allocation0 [shape = 'u32[]', space=smem, size = 0x4, offset = 0x4, fixed_abs, tag = 'smem constant byte address 0x4 - core index']
  #allocation1 [shape = 'u32[144,128]{1,0:T(1,128)}', space=vmem, size = 0x12000, scoped, tag = 'internal scratch']
  %s0 = inlined_call_operand.vmem [shape: f32[2,12,32], index: 0, kind: input, shape index: {}]
  %s1 = inlined_call_operand.vmem [shape: f32[2,1,12], index: 1, kind: input, shape index: {}]
  %s2 = inlined_call_operand.vmem [shape: f32[2,8,1], index: 2, kind: input, shape index: {}]
  %s3 = inlined_call_operand.vmem [shape: f32[2,32,4], index: 3, kind: input, shape index: {}]
  %s4 = inlined_call_operand.vmem [shape: f32[32,32], index: 4, kind: input, shape index: {}]
  %s5 = inlined_call_operand.vmem [shape: f32[32,32], index: 5, kind: input, shape index: {}]
  %s6 = inlined_call_operand.vmem [shape: f32[32,32], index: 6, kind: input, shape index: {}]
  %s7 = inlined_call_operand.vmem [shape: f32[32,32], index: 7, kind: input, shape index: {}]
  %s8 = inlined_call_operand.vmem [shape: f32[32,32], index: 8, kind: input, shape index: {}]
  %s9 = inlined_call_operand.vmem [shape: f32[32,32], index: 9, kind: input, shape index: {}]
  %s10 = inlined_call_operand.vmem [shape: f32[32,32], index: 10, kind: input, shape index: {}]
  %s11 = inlined_call_operand.vmem [shape: f32[32,32], index: 11, kind: input, shape index: {}]
  %s12 = inlined_call_operand.vmem [shape: f32[5,32], index: 12, kind: input, shape index: {}]
  %s13 = inlined_call_operand.vmem [shape: f32[5,1], index: 13, kind: input, shape index: {}]
  %s14 = inlined_call_operand.vmem [shape: f32[4,256], index: 14, kind: input, shape index: {}]
  %s15 = inlined_call_operand.vmem [shape: f32[2,5,256], index: 15, kind: output, shape index: {}]
  %s16 = sld [smem:[#allocation0]]
  $region93: #{kggrasp_forward.3} parent=0
    _
  %s18 = ssub.s32 1, %s16
  %s19 = scalar_select 0, %s18, %s16
  loop: start=0, step=1, limit=4
  $region2: #{kggrasp_forward.3} parent=0 // loop_pre_header
    _
  $region3: #{kggrasp_forward.3} parent=0 // loop_header
    %s21 = sphi 0, %s25
    %p22 = scmp.ge.s32.totalorder %s21, 4
    %s31 = sphi 0, %s33
    %s34 = sphi 0, %s31
    %s35 = sphi 0, %s34
    %s51 = sphi 0, %s35
    %s57 = sphi 0, %s59
    %s60 = sphi 0, %s57
    %s61 = sphi 0, %s60
    %s77 = sphi 0, %s61
    %s83 = sphi 0, %s85
    %s86 = sphi 0, %s83
    %s87 = sphi 0, %s86
    %s103 = sphi 0, %s87
    %s109 = sphi 0, %s111
    %s112 = sphi 0, %s109
    %s113 = sphi 0, %s112
    %s129 = sphi 0, %s113
    %s133 = sphi 0, %s133
    %s135 = sphi 0, %s133
    %s136 = sphi 0, %s135
    %s150 = sphi 0, %s136
    %s154 = sphi 0, %s154
    %s156 = sphi 0, %s154
    %s157 = sphi 0, %s156
    %s171 = sphi 0, %s157
    %s175 = sphi 0, %s175
    %s177 = sphi 0, %s175
    %s178 = sphi 0, %s177
    %s192 = sphi 0, %s178
    %s196 = sphi 0, %s196
    %s198 = sphi 0, %s196
    %s199 = sphi 0, %s198
    %s213 = sphi 0, %s199
    %s217 = sphi 0, %s217
    %s219 = sphi 0, %s217
    %s220 = sphi 0, %s219
    %s234 = sphi 0, %s220
    %s238 = sphi 0, %s238
    %s240 = sphi 0, %s238
    %s241 = sphi 0, %s240
    %s255 = sphi 0, %s241
    %s259 = sphi 0, %s259
    %s261 = sphi 0, %s259
    %s262 = sphi 0, %s261
    %s276 = sphi 0, %s262
    %s280 = sphi 0, %s280
    %s282 = sphi 0, %s280
    %s283 = sphi 0, %s282
    %s297 = sphi 0, %s283
    %s301 = sphi 0, %s301
    %s303 = sphi 0, %s301
    %s304 = sphi 0, %s303
    %s318 = sphi 0, %s304
    %s322 = sphi 0, %s322
    %s324 = sphi 0, %s322
    %s325 = sphi 0, %s324
    %s339 = sphi 0, %s325
    %s343 = sphi 0, %s343
    %s345 = sphi 0, %s343
    %s346 = sphi 0, %s345
    %s360 = sphi 0, %s346
    %s366 = sphi 0, %s368
    %s369 = sphi 0, %s366
    %s370 = sphi 0, %s369
    %s386 = sphi 0, %s370
  $region4: #{kggrasp_forward.3} parent=0 // loop_header_branch
    %24 = sbr.rel (%p22) target = $region8
  $region5: #{kggrasp_forward.3} parent=0 // loop_body
    %s26 = ssub.s32 %s21, 1
    %s27 = ssub.s32 %s21, 2
    %s28 = sadd.s32 %s21, 1
    %s29 = ssub.s32 %s21, %s28
    %p30 = scmp.eq.s32.totalorder %s29, 0
    %s32 = sadd.s32 %s31, 1
    %s33 = scalar_select %p30, %s31, %s32
    %p36 = pneg %p30
    %p37 = scmp.eq.s32.totalorder %s21, 1
    %p38 = por %p36, %p37
    %p39 = scmp.ne.s32.totalorder %s31, %s34
    %p40 = scmp.eq.s32.totalorder %s21, 0
    %p41 = por %p39, %p40
    %p42 = scmp.ne.s32.totalorder %s31, %s34
    %p43 = scmp.eq.s32.totalorder %s26, 1
    %p44 = por %p42, %p43
    %p45 = scmp.ne.s32.totalorder %s34, %s35
    %p46 = scmp.eq.s32.totalorder %s26, 0
    %p47 = por %p45, %p46
    %p48 = scmp.ne.s32.totalorder %s34, %s35
    %p49 = scmp.eq.s32.totalorder %s27, 1
    %p50 = por %p48, %p49
    %p52 = scmp.ne.s32.totalorder %s35, %s51
    %p53 = scmp.eq.s32.totalorder %s27, 0
    %p54 = por %p52, %p53
    %s55 = ssub.s32 %s21, %s28
    %p56 = scmp.eq.s32.totalorder %s55, 0
    %s58 = sadd.s32 %s57, 1
    %s59 = scalar_select %p56, %s57, %s58
    %p62 = pneg %p56
    %p63 = scmp.eq.s32.totalorder %s21, 1
    %p64 = por %p62, %p63
    %p65 = scmp.ne.s32.totalorder %s57, %s60
    %p66 = scmp.eq.s32.totalorder %s21, 0
    %p67 = por %p65, %p66
    %p68 = scmp.ne.s32.totalorder %s57, %s60
    %p69 = scmp.eq.s32.totalorder %s26, 1
    %p70 = por %p68, %p69
    %p71 = scmp.ne.s32.totalorder %s60, %s61
    %p72 = scmp.eq.s32.totalorder %s26, 0
    %p73 = por %p71, %p72
    %p74 = scmp.ne.s32.totalorder %s60, %s61
    %p75 = scmp.eq.s32.totalorder %s27, 1
    %p76 = por %p74, %p75
    %p78 = scmp.ne.s32.totalorder %s61, %s77
    %p79 = scmp.eq.s32.totalorder %s27, 0
    %p80 = por %p78, %p79
    %s81 = ssub.s32 %s21, %s28
    %p82 = scmp.eq.s32.totalorder %s81, 0
    %s84 = sadd.s32 %s83, 1
    %s85 = scalar_select %p82, %s83, %s84
    %p88 = pneg %p82
    %p89 = scmp.eq.s32.totalorder %s21, 1
    %p90 = por %p88, %p89
    %p91 = scmp.ne.s32.totalorder %s83, %s86
    %p92 = scmp.eq.s32.totalorder %s21, 0
    %p93 = por %p91, %p92
    %p94 = scmp.ne.s32.totalorder %s83, %s86
    %p95 = scmp.eq.s32.totalorder %s26, 1
    %p96 = por %p94, %p95
    %p97 = scmp.ne.s32.totalorder %s86, %s87
    %p98 = scmp.eq.s32.totalorder %s26, 0
    %p99 = por %p97, %p98
    %p100 = scmp.ne.s32.totalorder %s86, %s87
    %p101 = scmp.eq.s32.totalorder %s27, 1
    %p102 = por %p100, %p101
    %p104 = scmp.ne.s32.totalorder %s87, %s103
    %p105 = scmp.eq.s32.totalorder %s27, 0
    %p106 = por %p104, %p105
    %s107 = ssub.s32 %s21, %s28
    %p108 = scmp.eq.s32.totalorder %s107, 0
    %s110 = sadd.s32 %s109, 1
    %s111 = scalar_select %p108, %s109, %s110
    %p114 = pneg %p108
    %p115 = scmp.eq.s32.totalorder %s21, 1
    %p116 = por %p114, %p115
    %p117 = scmp.ne.s32.totalorder %s109, %s112
    %p118 = scmp.eq.s32.totalorder %s21, 0
    %p119 = por %p117, %p118
    %p120 = scmp.ne.s32.totalorder %s109, %s112
    %p121 = scmp.eq.s32.totalorder %s26, 1
    %p122 = por %p120, %p121
    %p123 = scmp.ne.s32.totalorder %s112, %s113
    %p124 = scmp.eq.s32.totalorder %s26, 0
    %p125 = por %p123, %p124
    %p126 = scmp.ne.s32.totalorder %s112, %s113
    %p127 = scmp.eq.s32.totalorder %s27, 1
    %p128 = por %p126, %p127
    %p130 = scmp.ne.s32.totalorder %s113, %s129
    %p131 = scmp.eq.s32.totalorder %s27, 0
    %p132 = por %p130, %p131
    %s134 = sadd.s32 %s133, 1
    %p137 = scmp.eq.s32.totalorder %s21, 1
    %p138 = scmp.ne.s32.totalorder %s133, %s135
    %p139 = scmp.eq.s32.totalorder %s21, 0
    %p140 = por %p138, %p139
    %p141 = scmp.ne.s32.totalorder %s133, %s135
    %p142 = scmp.eq.s32.totalorder %s26, 1
    %p143 = por %p141, %p142
    %p144 = scmp.ne.s32.totalorder %s135, %s136
    %p145 = scmp.eq.s32.totalorder %s26, 0
    %p146 = por %p144, %p145
    %p147 = scmp.ne.s32.totalorder %s135, %s136
    %p148 = scmp.eq.s32.totalorder %s27, 1
    %p149 = por %p147, %p148
    %p151 = scmp.ne.s32.totalorder %s136, %s150
    %p152 = scmp.eq.s32.totalorder %s27, 0
    %p153 = por %p151, %p152
    %s155 = sadd.s32 %s154, 1
    %p158 = scmp.eq.s32.totalorder %s21, 1
    %p159 = scmp.ne.s32.totalorder %s154, %s156
    %p160 = scmp.eq.s32.totalorder %s21, 0
    %p161 = por %p159, %p160
    %p162 = scmp.ne.s32.totalorder %s154, %s156
    %p163 = scmp.eq.s32.totalorder %s26, 1
    %p164 = por %p162, %p163
    %p165 = scmp.ne.s32.totalorder %s156, %s157
    %p166 = scmp.eq.s32.totalorder %s26, 0
    %p167 = por %p165, %p166
    %p168 = scmp.ne.s32.totalorder %s156, %s157
    %p169 = scmp.eq.s32.totalorder %s27, 1
    %p170 = por %p168, %p169
    %p172 = scmp.ne.s32.totalorder %s157, %s171
    %p173 = scmp.eq.s32.totalorder %s27, 0
    %p174 = por %p172, %p173
    %s176 = sadd.s32 %s175, 1
    %p179 = scmp.eq.s32.totalorder %s21, 1
    %p180 = scmp.ne.s32.totalorder %s175, %s177
    %p181 = scmp.eq.s32.totalorder %s21, 0
    %p182 = por %p180, %p181
    %p183 = scmp.ne.s32.totalorder %s175, %s177
    %p184 = scmp.eq.s32.totalorder %s26, 1
    %p185 = por %p183, %p184
    %p186 = scmp.ne.s32.totalorder %s177, %s178
    %p187 = scmp.eq.s32.totalorder %s26, 0
    %p188 = por %p186, %p187
    %p189 = scmp.ne.s32.totalorder %s177, %s178
    %p190 = scmp.eq.s32.totalorder %s27, 1
    %p191 = por %p189, %p190
    %p193 = scmp.ne.s32.totalorder %s178, %s192
    %p194 = scmp.eq.s32.totalorder %s27, 0
    %p195 = por %p193, %p194
    %s197 = sadd.s32 %s196, 1
    %p200 = scmp.eq.s32.totalorder %s21, 1
    %p201 = scmp.ne.s32.totalorder %s196, %s198
    %p202 = scmp.eq.s32.totalorder %s21, 0
    %p203 = por %p201, %p202
    %p204 = scmp.ne.s32.totalorder %s196, %s198
    %p205 = scmp.eq.s32.totalorder %s26, 1
    %p206 = por %p204, %p205
    %p207 = scmp.ne.s32.totalorder %s198, %s199
    %p208 = scmp.eq.s32.totalorder %s26, 0
    %p209 = por %p207, %p208
    %p210 = scmp.ne.s32.totalorder %s198, %s199
    %p211 = scmp.eq.s32.totalorder %s27, 1
    %p212 = por %p210, %p211
    %p214 = scmp.ne.s32.totalorder %s199, %s213
    %p215 = scmp.eq.s32.totalorder %s27, 0
    %p216 = por %p214, %p215
    %s218 = sadd.s32 %s217, 1
    %p221 = scmp.eq.s32.totalorder %s21, 1
    %p222 = scmp.ne.s32.totalorder %s217, %s219
    %p223 = scmp.eq.s32.totalorder %s21, 0
    %p224 = por %p222, %p223
    %p225 = scmp.ne.s32.totalorder %s217, %s219
    %p226 = scmp.eq.s32.totalorder %s26, 1
    %p227 = por %p225, %p226
    %p228 = scmp.ne.s32.totalorder %s219, %s220
    %p229 = scmp.eq.s32.totalorder %s26, 0
    %p230 = por %p228, %p229
    %p231 = scmp.ne.s32.totalorder %s219, %s220
    %p232 = scmp.eq.s32.totalorder %s27, 1
    %p233 = por %p231, %p232
    %p235 = scmp.ne.s32.totalorder %s220, %s234
    %p236 = scmp.eq.s32.totalorder %s27, 0
    %p237 = por %p235, %p236
    %s239 = sadd.s32 %s238, 1
    %p242 = scmp.eq.s32.totalorder %s21, 1
    %p243 = scmp.ne.s32.totalorder %s238, %s240
    %p244 = scmp.eq.s32.totalorder %s21, 0
    %p245 = por %p243, %p244
    %p246 = scmp.ne.s32.totalorder %s238, %s240
    %p247 = scmp.eq.s32.totalorder %s26, 1
    %p248 = por %p246, %p247
    %p249 = scmp.ne.s32.totalorder %s240, %s241
    %p250 = scmp.eq.s32.totalorder %s26, 0
    %p251 = por %p249, %p250
    %p252 = scmp.ne.s32.totalorder %s240, %s241
    %p253 = scmp.eq.s32.totalorder %s27, 1
    %p254 = por %p252, %p253
    %p256 = scmp.ne.s32.totalorder %s241, %s255
    %p257 = scmp.eq.s32.totalorder %s27, 0
    %p258 = por %p256, %p257
    %s260 = sadd.s32 %s259, 1
    %p263 = scmp.eq.s32.totalorder %s21, 1
    %p264 = scmp.ne.s32.totalorder %s259, %s261
    %p265 = scmp.eq.s32.totalorder %s21, 0
    %p266 = por %p264, %p265
    %p267 = scmp.ne.s32.totalorder %s259, %s261
    %p268 = scmp.eq.s32.totalorder %s26, 1
    %p269 = por %p267, %p268
    %p270 = scmp.ne.s32.totalorder %s261, %s262
    %p271 = scmp.eq.s32.totalorder %s26, 0
    %p272 = por %p270, %p271
    %p273 = scmp.ne.s32.totalorder %s261, %s262
    %p274 = scmp.eq.s32.totalorder %s27, 1
    %p275 = por %p273, %p274
    %p277 = scmp.ne.s32.totalorder %s262, %s276
    %p278 = scmp.eq.s32.totalorder %s27, 0
    %p279 = por %p277, %p278
    %s281 = sadd.s32 %s280, 1
    %p284 = scmp.eq.s32.totalorder %s21, 1
    %p285 = scmp.ne.s32.totalorder %s280, %s282
    %p286 = scmp.eq.s32.totalorder %s21, 0
    %p287 = por %p285, %p286
    %p288 = scmp.ne.s32.totalorder %s280, %s282
    %p289 = scmp.eq.s32.totalorder %s26, 1
    %p290 = por %p288, %p289
    %p291 = scmp.ne.s32.totalorder %s282, %s283
    %p292 = scmp.eq.s32.totalorder %s26, 0
    %p293 = por %p291, %p292
    %p294 = scmp.ne.s32.totalorder %s282, %s283
    %p295 = scmp.eq.s32.totalorder %s27, 1
    %p296 = por %p294, %p295
    %p298 = scmp.ne.s32.totalorder %s283, %s297
    %p299 = scmp.eq.s32.totalorder %s27, 0
    %p300 = por %p298, %p299
    %s302 = sadd.s32 %s301, 1
    %p305 = scmp.eq.s32.totalorder %s21, 1
    %p306 = scmp.ne.s32.totalorder %s301, %s303
    %p307 = scmp.eq.s32.totalorder %s21, 0
    %p308 = por %p306, %p307
    %p309 = scmp.ne.s32.totalorder %s301, %s303
    %p310 = scmp.eq.s32.totalorder %s26, 1
    %p311 = por %p309, %p310
    %p312 = scmp.ne.s32.totalorder %s303, %s304
    %p313 = scmp.eq.s32.totalorder %s26, 0
    %p314 = por %p312, %p313
    %p315 = scmp.ne.s32.totalorder %s303, %s304
    %p316 = scmp.eq.s32.totalorder %s27, 1
    %p317 = por %p315, %p316
    %p319 = scmp.ne.s32.totalorder %s304, %s318
    %p320 = scmp.eq.s32.totalorder %s27, 0
    %p321 = por %p319, %p320
    %s323 = sadd.s32 %s322, 1
    %p326 = scmp.eq.s32.totalorder %s21, 1
    %p327 = scmp.ne.s32.totalorder %s322, %s324
    %p328 = scmp.eq.s32.totalorder %s21, 0
    %p329 = por %p327, %p328
    %p330 = scmp.ne.s32.totalorder %s322, %s324
    %p331 = scmp.eq.s32.totalorder %s26, 1
    %p332 = por %p330, %p331
    %p333 = scmp.ne.s32.totalorder %s324, %s325
    %p334 = scmp.eq.s32.totalorder %s26, 0
    %p335 = por %p333, %p334
    %p336 = scmp.ne.s32.totalorder %s324, %s325
    %p337 = scmp.eq.s32.totalorder %s27, 1
    %p338 = por %p336, %p337
    %p340 = scmp.ne.s32.totalorder %s325, %s339
    %p341 = scmp.eq.s32.totalorder %s27, 0
    %p342 = por %p340, %p341
    %s344 = sadd.s32 %s343, 1
    %p347 = scmp.eq.s32.totalorder %s21, 1
    %p348 = scmp.ne.s32.totalorder %s343, %s345
    %p349 = scmp.eq.s32.totalorder %s21, 0
    %p350 = por %p348, %p349
    %p351 = scmp.ne.s32.totalorder %s343, %s345
    %p352 = scmp.eq.s32.totalorder %s26, 1
    %p353 = por %p351, %p352
    %p354 = scmp.ne.s32.totalorder %s345, %s346
    %p355 = scmp.eq.s32.totalorder %s26, 0
    %p356 = por %p354, %p355
    %p357 = scmp.ne.s32.totalorder %s345, %s346
    %p358 = scmp.eq.s32.totalorder %s27, 1
    %p359 = por %p357, %p358
    %p361 = scmp.ne.s32.totalorder %s346, %s360
    %p362 = scmp.eq.s32.totalorder %s27, 0
    %p363 = por %p361, %p362
    %s364 = ssub.s32 %s21, %s28
    %p365 = scmp.eq.s32.totalorder %s364, 0
    %s367 = sadd.s32 %s366, 1
    %s368 = scalar_select %p365, %s366, %s367
    %p371 = pneg %p365
    %p372 = scmp.eq.s32.totalorder %s21, 1
    %p373 = por %p371, %p372
    %p374 = scmp.ne.s32.totalorder %s366, %s369
    %p375 = scmp.eq.s32.totalorder %s21, 0
    %p376 = por %p374, %p375
    %p377 = scmp.ne.s32.totalorder %s366, %s369
    %p378 = scmp.eq.s32.totalorder %s26, 1
    %p379 = por %p377, %p378
    %p380 = scmp.ne.s32.totalorder %s369, %s370
    %p381 = scmp.eq.s32.totalorder %s26, 0
    %p382 = por %p380, %p381
    %p383 = scmp.ne.s32.totalorder %s369, %s370
    %p384 = scmp.eq.s32.totalorder %s27, 1
    %p385 = por %p383, %p384
    %p387 = scmp.ne.s32.totalorder %s370, %s386
    %p388 = scmp.eq.s32.totalorder %s27, 0
    %p389 = por %p387, %p388
    %p390 = scmp.le.s32.totalorder 1, %s21
    %p391 = scmp.lt.s32.totalorder %s21, 3
    %p392 = pnand %p390, %p391
    %p393 = pneg %p392
    // Predicated region
    $region9: #{kggrasp_forward.3} parent=5 // pred_check
      _
    $region10: #{kggrasp_forward.3} parent=5 // pred_check_branch
      %395 = sbr.rel (%p392) target = $region12
    $region11: #{kggrasp_forward.3} parent=5 // pred_region
      %s396 = ssub.s32 %s21, 1
      // Predicated region
      $region13: #{kggrasp_forward.3} parent=11 // pred_check
        %p397 = pneg %p146
      $region14: #{kggrasp_forward.3} parent=11 // pred_check_branch
        %399 = sbr.rel (%p397) target = $region16
      $region15: #{kggrasp_forward.3} parent=11 // pred_region
        _
      $region16: #{kggrasp_forward.3} parent=11 // pred_fallthru
        _
      // Predicated region
      $region17: #{kggrasp_forward.3} parent=11 // pred_check
        %p400 = pneg %p167
      $region18: #{kggrasp_forward.3} parent=11 // pred_check_branch
        %402 = sbr.rel (%p400) target = $region20
      $region19: #{kggrasp_forward.3} parent=11 // pred_region
        _
      $region20: #{kggrasp_forward.3} parent=11 // pred_fallthru
        _
      // Predicated region
      $region21: #{kggrasp_forward.3} parent=11 // pred_check
        %p403 = pneg %p188
      $region22: #{kggrasp_forward.3} parent=11 // pred_check_branch
        %405 = sbr.rel (%p403) target = $region24
      $region23: #{kggrasp_forward.3} parent=11 // pred_region
        _
      $region24: #{kggrasp_forward.3} parent=11 // pred_fallthru
        _
      // Predicated region
      $region25: #{kggrasp_forward.3} parent=11 // pred_check
        %p406 = pneg %p209
      $region26: #{kggrasp_forward.3} parent=11 // pred_check_branch
        %408 = sbr.rel (%p406) target = $region28
      $region27: #{kggrasp_forward.3} parent=11 // pred_region
        _
      $region28: #{kggrasp_forward.3} parent=11 // pred_fallthru
        _
      // Predicated region
      $region29: #{kggrasp_forward.3} parent=11 // pred_check
        %p409 = pneg %p230
      $region30: #{kggrasp_forward.3} parent=11 // pred_check_branch
        %411 = sbr.rel (%p409) target = $region32
      $region31: #{kggrasp_forward.3} parent=11 // pred_region
        _
      $region32: #{kggrasp_forward.3} parent=11 // pred_fallthru
        _
      // Predicated region
      $region33: #{kggrasp_forward.3} parent=11 // pred_check
        %p412 = pneg %p251
      $region34: #{kggrasp_forward.3} parent=11 // pred_check_branch
        %414 = sbr.rel (%p412) target = $region36
      $region35: #{kggrasp_forward.3} parent=11 // pred_region
        _
      $region36: #{kggrasp_forward.3} parent=11 // pred_fallthru
        _
      // Predicated region
      $region37: #{kggrasp_forward.3} parent=11 // pred_check
        %p415 = pneg %p272
      $region38: #{kggrasp_forward.3} parent=11 // pred_check_branch
        %417 = sbr.rel (%p415) target = $region40
      $region39: #{kggrasp_forward.3} parent=11 // pred_region
        _
      $region40: #{kggrasp_forward.3} parent=11 // pred_fallthru
        _
      // Predicated region
      $region41: #{kggrasp_forward.3} parent=11 // pred_check
        %p418 = pneg %p293
      $region42: #{kggrasp_forward.3} parent=11 // pred_check_branch
        %420 = sbr.rel (%p418) target = $region44
      $region43: #{kggrasp_forward.3} parent=11 // pred_region
        _
      $region44: #{kggrasp_forward.3} parent=11 // pred_fallthru
        _
      // Predicated region
      $region45: #{kggrasp_forward.3} parent=11 // pred_check
        %p421 = pneg %p314
      $region46: #{kggrasp_forward.3} parent=11 // pred_check_branch
        %423 = sbr.rel (%p421) target = $region48
      $region47: #{kggrasp_forward.3} parent=11 // pred_region
        _
      $region48: #{kggrasp_forward.3} parent=11 // pred_fallthru
        _
      // Predicated region
      $region49: #{kggrasp_forward.3} parent=11 // pred_check
        %p424 = pneg %p335
      $region50: #{kggrasp_forward.3} parent=11 // pred_check_branch
        %426 = sbr.rel (%p424) target = $region52
      $region51: #{kggrasp_forward.3} parent=11 // pred_region
        _
      $region52: #{kggrasp_forward.3} parent=11 // pred_fallthru
        _
      // Predicated region
      $region53: #{kggrasp_forward.3} parent=11 // pred_check
        %p427 = pneg %p356
      $region54: #{kggrasp_forward.3} parent=11 // pred_check_branch
        %429 = sbr.rel (%p427) target = $region56
      $region55: #{kggrasp_forward.3} parent=11 // pred_region
        _
      $region56: #{kggrasp_forward.3} parent=11 // pred_fallthru
        _
    $region12: #{kggrasp_forward.3} parent=5 // pred_fallthru
      _
    %p430 = scmp.lt.s32.totalorder %s21, 2
    // Predicated region
    $region57: #{kggrasp_forward.3} parent=5 // pred_check
      %p431 = pneg %p430
    $region58: #{kggrasp_forward.3} parent=5 // pred_check_branch
      %433 = sbr.rel (%p431) target = $region60
    $region59: #{kggrasp_forward.3} parent=5 // pred_region
      // Predicated region
      $region61: #{kggrasp_forward.3} parent=59 // pred_check
        %p434 = pneg %p41
      $region62: #{kggrasp_forward.3} parent=59 // pred_check_branch
        %436 = sbr.rel (%p434) target = $region64
      $region63: #{kggrasp_forward.3} parent=59 // pred_region
        %p437 = scmp.lt.s32.totalorder %s21, 1
        %s438 = scalar_select %p437, %s21, 1
        %s439 = smul.addr %s438, 2
        %s440 = smul.addr %s439, 8
        %s441 = scalar_lea.vmem %s0, %s440
      $region64: #{kggrasp_forward.3} parent=59 // pred_fallthru
        _
      // Predicated region
      $region65: #{kggrasp_forward.3} parent=59 // pred_check
        %p442 = pneg %p67
      $region66: #{kggrasp_forward.3} parent=59 // pred_check_branch
        %444 = sbr.rel (%p442) target = $region68
      $region67: #{kggrasp_forward.3} parent=59 // pred_region
        %p445 = scmp.lt.s32.totalorder %s21, 1
        %s446 = scalar_select %p445, %s21, 1
        %s447 = scalar_lea.vmem %s1, %s446
      $region68: #{kggrasp_forward.3} parent=59 // pred_fallthru
        _
      // Predicated region
      $region69: #{kggrasp_forward.3} parent=59 // pred_check
        %p448 = pneg %p93
      $region70: #{kggrasp_forward.3} parent=59 // pred_check_branch
        %450 = sbr.rel (%p448) target = $region72
      $region71: #{kggrasp_forward.3} parent=59 // pred_region
        %p451 = scmp.lt.s32.totalorder %s21, 1
        %s452 = scalar_select %p451, %s21, 1
        %s453 = smul.addr %s452, 8
        %s454 = scalar_lea.vmem %s2, %s453
      $region72: #{kggrasp_forward.3} parent=59 // pred_fallthru
        _
      // Predicated region
      $region73: #{kggrasp_forward.3} parent=59 // pred_check
        %p455 = pneg %p119
      $region74: #{kggrasp_forward.3} parent=59 // pred_check_branch
        %457 = sbr.rel (%p455) target = $region76
      $region75: #{kggrasp_forward.3} parent=59 // pred_region
        %p458 = scmp.lt.s32.totalorder %s21, 1
        %s459 = scalar_select %p458, %s21, 1
        %s460 = smul.addr %s459, 4
        %s461 = smul.addr %s460, 8
        %s462 = scalar_lea.vmem %s3, %s461
      $region76: #{kggrasp_forward.3} parent=59 // pred_fallthru
        _
    $region60: #{kggrasp_forward.3} parent=5 // pred_fallthru
      _
    %p463 = scmp.le.s32.totalorder 1, %s21
    %p464 = scmp.lt.s32.totalorder %s21, 3
    %p465 = pnand %p463, %p464
    %p466 = pneg %p465
    // Predicated region
    $region77: #{kggrasp_forward.3} parent=5 // pred_check
      _
    $region78: #{kggrasp_forward.3} parent=5 // pred_check_branch
      %468 = sbr.rel (%p465) target = $region80
    $region79: #{kggrasp_forward.3} parent=5 // pred_region
      %s469 = ssub.s32 %s21, 1
      %p470 = scmp.lt.s32.totalorder %s26, 1
      %s471 = scalar_select %p470, %s26, 1
      %s472 = smul.addr %s471, 2
      %s473 = smul.addr %s472, 8
      %s474 = scalar_lea.vmem %s0, %s473
      %p475 = pneg %p47
      %p476 = pneg %p44
      %p477 = scmp.lt.s32.totalorder %s26, 1
      %s478 = scalar_select %p477, %s26, 1
      %s479 = scalar_lea.vmem %s1, %s478
      %p480 = pneg %p73
      %p481 = pneg %p70
      %p482 = scmp.lt.s32.totalorder %s26, 1
      %s483 = scalar_select %p482, %s26, 1
      %s484 = smul.addr %s483, 8
      %s485 = scalar_lea.vmem %s2, %s484
      %p486 = pneg %p99
      %p487 = pneg %p96
      %p488 = scmp.lt.s32.totalorder %s26, 1
      %s489 = scalar_select %p488, %s26, 1
      %s490 = smul.addr %s489, 4
      %s491 = smul.addr %s490, 8
      %s492 = scalar_lea.vmem %s3, %s491
      %p493 = pneg %p125
      %p494 = pneg %p122
      %p495 = pneg %p146
      %p496 = pneg %p143
      %p497 = pneg %p167
      %p498 = pneg %p164
      %p499 = pneg %p188
      %p500 = pneg %p185
      %p501 = pneg %p209
      %p502 = pneg %p206
      %p503 = pneg %p230
      %p504 = pneg %p227
      %p505 = pneg %p251
      %p506 = pneg %p248
      %p507 = pneg %p272
      %p508 = pneg %p269
      %p509 = pneg %p293
      %p510 = pneg %p290
      %p511 = pneg %p314
      %p512 = pneg %p311
      %p513 = pneg %p335
      %p514 = pneg %p332
      %p515 = pneg %p356
      %p516 = pneg %p353
      %p517 = pneg %p382
      %p518 = pneg %p379
      %p519 = scmp.lt.s32.totalorder %s26, 1
      %s520 = scalar_select %p519, %s26, 1
      %s521 = smul.addr %s520, 2
      %s522 = smul.addr %s521, 8
      %s523 = scalar_lea.vmem %s15, %s522
      %p524 = scmp.lt.s32.totalorder %s26, 1
      %s525 = scalar_select %p524, %s26, 1
      %s526 = smul.addr %s525, 2
      %s527 = smul.addr %s526, 8
      %s528 = scalar_lea.vmem %s0, %s527
      %p529 = scmp.lt.s32.totalorder %s26, 1
      %s530 = scalar_select %p529, %s26, 1
      %s531 = scalar_lea.vmem %s1, %s530
      %p532 = scmp.lt.s32.totalorder %s26, 1
      %s533 = scalar_select %p532, %s26, 1
      %s534 = smul.addr %s533, 8
      %s535 = scalar_lea.vmem %s2, %s534
      %p536 = scmp.lt.s32.totalorder %s26, 1
      %s537 = scalar_select %p536, %s26, 1
      %s538 = smul.addr %s537, 4
      %s539 = smul.addr %s538, 8
      %s540 = scalar_lea.vmem %s3, %s539
      %p541 = scmp.lt.s32.totalorder %s26, 1
      %s542 = scalar_select %p541, %s26, 1
      %s543 = smul.addr %s542, 2
      %s544 = smul.addr %s543, 8
      %s545 = scalar_lea.vmem %s15, %s544
      %v546 = vld [vmem:[%s528] sm:$0xff]
      %v547 = vld [vmem:[%s528 + $0x8] sm:$0xf]
      %v548 = vlaneseq
      %v549 = vshrl.u32 %v548, 7
      %v550 = vadd.s32 %v549, 8
      %v551 = vld [vmem:[%s4] sm:$0xff]
      %v552 = vld [vmem:[%s4 + $0x8] sm:$0xff]
      %v553 = vld [vmem:[%s4 + $0x10] sm:$0xff]
      %v554 = vld [vmem:[%s4 + $0x18] sm:$0xff]
      %vm555 = vcmask 261120
      %v557 = vsel %vm555, %v546, 0
      %v560 = vsel %vm555, %v547, 0
      %562 = vmatprep.subr.mxu0 0.0
      %563 = vmatpush1.msra.mxu0 %v551
      %564 = vmatprep.subr.mxu0 0.0
      %565 = vmatpush1.msra.mxu0 %v552
      %566 = vmatprep.subr.mxu0 0.0
      %567 = vmatpush1.msra.mxu0 %v553
      %568 = vmatprep.subr.mxu0 0.0
      %569 = vmatpush1.msra.mxu0 %v554
      %570 = vmatprep.subr.mxu0 0.0
      %571 = vmatpush1.msra.mxu0 0.0
      %572 = vmatprep.subr.mxu0 0.0
      %573 = vmatpush1.msra.mxu0 0.0
      %574 = vmatprep.subr.mxu0 0.0
      %575 = vmatpush1.msra.mxu0 0.0
      %576 = vmatprep.subr.mxu0 0.0
      %577 = vmatpush1.msra.mxu0 0.0
      %578 = vmatprep.subr.mxu0 0.0
      %579 = vmatpush1.msra.mxu0 0.0
      %580 = vmatprep.subr.mxu0 0.0
      %581 = vmatpush1.msra.mxu0 0.0
      %582 = vmatprep.subr.mxu0 0.0
      %583 = vmatpush1.msra.mxu0 0.0
      %584 = vmatprep.subr.mxu0 0.0
      %585 = vmatpush1.msra.mxu0 0.0
      %586 = vmatprep.subr.mxu0 0.0
      %587 = vmatpush1.msra.mxu0 0.0
      %588 = vmatprep.subr.mxu0 0.0
      %589 = vmatpush1.msra.mxu0 0.0
      %590 = vmatprep.subr.mxu0 0.0
      %591 = vmatpush1.msra.mxu0 0.0
      %592 = vmatprep.subr.mxu0 0.0
      %593 = vmatpush1.msra.mxu0 0.0
      %594 = vmatprep.subr.mxu0 0.0
      %595 = vmatpush1.msra.mxu0 0.0
      %596 = vmatprep.subr.mxu0 0.0
      %597 = vmatpush1.msra.mxu0 0.0
      %598 = vmatprep.subr.mxu0 0.0
      %599 = vmatpush1.msra.mxu0 0.0
      %600 = vmatprep.subr.mxu0 0.0
      %601 = vmatpush1.msra.mxu0 0.0
      %602 = vmatprep.subr.mxu0 0.0
      %603 = vmatpush1.msra.mxu0 0.0
      %604 = vmatprep.subr.mxu0 0.0
      %605 = vmatpush1.msra.mxu0 0.0
      %606 = vmatprep.subr.mxu0 0.0
      %607 = vmatpush1.msra.mxu0 0.0
      %608 = vmatprep.subr.mxu0 0.0
      %609 = vmatpush1.msra.mxu0 0.0
      %610 = vmatprep.subr.mxu0 0.0
      %611 = vmatpush1.msra.mxu0 0.0
      %612 = vmatprep.subr.mxu0 0.0
      %613 = vmatpush1.msra.mxu0 0.0
      %614 = vmatprep.subr.mxu0 0.0
      %615 = vmatpush1.msra.mxu0 0.0
      %616 = vmatprep.subr.mxu0 0.0
      %617 = vmatpush1.msra.mxu0 0.0
      %618 = vmatprep.subr.mxu0 0.0
      %619 = vmatpush1.msra.mxu0 0.0
      %620 = vmatprep.subr.mxu0 0.0
      %621 = vmatpush1.msra.mxu0 0.0
      %622 = vmatprep.subr.mxu0 0.0
      %623 = vmatpush1.msra.mxu0 0.0
      %624 = vmatprep.subr.mxu0 0.0
      %625 = vmatpush1.msra.mxu0 0.0
      %626 = vmatprep.mubr.f32.mxu0 0.0
      %627 = vmatmul.mubr.f32.gmra.mrb[0].mxu0 %v557
      %v628 = vpop.f32.mrb[0].mxu0
      %v629 = vadd.f32 0.0, %v628
      %v630 = vpop.f32.mrb[0].mxu0
      %631 = vmatprep.mubr.f32.mxu0 0.0
      %632 = vmatmul.mubr.f32.gmra.mrb[0].mxu0 %v560
      %v633 = vpop.f32.mrb[0].mxu0
      %v634 = vadd.f32 0.0, %v633
      %v635 = vpop.f32.mrb[0].mxu0
      %636 = vdwg.mxu0
      %v637 = vld [vmem:[%s5] sm:$0xff]
      %v638 = vld [vmem:[%s5 + $0x8] sm:$0xff]
      %v639 = vld [vmem:[%s5 + $0x10] sm:$0xff]
      %v640 = vld [vmem:[%s5 + $0x18] sm:$0xff]
      %641 = vmatprep.subr.mxu0 0.0
      %642 = vmatpush1.msra.mxu0 %v637
      %643 = vmatprep.subr.mxu0 0.0
      %644 = vmatpush1.msra.mxu0 %v638
      %645 = vmatprep.subr.mxu0 0.0
      %646 = vmatpush1.msra.mxu0 %v639
      %647 = vmatprep.subr.mxu0 0.0
      %648 = vmatpush1.msra.mxu0 %v640
      %649 = vmatprep.subr.mxu0 0.0
      %650 = vmatpush1.msra.mxu0 0.0
      %651 = vmatprep.subr.mxu0 0.0
      %652 = vmatpush1.msra.mxu0 0.0
      %653 = vmatprep.subr.mxu0 0.0
      %654 = vmatpush1.msra.mxu0 0.0
      %655 = vmatprep.subr.mxu0 0.0
      %656 = vmatpush1.msra.mxu0 0.0
      %657 = vmatprep.subr.mxu0 0.0
      %658 = vmatpush1.msra.mxu0 0.0
      %659 = vmatprep.subr.mxu0 0.0
      %660 = vmatpush1.msra.mxu0 0.0
      %661 = vmatprep.subr.mxu0 0.0
      %662 = vmatpush1.msra.mxu0 0.0
      %663 = vmatprep.subr.mxu0 0.0
      %664 = vmatpush1.msra.mxu0 0.0
      %665 = vmatprep.subr.mxu0 0.0
      %666 = vmatpush1.msra.mxu0 0.0
      %667 = vmatprep.subr.mxu0 0.0
      %668 = vmatpush1.msra.mxu0 0.0
      %669 = vmatprep.subr.mxu0 0.0
      %670 = vmatpush1.msra.mxu0 0.0
      %671 = vmatprep.subr.mxu0 0.0
      %672 = vmatpush1.msra.mxu0 0.0
      %673 = vmatprep.subr.mxu0 0.0
      %674 = vmatpush1.msra.mxu0 0.0
      %675 = vmatprep.subr.mxu0 0.0
      %676 = vmatpush1.msra.mxu0 0.0
      %677 = vmatprep.subr.mxu0 0.0
      %678 = vmatpush1.msra.mxu0 0.0
      %679 = vmatprep.subr.mxu0 0.0
      %680 = vmatpush1.msra.mxu0 0.0
      %681 = vmatprep.subr.mxu0 0.0
      %682 = vmatpush1.msra.mxu0 0.0
      %683 = vmatprep.subr.mxu0 0.0
      %684 = vmatpush1.msra.mxu0 0.0
      %685 = vmatprep.subr.mxu0 0.0
      %686 = vmatpush1.msra.mxu0 0.0
      %687 = vmatprep.subr.mxu0 0.0
      %688 = vmatpush1.msra.mxu0 0.0
      %689 = vmatprep.subr.mxu0 0.0
      %690 = vmatpush1.msra.mxu0 0.0
      %691 = vmatprep.subr.mxu0 0.0
      %692 = vmatpush1.msra.mxu0 0.0
      %693 = vmatprep.subr.mxu0 0.0
      %694 = vmatpush1.msra.mxu0 0.0
      %695 = vmatprep.subr.mxu0 0.0
      %696 = vmatpush1.msra.mxu0 0.0
      %697 = vmatprep.subr.mxu0 0.0
      %698 = vmatpush1.msra.mxu0 0.0
      %699 = vmatprep.subr.mxu0 0.0
      %700 = vmatpush1.msra.mxu0 0.0
      %701 = vmatprep.subr.mxu0 0.0
      %702 = vmatpush1.msra.mxu0 0.0
      %703 = vmatprep.subr.mxu0 0.0
      %704 = vmatpush1.msra.mxu0 0.0
      %705 = vmatprep.mubr.f32.mxu0 0.0
      %706 = vmatmul.mubr.f32.gmra.mrb[0].mxu0 %v557
      %v707 = vpop.f32.mrb[0].mxu0
      %v708 = vadd.f32 0.0, %v707
      %v709 = vpop.f32.mrb[0].mxu0
      %710 = vmatprep.mubr.f32.mxu0 0.0
      %711 = vmatmul.mubr.f32.gmra.mrb[0].mxu0 %v560
      %v712 = vpop.f32.mrb[0].mxu0
      %v713 = vadd.f32 0.0, %v712
      %v714 = vpop.f32.mrb[0].mxu0
      %715 = vdwg.mxu0
      %vm716 = vcmp.lt.s32.totalorder %v549, 8
      %vm717 = vcmp.lt.s32.totalorder %v550, 8
      %v718 = vsel %vm716, 1, 0
      %v719 = vsel %vm717, 1, 0
      %vm720 = vcmp.eq.s32.totalorder %v718, 1
      %vm721 = vcmp.eq.s32.totalorder %v719, 1
      %v722 = vsel %vm720, %v629, %v708
      %v723 = vsel %vm721, %v634, %v713
      %v724 = vld [vmem:[%s6] sm:$0xff]
      %v725 = vld [vmem:[%s6 + $0x8] sm:$0xff]
      %v726 = vld [vmem:[%s6 + $0x10] sm:$0xff]
      %v727 = vld [vmem:[%s6 + $0x18] sm:$0xff]
      %v729 = vsel %vm555, %v722, 0
      %v732 = vsel %vm555, %v723, 0
      %734 = vmatprep.subr.mxu0 0.0
      %735 = vmatpush1.msra.mxu0 %v724
      %736 = vmatprep.subr.mxu0 0.0
      %737 = vmatpush1.msra.mxu0 %v725
      %738 = vmatprep.subr.mxu0 0.0
      %739 = vmatpush1.msra.mxu0 %v726
      %740 = vmatprep.subr.mxu0 0.0
      %741 = vmatpush1.msra.mxu0 %v727
      %742 = vmatprep.subr.mxu0 0.0
      %743 = vmatpush1.msra.mxu0 0.0
      %744 = vmatprep.subr.mxu0 0.0
      %745 = vmatpush1.msra.mxu0 0.0
      %746 = vmatprep.subr.mxu0 0.0
      %747 = vmatpush1.msra.mxu0 0.0
      %748 = vmatprep.subr.mxu0 0.0
      %749 = vmatpush1.msra.mxu0 0.0
      %750 = vmatprep.subr.mxu0 0.0
      %751 = vmatpush1.msra.mxu0 0.0
      %752 = vmatprep.subr.mxu0 0.0
      %753 = vmatpush1.msra.mxu0 0.0
      %754 = vmatprep.subr.mxu0 0.0
      %755 = vmatpush1.msra.mxu0 0.0
      %756 = vmatprep.subr.mxu0 0.0
      %757 = vmatpush1.msra.mxu0 0.0
      %758 = vmatprep.subr.mxu0 0.0
      %759 = vmatpush1.msra.mxu0 0.0
      %760 = vmatprep.subr.mxu0 0.0
      %761 = vmatpush1.msra.mxu0 0.0
      %762 = vmatprep.subr.mxu0 0.0
      %763 = vmatpush1.msra.mxu0 0.0
      %764 = vmatprep.subr.mxu0 0.0
      %765 = vmatpush1.msra.mxu0 0.0
      %766 = vmatprep.subr.mxu0 0.0
      %767 = vmatpush1.msra.mxu0 0.0
      %768 = vmatprep.subr.mxu0 0.0
      %769 = vmatpush1.msra.mxu0 0.0
      %770 = vmatprep.subr.mxu0 0.0
      %771 = vmatpush1.msra.mxu0 0.0
      %772 = vmatprep.subr.mxu0 0.0
      %773 = vmatpush1.msra.mxu0 0.0
      %774 = vmatprep.subr.mxu0 0.0
      %775 = vmatpush1.msra.mxu0 0.0
      %776 = vmatprep.subr.mxu0 0.0
      %777 = vmatpush1.msra.mxu0 0.0
      %778 = vmatprep.subr.mxu0 0.0
      %779 = vmatpush1.msra.mxu0 0.0
      %780 = vmatprep.subr.mxu0 0.0
      %781 = vmatpush1.msra.mxu0 0.0
      %782 = vmatprep.subr.mxu0 0.0
      %783 = vmatpush1.msra.mxu0 0.0
      %784 = vmatprep.subr.mxu0 0.0
      %785 = vmatpush1.msra.mxu0 0.0
      %786 = vmatprep.subr.mxu0 0.0
      %787 = vmatpush1.msra.mxu0 0.0
      %788 = vmatprep.subr.mxu0 0.0
      %789 = vmatpush1.msra.mxu0 0.0
      %790 = vmatprep.subr.mxu0 0.0
      %791 = vmatpush1.msra.mxu0 0.0
      %792 = vmatprep.subr.mxu0 0.0
      %793 = vmatpush1.msra.mxu0 0.0
      %794 = vmatprep.subr.mxu0 0.0
      %795 = vmatpush1.msra.mxu0 0.0
      %796 = vmatprep.subr.mxu0 0.0
      %797 = vmatpush1.msra.mxu0 0.0
      %798 = vmatprep.mubr.f32.mxu0 0.0
      %799 = vmatmul.mubr.f32.gmra.mrb[0].mxu0 %v729
      %v800 = vpop.f32.mrb[0].mxu0
      %v801 = vadd.f32 0.0, %v800
      %v802 = vpop.f32.mrb[0].mxu0
      %803 = vmatprep.mubr.f32.mxu0 0.0
      %804 = vmatmul.mubr.f32.gmra.mrb[0].mxu0 %v732
      %v805 = vpop.f32.mrb[0].mxu0
      %v806 = vadd.f32 0.0, %v805
      %v807 = vpop.f32.mrb[0].mxu0
      %808 = vdwg.mxu0
      %v809 = vld [vmem:[%s7] sm:$0xff]
      %v810 = vld [vmem:[%s7 + $0x8] sm:$0xff]
      %v811 = vld [vmem:[%s7 + $0x10] sm:$0xff]
      %v812 = vld [vmem:[%s7 + $0x18] sm:$0xff]
      %813 = vmatprep.subr.mxu0 0.0
      %814 = vmatpush1.msra.mxu0 %v809
      %815 = vmatprep.subr.mxu0 0.0
      %816 = vmatpush1.msra.mxu0 %v810
      %817 = vmatprep.subr.mxu0 0.0
      %818 = vmatpush1.msra.mxu0 %v811
      %819 = vmatprep.subr.mxu0 0.0
      %820 = vmatpush1.msra.mxu0 %v812
      %821 = vmatprep.subr.mxu0 0.0
      %822 = vmatpush1.msra.mxu0 0.0
      %823 = vmatprep.subr.mxu0 0.0
      %824 = vmatpush1.msra.mxu0 0.0
      %825 = vmatprep.subr.mxu0 0.0
      %826 = vmatpush1.msra.mxu0 0.0
      %827 = vmatprep.subr.mxu0 0.0
      %828 = vmatpush1.msra.mxu0 0.0
      %829 = vmatprep.subr.mxu0 0.0
      %830 = vmatpush1.msra.mxu0 0.0
      %831 = vmatprep.subr.mxu0 0.0
      %832 = vmatpush1.msra.mxu0 0.0
      %833 = vmatprep.subr.mxu0 0.0
      %834 = vmatpush1.msra.mxu0 0.0
      %835 = vmatprep.subr.mxu0 0.0
      %836 = vmatpush1.msra.mxu0 0.0
      %837 = vmatprep.subr.mxu0 0.0
      %838 = vmatpush1.msra.mxu0 0.0
      %839 = vmatprep.subr.mxu0 0.0
      %840 = vmatpush1.msra.mxu0 0.0
      %841 = vmatprep.subr.mxu0 0.0
      %842 = vmatpush1.msra.mxu0 0.0
      %843 = vmatprep.subr.mxu0 0.0
      %844 = vmatpush1.msra.mxu0 0.0
      %845 = vmatprep.subr.mxu0 0.0
      %846 = vmatpush1.msra.mxu0 0.0
      %847 = vmatprep.subr.mxu0 0.0
      %848 = vmatpush1.msra.mxu0 0.0
      %849 = vmatprep.subr.mxu0 0.0
      %850 = vmatpush1.msra.mxu0 0.0
      %851 = vmatprep.subr.mxu0 0.0
      %852 = vmatpush1.msra.mxu0 0.0
      %853 = vmatprep.subr.mxu0 0.0
      %854 = vmatpush1.msra.mxu0 0.0
      %855 = vmatprep.subr.mxu0 0.0
      %856 = vmatpush1.msra.mxu0 0.0
      %857 = vmatprep.subr.mxu0 0.0
      %858 = vmatpush1.msra.mxu0 0.0
      %859 = vmatprep.subr.mxu0 0.0
      %860 = vmatpush1.msra.mxu0 0.0
      %861 = vmatprep.subr.mxu0 0.0
      %862 = vmatpush1.msra.mxu0 0.0
      %863 = vmatprep.subr.mxu0 0.0
      %864 = vmatpush1.msra.mxu0 0.0
      %865 = vmatprep.subr.mxu0 0.0
      %866 = vmatpush1.msra.mxu0 0.0
      %867 = vmatprep.subr.mxu0 0.0
      %868 = vmatpush1.msra.mxu0 0.0
      %869 = vmatprep.subr.mxu0 0.0
      %870 = vmatpush1.msra.mxu0 0.0
      %871 = vmatprep.subr.mxu0 0.0
      %872 = vmatpush1.msra.mxu0 0.0
      %873 = vmatprep.subr.mxu0 0.0
      %874 = vmatpush1.msra.mxu0 0.0
      %875 = vmatprep.subr.mxu0 0.0
      %876 = vmatpush1.msra.mxu0 0.0
      %877 = vmatprep.mubr.f32.mxu0 0.0
      %878 = vmatmul.mubr.f32.gmra.mrb[0].mxu0 %v729
      %v879 = vpop.f32.mrb[0].mxu0
      %v880 = vadd.f32 0.0, %v879
      %v881 = vpop.f32.mrb[0].mxu0
      %882 = vmatprep.mubr.f32.mxu0 0.0
      %883 = vmatmul.mubr.f32.gmra.mrb[0].mxu0 %v732
      %v884 = vpop.f32.mrb[0].mxu0
      %v885 = vadd.f32 0.0, %v884
      %v886 = vpop.f32.mrb[0].mxu0
      %887 = vdwg.mxu0
      %v888 = vld [vmem:[%s8] sm:$0xff]
      %v889 = vld [vmem:[%s8 + $0x8] sm:$0xff]
      %v890 = vld [vmem:[%s8 + $0x10] sm:$0xff]
      %v891 = vld [vmem:[%s8 + $0x18] sm:$0xff]
      %892 = vmatprep.subr.mxu0 0.0
      %893 = vmatpush1.msra.mxu0 %v888
      %894 = vmatprep.subr.mxu0 0.0
      %895 = vmatpush1.msra.mxu0 %v889
      %896 = vmatprep.subr.mxu0 0.0
      %897 = vmatpush1.msra.mxu0 %v890
      %898 = vmatprep.subr.mxu0 0.0
      %899 = vmatpush1.msra.mxu0 %v891
      %900 = vmatprep.subr.mxu0 0.0
      %901 = vmatpush1.msra.mxu0 0.0
      %902 = vmatprep.subr.mxu0 0.0
      %903 = vmatpush1.msra.mxu0 0.0
      %904 = vmatprep.subr.mxu0 0.0
      %905 = vmatpush1.msra.mxu0 0.0
      %906 = vmatprep.subr.mxu0 0.0
      %907 = vmatpush1.msra.mxu0 0.0
      %908 = vmatprep.subr.mxu0 0.0
      %909 = vmatpush1.msra.mxu0 0.0
      %910 = vmatprep.subr.mxu0 0.0
      %911 = vmatpush1.msra.mxu0 0.0
      %912 = vmatprep.subr.mxu0 0.0
      %913 = vmatpush1.msra.mxu0 0.0
      %914 = vmatprep.subr.mxu0 0.0
      %915 = vmatpush1.msra.mxu0 0.0
      %916 = vmatprep.subr.mxu0 0.0
      %917 = vmatpush1.msra.mxu0 0.0
      %918 = vmatprep.subr.mxu0 0.0
      %919 = vmatpush1.msra.mxu0 0.0
      %920 = vmatprep.subr.mxu0 0.0
      %921 = vmatpush1.msra.mxu0 0.0
      %922 = vmatprep.subr.mxu0 0.0
      %923 = vmatpush1.msra.mxu0 0.0
      %924 = vmatprep.subr.mxu0 0.0
      %925 = vmatpush1.msra.mxu0 0.0
      %926 = vmatprep.subr.mxu0 0.0
      %927 = vmatpush1.msra.mxu0 0.0
      %928 = vmatprep.subr.mxu0 0.0
      %929 = vmatpush1.msra.mxu0 0.0
      %930 = vmatprep.subr.mxu0 0.0
      %931 = vmatpush1.msra.mxu0 0.0
      %932 = vmatprep.subr.mxu0 0.0
      %933 = vmatpush1.msra.mxu0 0.0
      %934 = vmatprep.subr.mxu0 0.0
      %935 = vmatpush1.msra.mxu0 0.0
      %936 = vmatprep.subr.mxu0 0.0
      %937 = vmatpush1.msra.mxu0 0.0
      %938 = vmatprep.subr.mxu0 0.0
      %939 = vmatpush1.msra.mxu0 0.0
      %940 = vmatprep.subr.mxu0 0.0
      %941 = vmatpush1.msra.mxu0 0.0
      %942 = vmatprep.subr.mxu0 0.0
      %943 = vmatpush1.msra.mxu0 0.0
      %944 = vmatprep.subr.mxu0 0.0
      %945 = vmatpush1.msra.mxu0 0.0
      %946 = vmatprep.subr.mxu0 0.0
      %947 = vmatpush1.msra.mxu0 0.0
      %948 = vmatprep.subr.mxu0 0.0
      %949 = vmatpush1.msra.mxu0 0.0
      %950 = vmatprep.subr.mxu0 0.0
      %951 = vmatpush1.msra.mxu0 0.0
      %952 = vmatprep.subr.mxu0 0.0
      %953 = vmatpush1.msra.mxu0 0.0
      %954 = vmatprep.subr.mxu0 0.0
      %955 = vmatpush1.msra.mxu0 0.0
      %956 = vmatprep.mubr.f32.mxu0 0.0
      %957 = vmatmul.mubr.f32.gmra.mrb[0].mxu0 %v729
      %v958 = vpop.f32.mrb[0].mxu0
      %v959 = vadd.f32 0.0, %v958
      %v960 = vpop.f32.mrb[0].mxu0
      %961 = vmatprep.mubr.f32.mxu0 0.0
      %962 = vmatmul.mubr.f32.gmra.mrb[0].mxu0 %v732
      %v963 = vpop.f32.mrb[0].mxu0
      %v964 = vadd.f32 0.0, %v963
      %v965 = vpop.f32.mrb[0].mxu0
      %966 = vdwg.mxu0
      %v968 = vsel %vm555, %v801, 0
      %v971 = vsel %vm555, %v806, 0
      %v974 = vsel %vm555, %v880, 0
      %v977 = vsel %vm555, %v885, 0
      %979 = vmatprep.subr.mxu0 0.0
      %980 = vmatpush1.xpose.msra.mxu0 %v974
      %981 = vmatprep.subr.mxu0 0.0
      %982 = vmatpush1.xpose.msra.mxu0 %v977
      %983 = vmatprep.subr.mxu0 0.0
      %984 = vmatpush1.xpose.msra.mxu0 0.0
      %985 = vmatprep.subr.mxu0 0.0
      %986 = vmatpush1.xpose.msra.mxu0 0.0
      %987 = vmatprep.subr.mxu0 0.0
      %988 = vmatpush1.xpose.msra.mxu0 0.0
      %989 = vmatprep.subr.mxu0 0.0
      %990 = vmatpush1.xpose.msra.mxu0 0.0
      %991 = vmatprep.subr.mxu0 0.0
      %992 = vmatpush1.xpose.msra.mxu0 0.0
      %993 = vmatprep.subr.mxu0 0.0
      %994 = vmatpush1.xpose.msra.mxu0 0.0
      %995 = vmatprep.subr.mxu0 0.0
      %996 = vmatpush1.xpose.msra.mxu0 0.0
      %997 = vmatprep.subr.mxu0 0.0
      %998 = vmatpush1.xpose.msra.mxu0 0.0
      %999 = vmatprep.subr.mxu0 0.0
      %1000 = vmatpush1.xpose.msra.mxu0 0.0
      %1001 = vmatprep.subr.mxu0 0.0
      %1002 = vmatpush1.xpose.msra.mxu0 0.0
      %1003 = vmatprep.subr.mxu0 0.0
      %1004 = vmatpush1.xpose.msra.mxu0 0.0
      %1005 = vmatprep.subr.mxu0 0.0
      %1006 = vmatpush1.xpose.msra.mxu0 0.0
      %1007 = vmatprep.subr.mxu0 0.0
      %1008 = vmatpush1.xpose.msra.mxu0 0.0
      %1009 = vmatprep.subr.mxu0 0.0
      %1010 = vmatpush1.xpose.msra.mxu0 0.0
      %1011 = vmatprep.subr.mxu0 0.0
      %1012 = vmatpush1.xpose.msra.mxu0 0.0
      %1013 = vmatprep.subr.mxu0 0.0
      %1014 = vmatpush1.xpose.msra.mxu0 0.0
      %1015 = vmatprep.subr.mxu0 0.0
      %1016 = vmatpush1.xpose.msra.mxu0 0.0
      %1017 = vmatprep.subr.mxu0 0.0
      %1018 = vmatpush1.xpose.msra.mxu0 0.0
      %1019 = vmatprep.subr.mxu0 0.0
      %1020 = vmatpush1.xpose.msra.mxu0 0.0
      %1021 = vmatprep.subr.mxu0 0.0
      %1022 = vmatpush1.xpose.msra.mxu0 0.0
      %1023 = vmatprep.subr.mxu0 0.0
      %1024 = vmatpush1.xpose.msra.mxu0 0.0
      %1025 = vmatprep.subr.mxu0 0.0
      %1026 = vmatpush1.xpose.msra.mxu0 0.0
      %1027 = vmatprep.subr.mxu0 0.0
      %1028 = vmatpush1.xpose.msra.mxu0 0.0
      %1029 = vmatprep.subr.mxu0 0.0
      %1030 = vmatpush1.xpose.msra.mxu0 0.0
      %1031 = vmatprep.subr.mxu0 0.0
      %1032 = vmatpush1.xpose.msra.mxu0 0.0
      %1033 = vmatprep.subr.mxu0 0.0
      %1034 = vmatpush1.xpose.msra.mxu0 0.0
      %1035 = vmatprep.subr.mxu0 0.0
      %1036 = vmatpush1.xpose.msra.mxu0 0.0
      %1037 = vmatprep.subr.mxu0 0.0
      %1038 = vmatpush1.xpose.msra.mxu0 0.0
      %1039 = vmatprep.subr.mxu0 0.0
      %1040 = vmatpush1.xpose.msra.mxu0 0.0
      %1041 = vmatprep.subr.mxu0 0.0
      %1042 = vmatpush1.xpose.msra.mxu0 0.0
      %1043 = vmatprep.mubr.f32.mxu0 0.0
      %1044 = vmatmul.mubr.f32.gmra.mrb[0].mxu0 %v968
      %v1045 = vpop.f32.mrb[0].mxu0
      %v1046 = vadd.f32 0.0, %v1045
      %v1047 = vpop.f32.mrb[0].mxu0
      %1048 = vmatprep.mubr.f32.mxu0 0.0
      %1049 = vmatmul.mubr.f32.gmra.mrb[0].mxu0 %v971
      %v1050 = vpop.f32.mrb[0].mxu0
      %v1051 = vadd.f32 0.0, %v1050
      %v1052 = vpop.f32.mrb[0].mxu0
      %1053 = vdwg.mxu0
      %v1054 = vmul.f32 %v1046, 0.17677669
      %v1055 = vmul.f32 %v1051, 0.17677669
      %v1056 = vld [vmem:[%s531] sm:$0x1]
      %v1058 = vlaneseq
      %v1059 = vshrl.u32 %v1058, 7
      %v1060 = vsub.s32 0, %v1059
      %v1061 = vrot.slane %v1056, %v1060
      %v1063 = vadd.f32 %v1054, %v1061
      %v1064 = vadd.f32 %v1055, %v1061
      %vm1065 = vcmask 97280
      %v1066 = vsel %vm1065, %v1063, -inf
      %1067 = vmax.xlane.f32.xlu0 %v1066
      %v1068 = vpop.xlane.xlu0 %1067
      %vm1069 = vcmask 93184
      %v1070 = vsel %vm1069, %v1064, -inf
      %1071 = vmax.xlane.f32.xlu0 %v1070
      %v1072 = vpop.xlane.xlu0 %1071
      %v1073 = vsub.f32 %v1063, %v1068
      %v1074 = vsub.f32 %v1064, %v1072
      %v1075 = vmul.f32 %v1073, 1.442695
      %v1076 = vpow.pop %v1075
      %v1077 = vmul.f32 %v1074, 1.442695
      %v1078 = vpow.pop %v1077
      %v1079 = vsel %vm1065, %v1076, 0.0
      %1080 = vadd.xlane.f32.xlu0 %v1079
      %v1081 = vpop.xlane.xlu0 %1080
      %v1082 = vsel %vm1069, %v1078, 0.0
      %1083 = vadd.xlane.f32.xlu0 %v1082
      %v1084 = vpop.xlane.xlu0 %1083
      %v1085 = vrcp.pop %v1081
      %v1086 = vrcp.pop %v1084
      %v1087 = vmul.f32 %v1076, %v1085
      %v1088 = vmul.f32 %v1078, %v1086
      %v1090 = vsel %vm1065, %v1087, 0
      %v1093 = vsel %vm1065, %v1088, 0
      %vm1095 = vcmask 1043456
      %v1097 = vsel %vm1095, %v964, 0
      %1099 = vmatprep.subr.mxu0 0.0
      %1100 = vmatpush1.msra.mxu0 %v959
      %1101 = vmatprep.subr.mxu0 0.0
      %1102 = vmatpush1.msra.mxu0 %v1097
      %1103 = vmatprep.subr.mxu0 0.0
      %1104 = vmatpush1.msra.mxu0 0.0
      %1105 = vmatprep.subr.mxu0 0.0
      %1106 = vmatpush1.msra.mxu0 0.0
      %1107 = vmatprep.subr.mxu0 0.0
      %1108 = vmatpush1.msra.mxu0 0.0
      %1109 = vmatprep.subr.mxu0 0.0
      %1110 = vmatpush1.msra.mxu0 0.0
      %1111 = vmatprep.subr.mxu0 0.0
      %1112 = vmatpush1.msra.mxu0 0.0
      %1113 = vmatprep.subr.mxu0 0.0
      %1114 = vmatpush1.msra.mxu0 0.0
      %1115 = vmatprep.subr.mxu0 0.0
      %1116 = vmatpush1.msra.mxu0 0.0
      %1117 = vmatprep.subr.mxu0 0.0
      %1118 = vmatpush1.msra.mxu0 0.0
      %1119 = vmatprep.subr.mxu0 0.0
      %1120 = vmatpush1.msra.mxu0 0.0
      %1121 = vmatprep.subr.mxu0 0.0
      %1122 = vmatpush1.msra.mxu0 0.0
      %1123 = vmatprep.subr.mxu0 0.0
      %1124 = vmatpush1.msra.mxu0 0.0
      %1125 = vmatprep.subr.mxu0 0.0
      %1126 = vmatpush1.msra.mxu0 0.0
      %1127 = vmatprep.subr.mxu0 0.0
      %1128 = vmatpush1.msra.mxu0 0.0
      %1129 = vmatprep.subr.mxu0 0.0
      %1130 = vmatpush1.msra.mxu0 0.0
      %1131 = vmatprep.subr.mxu0 0.0
      %1132 = vmatpush1.msra.mxu0 0.0
      %1133 = vmatprep.subr.mxu0 0.0
      %1134 = vmatpush1.msra.mxu0 0.0
      %1135 = vmatprep.subr.mxu0 0.0
      %1136 = vmatpush1.msra.mxu0 0.0
      %1137 = vmatprep.subr.mxu0 0.0
      %1138 = vmatpush1.msra.mxu0 0.0
      %1139 = vmatprep.subr.mxu0 0.0
      %1140 = vmatpush1.msra.mxu0 0.0
      %1141 = vmatprep.subr.mxu0 0.0
      %1142 = vmatpush1.msra.mxu0 0.0
      %1143 = vmatprep.subr.mxu0 0.0
      %1144 = vmatpush1.msra.mxu0 0.0
      %1145 = vmatprep.subr.mxu0 0.0
      %1146 = vmatpush1.msra.mxu0 0.0
      %1147 = vmatprep.subr.mxu0 0.0
      %1148 = vmatpush1.msra.mxu0 0.0
      %1149 = vmatprep.subr.mxu0 0.0
      %1150 = vmatpush1.msra.mxu0 0.0
      %1151 = vmatprep.subr.mxu0 0.0
      %1152 = vmatpush1.msra.mxu0 0.0
      %1153 = vmatprep.subr.mxu0 0.0
      %1154 = vmatpush1.msra.mxu0 0.0
      %1155 = vmatprep.subr.mxu0 0.0
      %1156 = vmatpush1.msra.mxu0 0.0
      %1157 = vmatprep.subr.mxu0 0.0
      %1158 = vmatpush1.msra.mxu0 0.0
      %1159 = vmatprep.subr.mxu0 0.0
      %1160 = vmatpush1.msra.mxu0 0.0
      %1161 = vmatprep.subr.mxu0 0.0
      %1162 = vmatpush1.msra.mxu0 0.0
      %1163 = vmatprep.mubr.f32.mxu0 0.0
      %1164 = vmatmul.mubr.f32.gmra.mrb[0].mxu0 %v1090
      %v1165 = vpop.f32.mrb[0].mxu0
      %v1166 = vadd.f32 0.0, %v1165
      %v1167 = vpop.f32.mrb[0].mxu0
      %1168 = vmatprep.mubr.f32.mxu0 0.0
      %1169 = vmatmul.mubr.f32.gmra.mrb[0].mxu0 %v1093
      %v1170 = vpop.f32.mrb[0].mxu0
      %v1171 = vadd.f32 0.0, %v1170
      %v1172 = vpop.f32.mrb[0].mxu0
      %1173 = vdwg.mxu0
      %v1174 = vld [vmem:[%s9] sm:$0xff]
      %v1175 = vld [vmem:[%s9 + $0x8] sm:$0xff]
      %v1176 = vld [vmem:[%s9 + $0x10] sm:$0xff]
      %v1177 = vld [vmem:[%s9 + $0x18] sm:$0xff]
      %v1179 = vsel %vm555, %v1166, 0
      %v1182 = vsel %vm555, %v1171, 0
      %1184 = vmatprep.subr.mxu0 0.0
      %1185 = vmatpush1.msra.mxu0 %v1174
      %1186 = vmatprep.subr.mxu0 0.0
      %1187 = vmatpush1.msra.mxu0 %v1175
      %1188 = vmatprep.subr.mxu0 0.0
      %1189 = vmatpush1.msra.mxu0 %v1176
      %1190 = vmatprep.subr.mxu0 0.0
      %1191 = vmatpush1.msra.mxu0 %v1177
      %1192 = vmatprep.subr.mxu0 0.0
      %1193 = vmatpush1.msra.mxu0 0.0
      %1194 = vmatprep.subr.mxu0 0.0
      %1195 = vmatpush1.msra.mxu0 0.0
      %1196 = vmatprep.subr.mxu0 0.0
      %1197 = vmatpush1.msra.mxu0 0.0
      %1198 = vmatprep.subr.mxu0 0.0
      %1199 = vmatpush1.msra.mxu0 0.0
      %1200 = vmatprep.subr.mxu0 0.0
      %1201 = vmatpush1.msra.mxu0 0.0
      %1202 = vmatprep.subr.mxu0 0.0
      %1203 = vmatpush1.msra.mxu0 0.0
      %1204 = vmatprep.subr.mxu0 0.0
      %1205 = vmatpush1.msra.mxu0 0.0
      %1206 = vmatprep.subr.mxu0 0.0
      %1207 = vmatpush1.msra.mxu0 0.0
      %1208 = vmatprep.subr.mxu0 0.0
      %1209 = vmatpush1.msra.mxu0 0.0
      %1210 = vmatprep.subr.mxu0 0.0
      %1211 = vmatpush1.msra.mxu0 0.0
      %1212 = vmatprep.subr.mxu0 0.0
      %1213 = vmatpush1.msra.mxu0 0.0
      %1214 = vmatprep.subr.mxu0 0.0
      %1215 = vmatpush1.msra.mxu0 0.0
      %1216 = vmatprep.subr.mxu0 0.0
      %1217 = vmatpush1.msra.mxu0 0.0
      %1218 = vmatprep.subr.mxu0 0.0
      %1219 = vmatpush1.msra.mxu0 0.0
      %1220 = vmatprep.subr.mxu0 0.0
      %1221 = vmatpush1.msra.mxu0 0.0
      %1222 = vmatprep.subr.mxu0 0.0
      %1223 = vmatpush1.msra.mxu0 0.0
      %1224 = vmatprep.subr.mxu0 0.0
      %1225 = vmatpush1.msra.mxu0 0.0
      %1226 = vmatprep.subr.mxu0 0.0
      %1227 = vmatpush1.msra.mxu0 0.0
      %1228 = vmatprep.subr.mxu0 0.0
      %1229 = vmatpush1.msra.mxu0 0.0
      %1230 = vmatprep.subr.mxu0 0.0
      %1231 = vmatpush1.msra.mxu0 0.0
      %1232 = vmatprep.subr.mxu0 0.0
      %1233 = vmatpush1.msra.mxu0 0.0
      %1234 = vmatprep.subr.mxu0 0.0
      %1235 = vmatpush1.msra.mxu0 0.0
      %1236 = vmatprep.subr.mxu0 0.0
      %1237 = vmatpush1.msra.mxu0 0.0
      %1238 = vmatprep.subr.mxu0 0.0
      %1239 = vmatpush1.msra.mxu0 0.0
      %1240 = vmatprep.subr.mxu0 0.0
      %1241 = vmatpush1.msra.mxu0 0.0
      %1242 = vmatprep.subr.mxu0 0.0
      %1243 = vmatpush1.msra.mxu0 0.0
      %1244 = vmatprep.subr.mxu0 0.0
      %1245 = vmatpush1.msra.mxu0 0.0
      %1246 = vmatprep.subr.mxu0 0.0
      %1247 = vmatpush1.msra.mxu0 0.0
      %1248 = vmatprep.mubr.f32.mxu0 0.0
      %1249 = vmatmul.mubr.f32.gmra.mrb[0].mxu0 %v1179
      %v1250 = vpop.f32.mrb[0].mxu0
      %v1251 = vadd.f32 0.0, %v1250
      %v1252 = vpop.f32.mrb[0].mxu0
      %1253 = vmatprep.mubr.f32.mxu0 0.0
      %1254 = vmatmul.mubr.f32.gmra.mrb[0].mxu0 %v1182
      %v1255 = vpop.f32.mrb[0].mxu0
      %v1256 = vpop.f32.mrb[0].mxu0
      %1257 = vdwg.mxu0
      %v1258 = vadd.f32 %v722, %v1251
      %v1259 = vld [vmem:[%s535] sm:$0xff]
      %vm1260 = vcmask 7168
      %v1261 = vsel %vm1260, %v1259, 0.0
      %v1262 = vrot.slane %v1261, 4
      %v1263 = vadd.f32 %v1261, %v1262
      %v1264 = vrot.slane %v1263, 2
      %v1265 = vadd.f32 %v1263, %v1264
      %v1266 = vrot.slane %v1265, 1
      %v1267 = vadd.f32 %v1265, %v1266
      %v1268 = vadd.f32 %v1267, 1e-06
      %1270 = vset.pattern.permute.xlu0 0
      %1271 = vperm.xlu0 %1270, %v1259
      %v1272 = vpop.permute.xlu0 %1271
      %v1274 = vmul.f32 %v1258, %v1272
      %v1275 = vsel %vm555, %v1274, 0.0
      %v1276 = vrot.slane %v1275, 4
      %v1277 = vadd.f32 %v1275, %v1276
      %v1278 = vrot.slane %v1277, 2
      %v1279 = vadd.f32 %v1277, %v1278
      %v1280 = vrot.slane %v1279, 1
      %v1281 = vadd.f32 %v1279, %v1280
      %1283 = vset.pattern.permute.xlu0 0
      %1284 = vperm.xlu0 %1283, %v1268
      %v1285 = vpop.permute.xlu0 %1284
      %v1287 = vrcp.pop %v1285
      %v1288 = vmul.f32 %v1281, %v1287
      %v1289 = vld [vmem:[%s10] sm:$0xff]
      %v1290 = vld [vmem:[%s10 + $0x8] sm:$0xff]
      %v1291 = vld [vmem:[%s10 + $0x10] sm:$0xff]
      %v1292 = vld [vmem:[%s10 + $0x18] sm:$0xff]
      %v1294 = vsel %vm555, %v1288, 0
      %1296 = vmatprep.subr.mxu0 0.0
      %1297 = vmatpush1.msra.mxu0 %v1289
      %1298 = vmatprep.subr.mxu0 0.0
      %1299 = vmatpush1.msra.mxu0 %v1290
      %1300 = vmatprep.subr.mxu0 0.0
      %1301 = vmatpush1.msra.mxu0 %v1291
      %1302 = vmatprep.subr.mxu0 0.0
      %1303 = vmatpush1.msra.mxu0 %v1292
      %1304 = vmatprep.subr.mxu0 0.0
      %1305 = vmatpush1.msra.mxu0 0.0
      %1306 = vmatprep.subr.mxu0 0.0
      %1307 = vmatpush1.msra.mxu0 0.0
      %1308 = vmatprep.subr.mxu0 0.0
      %1309 = vmatpush1.msra.mxu0 0.0
      %1310 = vmatprep.subr.mxu0 0.0
      %1311 = vmatpush1.msra.mxu0 0.0
      %1312 = vmatprep.subr.mxu0 0.0
      %1313 = vmatpush1.msra.mxu0 0.0
      %1314 = vmatprep.subr.mxu0 0.0
      %1315 = vmatpush1.msra.mxu0 0.0
      %1316 = vmatprep.subr.mxu0 0.0
      %1317 = vmatpush1.msra.mxu0 0.0
      %1318 = vmatprep.subr.mxu0 0.0
      %1319 = vmatpush1.msra.mxu0 0.0
      %1320 = vmatprep.subr.mxu0 0.0
      %1321 = vmatpush1.msra.mxu0 0.0
      %1322 = vmatprep.subr.mxu0 0.0
      %1323 = vmatpush1.msra.mxu0 0.0
      %1324 = vmatprep.subr.mxu0 0.0
      %1325 = vmatpush1.msra.mxu0 0.0
      %1326 = vmatprep.subr.mxu0 0.0
      %1327 = vmatpush1.msra.mxu0 0.0
      %1328 = vmatprep.subr.mxu0 0.0
      %1329 = vmatpush1.msra.mxu0 0.0
      %1330 = vmatprep.subr.mxu0 0.0
      %1331 = vmatpush1.msra.mxu0 0.0
      %1332 = vmatprep.subr.mxu0 0.0
      %1333 = vmatpush1.msra.mxu0 0.0
      %1334 = vmatprep.subr.mxu0 0.0
      %1335 = vmatpush1.msra.mxu0 0.0
      %1336 = vmatprep.subr.mxu0 0.0
      %1337 = vmatpush1.msra.mxu0 0.0
      %1338 = vmatprep.subr.mxu0 0.0
      %1339 = vmatpush1.msra.mxu0 0.0
      %1340 = vmatprep.subr.mxu0 0.0
      %1341 = vmatpush1.msra.mxu0 0.0
      %1342 = vmatprep.subr.mxu0 0.0
      %1343 = vmatpush1.msra.mxu0 0.0
      %1344 = vmatprep.subr.mxu0 0.0
      %1345 = vmatpush1.msra.mxu0 0.0
      %1346 = vmatprep.subr.mxu0 0.0
      %1347 = vmatpush1.msra.mxu0 0.0
      %1348 = vmatprep.subr.mxu0 0.0
      %1349 = vmatpush1.msra.mxu0 0.0
      %1350 = vmatprep.subr.mxu0 0.0
      %1351 = vmatpush1.msra.mxu0 0.0
      %1352 = vmatprep.subr.mxu0 0.0
      %1353 = vmatpush1.msra.mxu0 0.0
      %1354 = vmatprep.subr.mxu0 0.0
      %1355 = vmatpush1.msra.mxu0 0.0
      %1356 = vmatprep.subr.mxu0 0.0
      %1357 = vmatpush1.msra.mxu0 0.0
      %1358 = vmatprep.subr.mxu0 0.0
      %1359 = vmatpush1.msra.mxu0 0.0
      %1360 = vmatprep.mubr.f32.mxu0 0.0
      %1361 = vmatmul.mubr.f32.gmra.mrb[0].mxu0 %v1294
      %v1362 = vpop.f32.mrb[0].mxu0
      %v1363 = vadd.f32 0.0, %v1362
      %v1364 = vpop.f32.mrb[0].mxu0
      %1365 = vdwg.mxu0
      %v1366 = vxor.u32 %v1363, 2147483648
      %v1367 = vmul.f32 %v1366, 1.442695
      %v1368 = vpow.pop %v1367
      %v1369 = vadd.f32 %v1368, 1.0
      %v1370 = vrcp.pop %v1369
      %v1371 = vmul.f32 1.0, %v1370
      %v1372 = vld [vmem:[%s540] sm:$0xff]
      %v1373 = vld [vmem:[%s540 + $0x8] sm:$0xff]
      %v1374 = vld [vmem:[%s540 + $0x10] sm:$0xff]
      %v1375 = vld [vmem:[%s540 + $0x18] sm:$0xff]
      %v1376 = vld [vmem:[%s11] sm:$0xff]
      %v1377 = vld [vmem:[%s11 + $0x8] sm:$0xff]
      %v1378 = vld [vmem:[%s11 + $0x10] sm:$0xff]
      %v1379 = vld [vmem:[%s11 + $0x18] sm:$0xff]
      %v1380 = vlaneseq
      %v1381 = vshrl.u32 %v1380, 7
      %v1382 = vsub.s32 0, %v1381
      %v1383 = vrot.slane %v1371, %v1382
      %v1384 = vmul.f32 %v1376, %v1383
      %v1385 = vmul.f32 %v1377, %v1383
      %v1386 = vmul.f32 %v1378, %v1383
      %v1387 = vmul.f32 %v1379, %v1383
      %v1389 = vsel %vm555, %v1384, 0
      %v1392 = vsel %vm555, %v1385, 0
      %v1395 = vsel %vm555, %v1386, 0
      %v1398 = vsel %vm555, %v1387, 0
      %1400 = vmatprep.subr.mxu0 0.0
      %1401 = vmatpush1.msra.mxu0 %v1372
      %1402 = vmatprep.subr.mxu0 0.0
      %1403 = vmatpush1.msra.mxu0 %v1373
      %1404 = vmatprep.subr.mxu0 0.0
      %1405 = vmatpush1.msra.mxu0 %v1374
      %1406 = vmatprep.subr.mxu0 0.0
      %1407 = vmatpush1.msra.mxu0 %v1375
      %1408 = vmatprep.subr.mxu0 0.0
      %1409 = vmatpush1.msra.mxu0 0.0
      %1410 = vmatprep.subr.mxu0 0.0
      %1411 = vmatpush1.msra.mxu0 0.0
      %1412 = vmatprep.subr.mxu0 0.0
      %1413 = vmatpush1.msra.mxu0 0.0
      %1414 = vmatprep.subr.mxu0 0.0
      %1415 = vmatpush1.msra.mxu0 0.0
      %1416 = vmatprep.subr.mxu0 0.0
      %1417 = vmatpush1.msra.mxu0 0.0
      %1418 = vmatprep.subr.mxu0 0.0
      %1419 = vmatpush1.msra.mxu0 0.0
      %1420 = vmatprep.subr.mxu0 0.0
      %1421 = vmatpush1.msra.mxu0 0.0
      %1422 = vmatprep.subr.mxu0 0.0
      %1423 = vmatpush1.msra.mxu0 0.0
      %1424 = vmatprep.subr.mxu0 0.0
      %1425 = vmatpush1.msra.mxu0 0.0
      %1426 = vmatprep.subr.mxu0 0.0
      %1427 = vmatpush1.msra.mxu0 0.0
      %1428 = vmatprep.subr.mxu0 0.0
      %1429 = vmatpush1.msra.mxu0 0.0
      %1430 = vmatprep.subr.mxu0 0.0
      %1431 = vmatpush1.msra.mxu0 0.0
      %1432 = vmatprep.subr.mxu0 0.0
      %1433 = vmatpush1.msra.mxu0 0.0
      %1434 = vmatprep.subr.mxu0 0.0
      %1435 = vmatpush1.msra.mxu0 0.0
      %1436 = vmatprep.subr.mxu0 0.0
      %1437 = vmatpush1.msra.mxu0 0.0
      %1438 = vmatprep.subr.mxu0 0.0
      %1439 = vmatpush1.msra.mxu0 0.0
      %1440 = vmatprep.subr.mxu0 0.0
      %1441 = vmatpush1.msra.mxu0 0.0
      %1442 = vmatprep.subr.mxu0 0.0
      %1443 = vmatpush1.msra.mxu0 0.0
      %1444 = vmatprep.subr.mxu0 0.0
      %1445 = vmatpush1.msra.mxu0 0.0
      %1446 = vmatprep.subr.mxu0 0.0
      %1447 = vmatpush1.msra.mxu0 0.0
      %1448 = vmatprep.subr.mxu0 0.0
      %1449 = vmatpush1.msra.mxu0 0.0
      %1450 = vmatprep.subr.mxu0 0.0
      %1451 = vmatpush1.msra.mxu0 0.0
      %1452 = vmatprep.subr.mxu0 0.0
      %1453 = vmatpush1.msra.mxu0 0.0
      %1454 = vmatprep.subr.mxu0 0.0
      %1455 = vmatpush1.msra.mxu0 0.0
      %1456 = vmatprep.subr.mxu0 0.0
      %1457 = vmatpush1.msra.mxu0 0.0
      %1458 = vmatprep.subr.mxu0 0.0
      %1459 = vmatpush1.msra.mxu0 0.0
      %1460 = vmatprep.subr.mxu0 0.0
      %1461 = vmatpush1.msra.mxu0 0.0
      %1462 = vmatprep.subr.mxu0 0.0
      %1463 = vmatpush1.msra.mxu0 0.0
      %1464 = vmatprep.mubr.f32.mxu0 0.0
      %1465 = vmatmul.mubr.f32.gmra.mrb[0].mxu0 %v1389
      %v1466 = vpop.f32.mrb[0].mxu0
      %v1467 = vadd.f32 0.0, %v1466
      %v1468 = vpop.f32.mrb[0].mxu0
      %1469 = vmatprep.mubr.f32.mxu0 0.0
      %1470 = vmatmul.mubr.f32.gmra.mrb[0].mxu0 %v1392
      %v1471 = vpop.f32.mrb[0].mxu0
      %v1472 = vadd.f32 0.0, %v1471
      %v1473 = vpop.f32.mrb[0].mxu0
      %1474 = vmatprep.mubr.f32.mxu0 0.0
      %1475 = vmatmul.mubr.f32.gmra.mrb[0].mxu0 %v1395
      %v1476 = vpop.f32.mrb[0].mxu0
      %v1477 = vadd.f32 0.0, %v1476
      %v1478 = vpop.f32.mrb[0].mxu0
      %1479 = vmatprep.mubr.f32.mxu0 0.0
      %1480 = vmatmul.mubr.f32.gmra.mrb[0].mxu0 %v1398
      %v1481 = vpop.f32.mrb[0].mxu0
      %v1482 = vadd.f32 0.0, %v1481
      %v1483 = vpop.f32.mrb[0].mxu0
      %1484 = vdwg.mxu0
      %v1485 = vmax.f32 %v1467, 0.0
      %v1486 = vmax.f32 %v1472, 0.0
      %v1487 = vmax.f32 %v1477, 0.0
      %v1488 = vmax.f32 %v1482, 0.0
      %v1489 = vld [vmem:[%s12] sm:$0x1f]
      %v1490 = vld [vmem:[%s13] sm:$0x1f]
      %1492 = vset.pattern.permute.xlu0 0
      %1493 = vperm.xlu0 %1492, %v1490
      %v1494 = vpop.permute.xlu0 %1493
      %v1497 = vsel %vm555, %v1489, 0
      %1499 = vmatprep.subr.mxu0 0.0
      %1500 = vmatpush1.msra.mxu0 %v1485
      %1501 = vmatprep.subr.mxu0 0.0
      %1502 = vmatpush1.msra.mxu0 %v1486
      %1503 = vmatprep.subr.mxu0 0.0
      %1504 = vmatpush1.msra.mxu0 %v1487
      %1505 = vmatprep.subr.mxu0 0.0
      %1506 = vmatpush1.msra.mxu0 %v1488
      %1507 = vmatprep.subr.mxu0 0.0
      %1508 = vmatpush1.msra.mxu0 0.0
      %1509 = vmatprep.subr.mxu0 0.0
      %1510 = vmatpush1.msra.mxu0 0.0
      %1511 = vmatprep.subr.mxu0 0.0
      %1512 = vmatpush1.msra.mxu0 0.0
      %1513 = vmatprep.subr.mxu0 0.0
      %1514 = vmatpush1.msra.mxu0 0.0
      %1515 = vmatprep.subr.mxu0 0.0
      %1516 = vmatpush1.msra.mxu0 0.0
      %1517 = vmatprep.subr.mxu0 0.0
      %1518 = vmatpush1.msra.mxu0 0.0
      %1519 = vmatprep.subr.mxu0 0.0
      %1520 = vmatpush1.msra.mxu0 0.0
      %1521 = vmatprep.subr.mxu0 0.0
      %1522 = vmatpush1.msra.mxu0 0.0
      %1523 = vmatprep.subr.mxu0 0.0
      %1524 = vmatpush1.msra.mxu0 0.0
      %1525 = vmatprep.subr.mxu0 0.0
      %1526 = vmatpush1.msra.mxu0 0.0
      %1527 = vmatprep.subr.mxu0 0.0
      %1528 = vmatpush1.msra.mxu0 0.0
      %1529 = vmatprep.subr.mxu0 0.0
      %1530 = vmatpush1.msra.mxu0 0.0
      %1531 = vmatprep.subr.mxu0 0.0
      %1532 = vmatpush1.msra.mxu0 0.0
      %1533 = vmatprep.subr.mxu0 0.0
      %1534 = vmatpush1.msra.mxu0 0.0
      %1535 = vmatprep.subr.mxu0 0.0
      %1536 = vmatpush1.msra.mxu0 0.0
      %1537 = vmatprep.subr.mxu0 0.0
      %1538 = vmatpush1.msra.mxu0 0.0
      %1539 = vmatprep.subr.mxu0 0.0
      %1540 = vmatpush1.msra.mxu0 0.0
      %1541 = vmatprep.subr.mxu0 0.0
      %1542 = vmatpush1.msra.mxu0 0.0
      %1543 = vmatprep.subr.mxu0 0.0
      %1544 = vmatpush1.msra.mxu0 0.0
      %1545 = vmatprep.subr.mxu0 0.0
      %1546 = vmatpush1.msra.mxu0 0.0
      %1547 = vmatprep.subr.mxu0 0.0
      %1548 = vmatpush1.msra.mxu0 0.0
      %1549 = vmatprep.subr.mxu0 0.0
      %1550 = vmatpush1.msra.mxu0 0.0
      %1551 = vmatprep.subr.mxu0 0.0
      %1552 = vmatpush1.msra.mxu0 0.0
      %1553 = vmatprep.subr.mxu0 0.0
      %1554 = vmatpush1.msra.mxu0 0.0
      %1555 = vmatprep.subr.mxu0 0.0
      %1556 = vmatpush1.msra.mxu0 0.0
      %1557 = vmatprep.subr.mxu0 0.0
      %1558 = vmatpush1.msra.mxu0 0.0
      %1559 = vmatprep.subr.mxu0 0.0
      %1560 = vmatpush1.msra.mxu0 0.0
      %1561 = vmatprep.subr.mxu0 0.0
      %1562 = vmatpush1.msra.mxu0 0.0
      %1563 = vmatprep.mubr.f32.mxu0 0.0
      %1564 = vmatmul.mubr.f32.gmra.mrb[0].mxu0 %v1497
      %v1565 = vpop.f32.mrb[0].mxu0
      %v1566 = vadd.f32 %v1494, %v1565
      %v1567 = vpop.f32.mrb[0].mxu0
      %1568 = vdwg.mxu0
      %v1569 = vxor.u32 %v1566, 2147483648
      %v1570 = vmul.f32 %v1569, 1.442695
      %v1571 = vpow.pop %v1570
      %v1572 = vadd.f32 %v1571, 1.0
      %v1573 = vrcp.pop %v1572
      %v1574 = vmul.f32 1.0, %v1573
      %v1575 = vtanh.pop %v1566
      %vm1576 = vcmp.eq.s32.totalorder %v549, 0
      %vm1577 = vcmp.eq.s32.totalorder %v549, 2
      %vm1578 = vcmp.eq.s32.totalorder %v549, 3
      %vm1579 = vmor %vm1577, %vm1578
      %v1580 = vsel %vm1579, %v1575, %v1574
      %v1581 = vsel %vm1576, %v1566, %v1580
      %v1582 = vld [vmem:[%s14] sm:$0xff]
      %v1584 = vcombine.high %v1582, %v1582
      %vm1585 = vcmask 31744
      %v1587 = vsel %vm1585, %v1581, 0
      %v1589 = vsel %vm1095, %v1582, 0
      %v1591 = vsel %vm1095, %v1584, 0
      %1593 = vmatprep.subr.mxu0 %v1591
      %1594 = vmatpush1.msra.mxu0 %v1589
      %1595 = vmatprep.subr.mxu0 0.0
      %1596 = vmatpush1.msra.mxu0 0.0
      %1597 = vmatprep.subr.mxu0 0.0
      %1598 = vmatpush1.msra.mxu0 0.0
      %1599 = vmatprep.subr.mxu0 0.0
      %1600 = vmatpush1.msra.mxu0 0.0
      %1601 = vmatprep.subr.mxu0 0.0
      %1602 = vmatpush1.msra.mxu0 0.0
      %1603 = vmatprep.subr.mxu0 0.0
      %1604 = vmatpush1.msra.mxu0 0.0
      %1605 = vmatprep.subr.mxu0 0.0
      %1606 = vmatpush1.msra.mxu0 0.0
      %1607 = vmatprep.subr.mxu0 0.0
      %1608 = vmatpush1.msra.mxu0 0.0
      %1609 = vmatprep.subr.mxu0 0.0
      %1610 = vmatpush1.msra.mxu0 0.0
      %1611 = vmatprep.subr.mxu0 0.0
      %1612 = vmatpush1.msra.mxu0 0.0
      %1613 = vmatprep.subr.mxu0 0.0
      %1614 = vmatpush1.msra.mxu0 0.0
      %1615 = vmatprep.subr.mxu0 0.0
      %1616 = vmatpush1.msra.mxu0 0.0
      %1617 = vmatprep.subr.mxu0 0.0
      %1618 = vmatpush1.msra.mxu0 0.0
      %1619 = vmatprep.subr.mxu0 0.0
      %1620 = vmatpush1.msra.mxu0 0.0
      %1621 = vmatprep.subr.mxu0 0.0
      %1622 = vmatpush1.msra.mxu0 0.0
      %1623 = vmatprep.subr.mxu0 0.0
      %1624 = vmatpush1.msra.mxu0 0.0
      %1625 = vmatprep.subr.mxu0 0.0
      %1626 = vmatpush1.msra.mxu0 0.0
      %1627 = vmatprep.subr.mxu0 0.0
      %1628 = vmatpush1.msra.mxu0 0.0
      %1629 = vmatprep.subr.mxu0 0.0
      %1630 = vmatpush1.msra.mxu0 0.0
      %1631 = vmatprep.subr.mxu0 0.0
      %1632 = vmatpush1.msra.mxu0 0.0
      %1633 = vmatprep.subr.mxu0 0.0
      %1634 = vmatpush1.msra.mxu0 0.0
      %1635 = vmatprep.subr.mxu0 0.0
      %1636 = vmatpush1.msra.mxu0 0.0
      %1637 = vmatprep.subr.mxu0 0.0
      %1638 = vmatpush1.msra.mxu0 0.0
      %1639 = vmatprep.subr.mxu0 0.0
      %1640 = vmatpush1.msra.mxu0 0.0
      %1641 = vmatprep.subr.mxu0 0.0
      %1642 = vmatpush1.msra.mxu0 0.0
      %1643 = vmatprep.subr.mxu0 0.0
      %1644 = vmatpush1.msra.mxu0 0.0
      %1645 = vmatprep.subr.mxu0 0.0
      %1646 = vmatpush1.msra.mxu0 0.0
      %1647 = vmatprep.subr.mxu0 0.0
      %1648 = vmatpush1.msra.mxu0 0.0
      %1649 = vmatprep.subr.mxu0 0.0
      %1650 = vmatpush1.msra.mxu0 0.0
      %1651 = vmatprep.subr.mxu0 0.0
      %1652 = vmatpush1.msra.mxu0 0.0
      %1653 = vmatprep.subr.mxu0 0.0
      %1654 = vmatpush1.msra.mxu0 0.0
      %1655 = vmatprep.subr.mxu0 0.0
      %1656 = vmatpush1.msra.mxu0 0.0
      %1657 = vmatprep.mubr.f32.mxu0 0.0
      %1658 = vmatmul.mubr.f32.gmra.mrb[0].mxu0 %v1587
      %v1659 = vpop.f32.mrb[0].mxu0
      %v1660 = vadd.f32 0.0, %v1659
      %v1661 = vpop.f32.mrb[0].mxu0
      %v1662 = vadd.f32 0.0, %v1661
      %1663 = vdwg.mxu0
      %1664 = vst [vmem:[%s545] sm:$0x1f] %v1660
      %1665 = vst [vmem:[%s545 + $0x8] sm:$0x1f] %v1662
      %p1666 = scmp.lt.s32.totalorder %s26, 1
      %s1667 = scalar_select %p1666, %s26, 1
      %s1668 = smul.addr %s1667, 2
      %s1669 = smul.addr %s1668, 8
      %s1670 = scalar_lea.vmem %s15, %s1669
      // Predicated region
      $region81: #{kggrasp_forward.3} parent=79 // pred_check
        %p1671 = pneg %p379
      $region82: #{kggrasp_forward.3} parent=79 // pred_check_branch
        %1673 = sbr.rel (%p1671) target = $region84
      $region83: #{kggrasp_forward.3} parent=79 // pred_region
        _
      $region84: #{kggrasp_forward.3} parent=79 // pred_fallthru
        _
    $region80: #{kggrasp_forward.3} parent=5 // pred_fallthru
      _
    %p1674 = scmp.le.s32.totalorder 2, %s21
    // Predicated region
    $region85: #{kggrasp_forward.3} parent=5 // pred_check
      %p1675 = pneg %p1674
    $region86: #{kggrasp_forward.3} parent=5 // pred_check_branch
      %1677 = sbr.rel (%p1675) target = $region88
    $region87: #{kggrasp_forward.3} parent=5 // pred_region
      %s1678 = ssub.s32 %s21, 2
      // Predicated region
      $region89: #{kggrasp_forward.3} parent=87 // pred_check
        %p1679 = pneg %p385
      $region90: #{kggrasp_forward.3} parent=87 // pred_check_branch
        %1681 = sbr.rel (%p1679) target = $region92
      $region91: #{kggrasp_forward.3} parent=87 // pred_region
        %p1682 = scmp.lt.s32.totalorder %s27, 1
        %s1683 = scalar_select %p1682, %s27, 1
        %s1684 = smul.addr %s1683, 2
        %s1685 = smul.addr %s1684, 8
        %s1686 = scalar_lea.vmem %s15, %s1685
      $region92: #{kggrasp_forward.3} parent=87 // pred_fallthru
        _
    $region88: #{kggrasp_forward.3} parent=5 // pred_fallthru
      _
  $region6: #{kggrasp_forward.3} parent=0 // loop_footer
    %s25 = sadd.s32 1, %s21
  $region7: #{kggrasp_forward.3} parent=0 // loop_footer_branch
    %20 = sbr.rel target = $region3
  $region8: #{kggrasp_forward.3} parent=0 // loop_exit
    _

// kernel: kggrasp_forward.2
$region0: #{kggrasp_forward.2}
  #allocation0 [shape = 'u32[]', space=smem, size = 0x4, offset = 0x4, fixed_abs, tag = 'smem constant byte address 0x4 - core index']
  #allocation1 [shape = 'u32[144,128]{1,0:T(1,128)}', space=vmem, size = 0x12000, scoped, tag = 'internal scratch']
  %s0 = inlined_call_operand.vmem [shape: f32[2,256,3], index: 0, kind: input, shape index: {}]
  %s1 = inlined_call_operand.vmem [shape: f32[3,32], index: 1, kind: input, shape index: {}]
  %s2 = inlined_call_operand.vmem [shape: f32[1,32], index: 2, kind: input, shape index: {}]
  %s3 = inlined_call_operand.vmem [shape: f32[32,32], index: 3, kind: input, shape index: {}]
  %s4 = inlined_call_operand.vmem [shape: f32[32,32], index: 4, kind: input, shape index: {}]
  %s5 = inlined_call_operand.vmem [shape: f32[64,256], index: 5, kind: input, shape index: {}]
  %s6 = inlined_call_operand.vmem [shape: f32[16,64], index: 6, kind: input, shape index: {}]
  %s7 = inlined_call_operand.vmem [shape: f32[4,16], index: 7, kind: input, shape index: {}]
  %s8 = inlined_call_operand.vmem [shape: f32[2,4,32], index: 8, kind: output, shape index: {}]
  %s9 = sld [smem:[#allocation0]]
  $region65: #{kggrasp_forward.2} parent=0
    _
  %s11 = ssub.s32 1, %s9
  %s12 = scalar_select 0, %s11, %s9
  loop: start=0, step=1, limit=4
  $region2: #{kggrasp_forward.2} parent=0 // loop_pre_header
    _
  $region3: #{kggrasp_forward.2} parent=0 // loop_header
    %s14 = sphi 0, %s18
    %p15 = scmp.ge.s32.totalorder %s14, 4
    %s24 = sphi 0, %s26
    %s27 = sphi 0, %s24
    %s28 = sphi 0, %s27
    %s44 = sphi 0, %s28
    %s48 = sphi 0, %s48
    %s50 = sphi 0, %s48
    %s51 = sphi 0, %s50
    %s65 = sphi 0, %s51
    %s69 = sphi 0, %s69
    %s71 = sphi 0, %s69
    %s72 = sphi 0, %s71
    %s86 = sphi 0, %s72
    %s90 = sphi 0, %s90
    %s92 = sphi 0, %s90
    %s93 = sphi 0, %s92
    %s107 = sphi 0, %s93
    %s111 = sphi 0, %s111
    %s113 = sphi 0, %s111
    %s114 = sphi 0, %s113
    %s128 = sphi 0, %s114
    %s132 = sphi 0, %s132
    %s134 = sphi 0, %s132
    %s135 = sphi 0, %s134
    %s149 = sphi 0, %s135
    %s153 = sphi 0, %s153
    %s155 = sphi 0, %s153
    %s156 = sphi 0, %s155
    %s170 = sphi 0, %s156
    %s174 = sphi 0, %s174
    %s176 = sphi 0, %s174
    %s177 = sphi 0, %s176
    %s191 = sphi 0, %s177
    %s197 = sphi 0, %s199
    %s200 = sphi 0, %s197
    %s201 = sphi 0, %s200
    %s217 = sphi 0, %s201
  $region4: #{kggrasp_forward.2} parent=0 // loop_header_branch
    %17 = sbr.rel (%p15) target = $region8
  $region5: #{kggrasp_forward.2} parent=0 // loop_body
    %s19 = ssub.s32 %s14, 1
    %s20 = ssub.s32 %s14, 2
    %s21 = sadd.s32 %s14, 1
    %s22 = ssub.s32 %s14, %s21
    %p23 = scmp.eq.s32.totalorder %s22, 0
    %s25 = sadd.s32 %s24, 1
    %s26 = scalar_select %p23, %s24, %s25
    %p29 = pneg %p23
    %p30 = scmp.eq.s32.totalorder %s14, 1
    %p31 = por %p29, %p30
    %p32 = scmp.ne.s32.totalorder %s24, %s27
    %p33 = scmp.eq.s32.totalorder %s14, 0
    %p34 = por %p32, %p33
    %p35 = scmp.ne.s32.totalorder %s24, %s27
    %p36 = scmp.eq.s32.totalorder %s19, 1
    %p37 = por %p35, %p36
    %p38 = scmp.ne.s32.totalorder %s27, %s28
    %p39 = scmp.eq.s32.totalorder %s19, 0
    %p40 = por %p38, %p39
    %p41 = scmp.ne.s32.totalorder %s27, %s28
    %p42 = scmp.eq.s32.totalorder %s20, 1
    %p43 = por %p41, %p42
    %p45 = scmp.ne.s32.totalorder %s28, %s44
    %p46 = scmp.eq.s32.totalorder %s20, 0
    %p47 = por %p45, %p46
    %s49 = sadd.s32 %s48, 1
    %p52 = scmp.eq.s32.totalorder %s14, 1
    %p53 = scmp.ne.s32.totalorder %s48, %s50
    %p54 = scmp.eq.s32.totalorder %s14, 0
    %p55 = por %p53, %p54
    %p56 = scmp.ne.s32.totalorder %s48, %s50
    %p57 = scmp.eq.s32.totalorder %s19, 1
    %p58 = por %p56, %p57
    %p59 = scmp.ne.s32.totalorder %s50, %s51
    %p60 = scmp.eq.s32.totalorder %s19, 0
    %p61 = por %p59, %p60
    %p62 = scmp.ne.s32.totalorder %s50, %s51
    %p63 = scmp.eq.s32.totalorder %s20, 1
    %p64 = por %p62, %p63
    %p66 = scmp.ne.s32.totalorder %s51, %s65
    %p67 = scmp.eq.s32.totalorder %s20, 0
    %p68 = por %p66, %p67
    %s70 = sadd.s32 %s69, 1
    %p73 = scmp.eq.s32.totalorder %s14, 1
    %p74 = scmp.ne.s32.totalorder %s69, %s71
    %p75 = scmp.eq.s32.totalorder %s14, 0
    %p76 = por %p74, %p75
    %p77 = scmp.ne.s32.totalorder %s69, %s71
    %p78 = scmp.eq.s32.totalorder %s19, 1
    %p79 = por %p77, %p78
    %p80 = scmp.ne.s32.totalorder %s71, %s72
    %p81 = scmp.eq.s32.totalorder %s19, 0
    %p82 = por %p80, %p81
    %p83 = scmp.ne.s32.totalorder %s71, %s72
    %p84 = scmp.eq.s32.totalorder %s20, 1
    %p85 = por %p83, %p84
    %p87 = scmp.ne.s32.totalorder %s72, %s86
    %p88 = scmp.eq.s32.totalorder %s20, 0
    %p89 = por %p87, %p88
    %s91 = sadd.s32 %s90, 1
    %p94 = scmp.eq.s32.totalorder %s14, 1
    %p95 = scmp.ne.s32.totalorder %s90, %s92
    %p96 = scmp.eq.s32.totalorder %s14, 0
    %p97 = por %p95, %p96
    %p98 = scmp.ne.s32.totalorder %s90, %s92
    %p99 = scmp.eq.s32.totalorder %s19, 1
    %p100 = por %p98, %p99
    %p101 = scmp.ne.s32.totalorder %s92, %s93
    %p102 = scmp.eq.s32.totalorder %s19, 0
    %p103 = por %p101, %p102
    %p104 = scmp.ne.s32.totalorder %s92, %s93
    %p105 = scmp.eq.s32.totalorder %s20, 1
    %p106 = por %p104, %p105
    %p108 = scmp.ne.s32.totalorder %s93, %s107
    %p109 = scmp.eq.s32.totalorder %s20, 0
    %p110 = por %p108, %p109
    %s112 = sadd.s32 %s111, 1
    %p115 = scmp.eq.s32.totalorder %s14, 1
    %p116 = scmp.ne.s32.totalorder %s111, %s113
    %p117 = scmp.eq.s32.totalorder %s14, 0
    %p118 = por %p116, %p117
    %p119 = scmp.ne.s32.totalorder %s111, %s113
    %p120 = scmp.eq.s32.totalorder %s19, 1
    %p121 = por %p119, %p120
    %p122 = scmp.ne.s32.totalorder %s113, %s114
    %p123 = scmp.eq.s32.totalorder %s19, 0
    %p124 = por %p122, %p123
    %p125 = scmp.ne.s32.totalorder %s113, %s114
    %p126 = scmp.eq.s32.totalorder %s20, 1
    %p127 = por %p125, %p126
    %p129 = scmp.ne.s32.totalorder %s114, %s128
    %p130 = scmp.eq.s32.totalorder %s20, 0
    %p131 = por %p129, %p130
    %s133 = sadd.s32 %s132, 1
    %p136 = scmp.eq.s32.totalorder %s14, 1
    %p137 = scmp.ne.s32.totalorder %s132, %s134
    %p138 = scmp.eq.s32.totalorder %s14, 0
    %p139 = por %p137, %p138
    %p140 = scmp.ne.s32.totalorder %s132, %s134
    %p141 = scmp.eq.s32.totalorder %s19, 1
    %p142 = por %p140, %p141
    %p143 = scmp.ne.s32.totalorder %s134, %s135
    %p144 = scmp.eq.s32.totalorder %s19, 0
    %p145 = por %p143, %p144
    %p146 = scmp.ne.s32.totalorder %s134, %s135
    %p147 = scmp.eq.s32.totalorder %s20, 1
    %p148 = por %p146, %p147
    %p150 = scmp.ne.s32.totalorder %s135, %s149
    %p151 = scmp.eq.s32.totalorder %s20, 0
    %p152 = por %p150, %p151
    %s154 = sadd.s32 %s153, 1
    %p157 = scmp.eq.s32.totalorder %s14, 1
    %p158 = scmp.ne.s32.totalorder %s153, %s155
    %p159 = scmp.eq.s32.totalorder %s14, 0
    %p160 = por %p158, %p159
    %p161 = scmp.ne.s32.totalorder %s153, %s155
    %p162 = scmp.eq.s32.totalorder %s19, 1
    %p163 = por %p161, %p162
    %p164 = scmp.ne.s32.totalorder %s155, %s156
    %p165 = scmp.eq.s32.totalorder %s19, 0
    %p166 = por %p164, %p165
    %p167 = scmp.ne.s32.totalorder %s155, %s156
    %p168 = scmp.eq.s32.totalorder %s20, 1
    %p169 = por %p167, %p168
    %p171 = scmp.ne.s32.totalorder %s156, %s170
    %p172 = scmp.eq.s32.totalorder %s20, 0
    %p173 = por %p171, %p172
    %s175 = sadd.s32 %s174, 1
    %p178 = scmp.eq.s32.totalorder %s14, 1
    %p179 = scmp.ne.s32.totalorder %s174, %s176
    %p180 = scmp.eq.s32.totalorder %s14, 0
    %p181 = por %p179, %p180
    %p182 = scmp.ne.s32.totalorder %s174, %s176
    %p183 = scmp.eq.s32.totalorder %s19, 1
    %p184 = por %p182, %p183
    %p185 = scmp.ne.s32.totalorder %s176, %s177
    %p186 = scmp.eq.s32.totalorder %s19, 0
    %p187 = por %p185, %p186
    %p188 = scmp.ne.s32.totalorder %s176, %s177
    %p189 = scmp.eq.s32.totalorder %s20, 1
    %p190 = por %p188, %p189
    %p192 = scmp.ne.s32.totalorder %s177, %s191
    %p193 = scmp.eq.s32.totalorder %s20, 0
    %p194 = por %p192, %p193
    %s195 = ssub.s32 %s14, %s21
    %p196 = scmp.eq.s32.totalorder %s195, 0
    %s198 = sadd.s32 %s197, 1
    %s199 = scalar_select %p196, %s197, %s198
    %p202 = pneg %p196
    %p203 = scmp.eq.s32.totalorder %s14, 1
    %p204 = por %p202, %p203
    %p205 = scmp.ne.s32.totalorder %s197, %s200
    %p206 = scmp.eq.s32.totalorder %s14, 0
    %p207 = por %p205, %p206
    %p208 = scmp.ne.s32.totalorder %s197, %s200
    %p209 = scmp.eq.s32.totalorder %s19, 1
    %p210 = por %p208, %p209
    %p211 = scmp.ne.s32.totalorder %s200, %s201
    %p212 = scmp.eq.s32.totalorder %s19, 0
    %p213 = por %p211, %p212
    %p214 = scmp.ne.s32.totalorder %s200, %s201
    %p215 = scmp.eq.s32.totalorder %s20, 1
    %p216 = por %p214, %p215
    %p218 = scmp.ne.s32.totalorder %s201, %s217
    %p219 = scmp.eq.s32.totalorder %s20, 0
    %p220 = por %p218, %p219
    %p221 = scmp.le.s32.totalorder 1, %s14
    %p222 = scmp.lt.s32.totalorder %s14, 3
    %p223 = pnand %p221, %p222
    %p224 = pneg %p223
    // Predicated region
    $region9: #{kggrasp_forward.2} parent=5 // pred_check
      _
    $region10: #{kggrasp_forward.2} parent=5 // pred_check_branch
      %226 = sbr.rel (%p223) target = $region12
    $region11: #{kggrasp_forward.2} parent=5 // pred_region
      %s227 = ssub.s32 %s14, 1
      // Predicated region
      $region13: #{kggrasp_forward.2} parent=11 // pred_check
        %p228 = pneg %p61
      $region14: #{kggrasp_forward.2} parent=11 // pred_check_branch
        %230 = sbr.rel (%p228) target = $region16
      $region15: #{kggrasp_forward.2} parent=11 // pred_region
        _
      $region16: #{kggrasp_forward.2} parent=11 // pred_fallthru
        _
      // Predicated region
      $region17: #{kggrasp_forward.2} parent=11 // pred_check
        %p231 = pneg %p82
      $region18: #{kggrasp_forward.2} parent=11 // pred_check_branch
        %233 = sbr.rel (%p231) target = $region20
      $region19: #{kggrasp_forward.2} parent=11 // pred_region
        _
      $region20: #{kggrasp_forward.2} parent=11 // pred_fallthru
        _
      // Predicated region
      $region21: #{kggrasp_forward.2} parent=11 // pred_check
        %p234 = pneg %p103
      $region22: #{kggrasp_forward.2} parent=11 // pred_check_branch
        %236 = sbr.rel (%p234) target = $region24
      $region23: #{kggrasp_forward.2} parent=11 // pred_region
        _
      $region24: #{kggrasp_forward.2} parent=11 // pred_fallthru
        _
      // Predicated region
      $region25: #{kggrasp_forward.2} parent=11 // pred_check
        %p237 = pneg %p124
      $region26: #{kggrasp_forward.2} parent=11 // pred_check_branch
        %239 = sbr.rel (%p237) target = $region28
      $region27: #{kggrasp_forward.2} parent=11 // pred_region
        _
      $region28: #{kggrasp_forward.2} parent=11 // pred_fallthru
        _
      // Predicated region
      $region29: #{kggrasp_forward.2} parent=11 // pred_check
        %p240 = pneg %p145
      $region30: #{kggrasp_forward.2} parent=11 // pred_check_branch
        %242 = sbr.rel (%p240) target = $region32
      $region31: #{kggrasp_forward.2} parent=11 // pred_region
        _
      $region32: #{kggrasp_forward.2} parent=11 // pred_fallthru
        _
      // Predicated region
      $region33: #{kggrasp_forward.2} parent=11 // pred_check
        %p243 = pneg %p166
      $region34: #{kggrasp_forward.2} parent=11 // pred_check_branch
        %245 = sbr.rel (%p243) target = $region36
      $region35: #{kggrasp_forward.2} parent=11 // pred_region
        _
      $region36: #{kggrasp_forward.2} parent=11 // pred_fallthru
        _
      // Predicated region
      $region37: #{kggrasp_forward.2} parent=11 // pred_check
        %p246 = pneg %p187
      $region38: #{kggrasp_forward.2} parent=11 // pred_check_branch
        %248 = sbr.rel (%p246) target = $region40
      $region39: #{kggrasp_forward.2} parent=11 // pred_region
        _
      $region40: #{kggrasp_forward.2} parent=11 // pred_fallthru
        _
    $region12: #{kggrasp_forward.2} parent=5 // pred_fallthru
      _
    %p249 = scmp.lt.s32.totalorder %s14, 2
    // Predicated region
    $region41: #{kggrasp_forward.2} parent=5 // pred_check
      %p250 = pneg %p249
    $region42: #{kggrasp_forward.2} parent=5 // pred_check_branch
      %252 = sbr.rel (%p250) target = $region44
    $region43: #{kggrasp_forward.2} parent=5 // pred_region
      // Predicated region
      $region45: #{kggrasp_forward.2} parent=43 // pred_check
        %p253 = pneg %p34
      $region46: #{kggrasp_forward.2} parent=43 // pred_check_branch
        %255 = sbr.rel (%p253) target = $region48
      $region47: #{kggrasp_forward.2} parent=43 // pred_region
        %p256 = scmp.lt.s32.totalorder %s14, 1
        %s257 = scalar_select %p256, %s14, 1
        %s258 = smul.addr %s257, 32
        %s259 = smul.addr %s258, 8
        %s260 = scalar_lea.vmem %s0, %s259
      $region48: #{kggrasp_forward.2} parent=43 // pred_fallthru
        _
    $region44: #{kggrasp_forward.2} parent=5 // pred_fallthru
      _
    %p261 = scmp.le.s32.totalorder 1, %s14
    %p262 = scmp.lt.s32.totalorder %s14, 3
    %p263 = pnand %p261, %p262
    %p264 = pneg %p263
    // Predicated region
    $region49: #{kggrasp_forward.2} parent=5 // pred_check
      _
    $region50: #{kggrasp_forward.2} parent=5 // pred_check_branch
      %266 = sbr.rel (%p263) target = $region52
    $region51: #{kggrasp_forward.2} parent=5 // pred_region
      %s267 = ssub.s32 %s14, 1
      %p268 = scmp.lt.s32.totalorder %s19, 1
      %s269 = scalar_select %p268, %s19, 1
      %s270 = smul.addr %s269, 32
      %s271 = smul.addr %s270, 8
      %s272 = scalar_lea.vmem %s0, %s271
      %p273 = pneg %p40
      %p274 = pneg %p37
      %p275 = pneg %p61
      %p276 = pneg %p58
      %p277 = pneg %p82
      %p278 = pneg %p79
      %p279 = pneg %p103
      %p280 = pneg %p100
      %p281 = pneg %p124
      %p282 = pneg %p121
      %p283 = pneg %p145
      %p284 = pneg %p142
      %p285 = pneg %p166
      %p286 = pneg %p163
      %p287 = pneg %p187
      %p288 = pneg %p184
      %p289 = pneg %p213
      %p290 = pneg %p210
      %p291 = scmp.lt.s32.totalorder %s19, 1
      %s292 = scalar_select %p291, %s19, 1
      %s293 = smul.addr %s292, 4
      %s294 = scalar_lea.vmem %s8, %s293
      %p295 = scmp.lt.s32.totalorder %s19, 1
      %s296 = scalar_select %p295, %s19, 1
      %s297 = smul.addr %s296, 32
      %s298 = smul.addr %s297, 8
      %s299 = scalar_lea.vmem %s0, %s298
      %p300 = scmp.lt.s32.totalorder %s19, 1
      %s301 = scalar_select %p300, %s19, 1
      %s302 = smul.addr %s301, 4
      %s303 = scalar_lea.vmem %s8, %s302
      %v304 = vld [vmem:[%s299] sm:$0xff]
      %v305 = vld [vmem:[%s299 + $0x8] sm:$0xff]
      %v306 = vld [vmem:[%s299 + $0x10] sm:$0xff]
      %v307 = vld [vmem:[%s299 + $0x18] sm:$0xff]
      %v308 = vld [vmem:[%s299 + $0x20] sm:$0xff]
      %v309 = vld [vmem:[%s299 + $0x28] sm:$0xff]
      %v310 = vld [vmem:[%s299 + $0x30] sm:$0xff]
      %v311 = vld [vmem:[%s299 + $0x38] sm:$0xff]
      %v312 = vld [vmem:[%s299 + $0x40] sm:$0xff]
      %v313 = vld [vmem:[%s299 + $0x48] sm:$0xff]
      %v314 = vld [vmem:[%s299 + $0x50] sm:$0xff]
      %v315 = vld [vmem:[%s299 + $0x58] sm:$0xff]
      %v316 = vld [vmem:[%s299 + $0x60] sm:$0xff]
      %v317 = vld [vmem:[%s299 + $0x68] sm:$0xff]
      %v318 = vld [vmem:[%s299 + $0x70] sm:$0xff]
      %v319 = vld [vmem:[%s299 + $0x78] sm:$0xff]
      %v320 = vld [vmem:[%s299 + $0x80] sm:$0xff]
      %v321 = vld [vmem:[%s299 + $0x88] sm:$0xff]
      %v322 = vld [vmem:[%s299 + $0x90] sm:$0xff]
      %v323 = vld [vmem:[%s299 + $0x98] sm:$0xff]
      %v324 = vld [vmem:[%s299 + $0xa0] sm:$0xff]
      %v325 = vld [vmem:[%s299 + $0xa8] sm:$0xff]
      %v326 = vld [vmem:[%s299 + $0xb0] sm:$0xff]
      %v327 = vld [vmem:[%s299 + $0xb8] sm:$0xff]
      %v328 = vld [vmem:[%s299 + $0xc0] sm:$0xff]
      %v329 = vld [vmem:[%s299 + $0xc8] sm:$0xff]
      %v330 = vld [vmem:[%s299 + $0xd0] sm:$0xff]
      %v331 = vld [vmem:[%s299 + $0xd8] sm:$0xff]
      %v332 = vld [vmem:[%s299 + $0xe0] sm:$0xff]
      %v333 = vld [vmem:[%s299 + $0xe8] sm:$0xff]
      %v334 = vld [vmem:[%s299 + $0xf0] sm:$0xff]
      %v335 = vld [vmem:[%s299 + $0xf8] sm:$0xff]
      %v336 = vld [vmem:[%s1] sm:$0x7]
      %v337 = vld [vmem:[%s2] sm:$0x1]
      %v339 = vlaneseq
      %v340 = vshrl.u32 %v339, 7
      %v341 = vsub.s32 0, %v340
      %v342 = vrot.slane %v337, %v341
      %vm344 = vcmask 23552
      %v346 = vsel %vm344, %v304, 0
      %v349 = vsel %vm344, %v305, 0
      %v352 = vsel %vm344, %v306, 0
      %v355 = vsel %vm344, %v307, 0
      %v358 = vsel %vm344, %v308, 0
      %v361 = vsel %vm344, %v309, 0
      %v364 = vsel %vm344, %v310, 0
      %v367 = vsel %vm344, %v311, 0
      %v370 = vsel %vm344, %v312, 0
      %v373 = vsel %vm344, %v313, 0
      %v376 = vsel %vm344, %v314, 0
      %v379 = vsel %vm344, %v315, 0
      %v382 = vsel %vm344, %v316, 0
      %v385 = vsel %vm344, %v317, 0
      %v388 = vsel %vm344, %v318, 0
      %v391 = vsel %vm344, %v319, 0
      %v394 = vsel %vm344, %v320, 0
      %v397 = vsel %vm344, %v321, 0
      %v400 = vsel %vm344, %v322, 0
      %v403 = vsel %vm344, %v323, 0
      %v406 = vsel %vm344, %v324, 0
      %v409 = vsel %vm344, %v325, 0
      %v412 = vsel %vm344, %v326, 0
      %v415 = vsel %vm344, %v327, 0
      %v418 = vsel %vm344, %v328, 0
      %v421 = vsel %vm344, %v329, 0
      %v424 = vsel %vm344, %v330, 0
      %v427 = vsel %vm344, %v331, 0
      %v430 = vsel %vm344, %v332, 0
      %v433 = vsel %vm344, %v333, 0
      %v436 = vsel %vm344, %v334, 0
      %v439 = vsel %vm344, %v335, 0
      %vm441 = vcmask 1042432
      %v443 = vsel %vm441, %v336, 0
      %445 = vmatprep.subr.mxu0 0.0
      %446 = vmatpush1.msra.mxu0 %v443
      %447 = vmatprep.subr.mxu0 0.0
      %448 = vmatpush1.msra.mxu0 0.0
      %449 = vmatprep.subr.mxu0 0.0
      %450 = vmatpush1.msra.mxu0 0.0
      %451 = vmatprep.subr.mxu0 0.0
      %452 = vmatpush1.msra.mxu0 0.0
      %453 = vmatprep.subr.mxu0 0.0
      %454 = vmatpush1.msra.mxu0 0.0
      %455 = vmatprep.subr.mxu0 0.0
      %456 = vmatpush1.msra.mxu0 0.0
      %457 = vmatprep.subr.mxu0 0.0
      %458 = vmatpush1.msra.mxu0 0.0
      %459 = vmatprep.subr.mxu0 0.0
      %460 = vmatpush1.msra.mxu0 0.0
      %461 = vmatprep.subr.mxu0 0.0
      %462 = vmatpush1.msra.mxu0 0.0
      %463 = vmatprep.subr.mxu0 0.0
      %464 = vmatpush1.msra.mxu0 0.0
      %465 = vmatprep.subr.mxu0 0.0
      %466 = vmatpush1.msra.mxu0 0.0
      %467 = vmatprep.subr.mxu0 0.0
      %468 = vmatpush1.msra.mxu0 0.0
      %469 = vmatprep.subr.mxu0 0.0
      %470 = vmatpush1.msra.mxu0 0.0
      %471 = vmatprep.subr.mxu0 0.0
      %472 = vmatpush1.msra.mxu0 0.0
      %473 = vmatprep.subr.mxu0 0.0
      %474 = vmatpush1.msra.mxu0 0.0
      %475 = vmatprep.subr.mxu0 0.0
      %476 = vmatpush1.msra.mxu0 0.0
      %477 = vmatprep.subr.mxu0 0.0
      %478 = vmatpush1.msra.mxu0 0.0
      %479 = vmatprep.subr.mxu0 0.0
      %480 = vmatpush1.msra.mxu0 0.0
      %481 = vmatprep.subr.mxu0 0.0
      %482 = vmatpush1.msra.mxu0 0.0
      %483 = vmatprep.subr.mxu0 0.0
      %484 = vmatpush1.msra.mxu0 0.0
      %485 = vmatprep.subr.mxu0 0.0
      %486 = vmatpush1.msra.mxu0 0.0
      %487 = vmatprep.subr.mxu0 0.0
      %488 = vmatpush1.msra.mxu0 0.0
      %489 = vmatprep.subr.mxu0 0.0
      %490 = vmatpush1.msra.mxu0 0.0
      %491 = vmatprep.subr.mxu0 0.0
      %492 = vmatpush1.msra.mxu0 0.0
      %493 = vmatprep.subr.mxu0 0.0
      %494 = vmatpush1.msra.mxu0 0.0
      %495 = vmatprep.subr.mxu0 0.0
      %496 = vmatpush1.msra.mxu0 0.0
      %497 = vmatprep.subr.mxu0 0.0
      %498 = vmatpush1.msra.mxu0 0.0
      %499 = vmatprep.subr.mxu0 0.0
      %500 = vmatpush1.msra.mxu0 0.0
      %501 = vmatprep.subr.mxu0 0.0
      %502 = vmatpush1.msra.mxu0 0.0
      %503 = vmatprep.subr.mxu0 0.0
      %504 = vmatpush1.msra.mxu0 0.0
      %505 = vmatprep.subr.mxu0 0.0
      %506 = vmatpush1.msra.mxu0 0.0
      %507 = vmatprep.subr.mxu0 0.0
      %508 = vmatpush1.msra.mxu0 0.0
      %509 = vmatprep.mubr.f32.mxu0 0.0
      %510 = vmatmul.mubr.f32.gmra.mrb[0].mxu0 %v346
      %v511 = vpop.f32.mrb[0].mxu0
      %v512 = vadd.f32 %v342, %v511
      %v513 = vpop.f32.mrb[0].mxu0
      %514 = vmatprep.mubr.f32.mxu0 0.0
      %515 = vmatmul.mubr.f32.gmra.mrb[0].mxu0 %v349
      %v516 = vpop.f32.mrb[0].mxu0
      %v517 = vadd.f32 %v342, %v516
      %v518 = vpop.f32.mrb[0].mxu0
      %519 = vmatprep.mubr.f32.mxu0 0.0
      %520 = vmatmul.mubr.f32.gmra.mrb[0].mxu0 %v352
      %v521 = vpop.f32.mrb[0].mxu0
      %v522 = vadd.f32 %v342, %v521
      %v523 = vpop.f32.mrb[0].mxu0
      %524 = vmatprep.mubr.f32.mxu0 0.0
      %525 = vmatmul.mubr.f32.gmra.mrb[0].mxu0 %v355
      %v526 = vpop.f32.mrb[0].mxu0
      %v527 = vadd.f32 %v342, %v526
      %v528 = vpop.f32.mrb[0].mxu0
      %529 = vmatprep.mubr.f32.mxu0 0.0
      %530 = vmatmul.mubr.f32.gmra.mrb[0].mxu0 %v358
      %v531 = vpop.f32.mrb[0].mxu0
      %v532 = vadd.f32 %v342, %v531
      %v533 = vpop.f32.mrb[0].mxu0
      %534 = vmatprep.mubr.f32.mxu0 0.0
      %535 = vmatmul.mubr.f32.gmra.mrb[0].mxu0 %v361
      %v536 = vpop.f32.mrb[0].mxu0
      %v537 = vadd.f32 %v342, %v536
      %v538 = vpop.f32.mrb[0].mxu0
      %539 = vmatprep.mubr.f32.mxu0 0.0
      %540 = vmatmul.mubr.f32.gmra.mrb[0].mxu0 %v364
      %v541 = vpop.f32.mrb[0].mxu0
      %v542 = vadd.f32 %v342, %v541
      %v543 = vpop.f32.mrb[0].mxu0
      %544 = vmatprep.mubr.f32.mxu0 0.0
      %545 = vmatmul.mubr.f32.gmra.mrb[0].mxu0 %v367
      %v546 = vpop.f32.mrb[0].mxu0
      %v547 = vadd.f32 %v342, %v546
      %v548 = vpop.f32.mrb[0].mxu0
      %549 = vmatprep.mubr.f32.mxu0 0.0
      %550 = vmatmul.mubr.f32.gmra.mrb[0].mxu0 %v370
      %v551 = vpop.f32.mrb[0].mxu0
      %v552 = vadd.f32 %v342, %v551
      %v553 = vpop.f32.mrb[0].mxu0
      %554 = vmatprep.mubr.f32.mxu0 0.0
      %555 = vmatmul.mubr.f32.gmra.mrb[0].mxu0 %v373
      %v556 = vpop.f32.mrb[0].mxu0
      %v557 = vadd.f32 %v342, %v556
      %v558 = vpop.f32.mrb[0].mxu0
      %559 = vmatprep.mubr.f32.mxu0 0.0
      %560 = vmatmul.mubr.f32.gmra.mrb[0].mxu0 %v376
      %v561 = vpop.f32.mrb[0].mxu0
      %v562 = vadd.f32 %v342, %v561
      %v563 = vpop.f32.mrb[0].mxu0
      %564 = vmatprep.mubr.f32.mxu0 0.0
      %565 = vmatmul.mubr.f32.gmra.mrb[0].mxu0 %v379
      %v566 = vpop.f32.mrb[0].mxu0
      %v567 = vadd.f32 %v342, %v566
      %v568 = vpop.f32.mrb[0].mxu0
      %569 = vmatprep.mubr.f32.mxu0 0.0
      %570 = vmatmul.mubr.f32.gmra.mrb[0].mxu0 %v382
      %v571 = vpop.f32.mrb[0].mxu0
      %v572 = vadd.f32 %v342, %v571
      %v573 = vpop.f32.mrb[0].mxu0
      %574 = vmatprep.mubr.f32.mxu0 0.0
      %575 = vmatmul.mubr.f32.gmra.mrb[0].mxu0 %v385
      %v576 = vpop.f32.mrb[0].mxu0
      %v577 = vadd.f32 %v342, %v576
      %v578 = vpop.f32.mrb[0].mxu0
      %579 = vmatprep.mubr.f32.mxu0 0.0
      %580 = vmatmul.mubr.f32.gmra.mrb[0].mxu0 %v388
      %v581 = vpop.f32.mrb[0].mxu0
      %v582 = vadd.f32 %v342, %v581
      %v583 = vpop.f32.mrb[0].mxu0
      %584 = vmatprep.mubr.f32.mxu0 0.0
      %585 = vmatmul.mubr.f32.gmra.mrb[0].mxu0 %v391
      %v586 = vpop.f32.mrb[0].mxu0
      %v587 = vadd.f32 %v342, %v586
      %v588 = vpop.f32.mrb[0].mxu0
      %589 = vmatprep.mubr.f32.mxu0 0.0
      %590 = vmatmul.mubr.f32.gmra.mrb[0].mxu0 %v394
      %v591 = vpop.f32.mrb[0].mxu0
      %v592 = vadd.f32 %v342, %v591
      %v593 = vpop.f32.mrb[0].mxu0
      %594 = vmatprep.mubr.f32.mxu0 0.0
      %595 = vmatmul.mubr.f32.gmra.mrb[0].mxu0 %v397
      %v596 = vpop.f32.mrb[0].mxu0
      %v597 = vadd.f32 %v342, %v596
      %v598 = vpop.f32.mrb[0].mxu0
      %599 = vmatprep.mubr.f32.mxu0 0.0
      %600 = vmatmul.mubr.f32.gmra.mrb[0].mxu0 %v400
      %v601 = vpop.f32.mrb[0].mxu0
      %v602 = vadd.f32 %v342, %v601
      %v603 = vpop.f32.mrb[0].mxu0
      %604 = vmatprep.mubr.f32.mxu0 0.0
      %605 = vmatmul.mubr.f32.gmra.mrb[0].mxu0 %v403
      %v606 = vpop.f32.mrb[0].mxu0
      %v607 = vadd.f32 %v342, %v606
      %v608 = vpop.f32.mrb[0].mxu0
      %609 = vmatprep.mubr.f32.mxu0 0.0
      %610 = vmatmul.mubr.f32.gmra.mrb[0].mxu0 %v406
      %v611 = vpop.f32.mrb[0].mxu0
      %v612 = vadd.f32 %v342, %v611
      %v613 = vpop.f32.mrb[0].mxu0
      %614 = vmatprep.mubr.f32.mxu0 0.0
      %615 = vmatmul.mubr.f32.gmra.mrb[0].mxu0 %v409
      %v616 = vpop.f32.mrb[0].mxu0
      %v617 = vadd.f32 %v342, %v616
      %v618 = vpop.f32.mrb[0].mxu0
      %619 = vmatprep.mubr.f32.mxu0 0.0
      %620 = vmatmul.mubr.f32.gmra.mrb[0].mxu0 %v412
      %v621 = vpop.f32.mrb[0].mxu0
      %v622 = vadd.f32 %v342, %v621
      %v623 = vpop.f32.mrb[0].mxu0
      %624 = vmatprep.mubr.f32.mxu0 0.0
      %625 = vmatmul.mubr.f32.gmra.mrb[0].mxu0 %v415
      %v626 = vpop.f32.mrb[0].mxu0
      %v627 = vadd.f32 %v342, %v626
      %v628 = vpop.f32.mrb[0].mxu0
      %629 = vmatprep.mubr.f32.mxu0 0.0
      %630 = vmatmul.mubr.f32.gmra.mrb[0].mxu0 %v418
      %v631 = vpop.f32.mrb[0].mxu0
      %v632 = vadd.f32 %v342, %v631
      %v633 = vpop.f32.mrb[0].mxu0
      %634 = vmatprep.mubr.f32.mxu0 0.0
      %635 = vmatmul.mubr.f32.gmra.mrb[0].mxu0 %v421
      %v636 = vpop.f32.mrb[0].mxu0
      %v637 = vadd.f32 %v342, %v636
      %v638 = vpop.f32.mrb[0].mxu0
      %639 = vmatprep.mubr.f32.mxu0 0.0
      %640 = vmatmul.mubr.f32.gmra.mrb[0].mxu0 %v424
      %v641 = vpop.f32.mrb[0].mxu0
      %v642 = vadd.f32 %v342, %v641
      %v643 = vpop.f32.mrb[0].mxu0
      %644 = vmatprep.mubr.f32.mxu0 0.0
      %645 = vmatmul.mubr.f32.gmra.mrb[0].mxu0 %v427
      %v646 = vpop.f32.mrb[0].mxu0
      %v647 = vadd.f32 %v342, %v646
      %v648 = vpop.f32.mrb[0].mxu0
      %649 = vmatprep.mubr.f32.mxu0 0.0
      %650 = vmatmul.mubr.f32.gmra.mrb[0].mxu0 %v430
      %v651 = vpop.f32.mrb[0].mxu0
      %v652 = vadd.f32 %v342, %v651
      %v653 = vpop.f32.mrb[0].mxu0
      %654 = vmatprep.mubr.f32.mxu0 0.0
      %655 = vmatmul.mubr.f32.gmra.mrb[0].mxu0 %v433
      %v656 = vpop.f32.mrb[0].mxu0
      %v657 = vadd.f32 %v342, %v656
      %v658 = vpop.f32.mrb[0].mxu0
      %659 = vmatprep.mubr.f32.mxu0 0.0
      %660 = vmatmul.mubr.f32.gmra.mrb[0].mxu0 %v436
      %v661 = vpop.f32.mrb[0].mxu0
      %v662 = vadd.f32 %v342, %v661
      %v663 = vpop.f32.mrb[0].mxu0
      %664 = vmatprep.mubr.f32.mxu0 0.0
      %665 = vmatmul.mubr.f32.gmra.mrb[0].mxu0 %v439
      %v666 = vpop.f32.mrb[0].mxu0
      %v667 = vadd.f32 %v342, %v666
      %v668 = vpop.f32.mrb[0].mxu0
      %669 = vdwg.mxu0
      %v670 = vmax.f32 %v512, 0.0
      %v671 = vmax.f32 %v517, 0.0
      %v672 = vmax.f32 %v522, 0.0
      %v673 = vmax.f32 %v527, 0.0
      %v674 = vmax.f32 %v532, 0.0
      %v675 = vmax.f32 %v537, 0.0
      %v676 = vmax.f32 %v542, 0.0
      %v677 = vmax.f32 %v547, 0.0
      %v678 = vmax.f32 %v552, 0.0
      %v679 = vmax.f32 %v557, 0.0
      %v680 = vmax.f32 %v562, 0.0
      %v681 = vmax.f32 %v567, 0.0
      %v682 = vmax.f32 %v572, 0.0
      %v683 = vmax.f32 %v577, 0.0
      %v684 = vmax.f32 %v582, 0.0
      %v685 = vmax.f32 %v587, 0.0
      %v686 = vmax.f32 %v592, 0.0
      %v687 = vmax.f32 %v597, 0.0
      %v688 = vmax.f32 %v602, 0.0
      %v689 = vmax.f32 %v607, 0.0
      %v690 = vmax.f32 %v612, 0.0
      %v691 = vmax.f32 %v617, 0.0
      %v692 = vmax.f32 %v622, 0.0
      %v693 = vmax.f32 %v627, 0.0
      %v694 = vmax.f32 %v632, 0.0
      %v695 = vmax.f32 %v637, 0.0
      %v696 = vmax.f32 %v642, 0.0
      %v697 = vmax.f32 %v647, 0.0
      %v698 = vmax.f32 %v652, 0.0
      %v699 = vmax.f32 %v657, 0.0
      %v700 = vmax.f32 %v662, 0.0
      %v701 = vmax.f32 %v667, 0.0
      %v702 = vld [vmem:[%s5] sm:$0xff]
      %v703 = vld [vmem:[%s5 + $0x8] sm:$0xff]
      %v704 = vld [vmem:[%s5 + $0x10] sm:$0xff]
      %v705 = vld [vmem:[%s5 + $0x18] sm:$0xff]
      %v706 = vld [vmem:[%s5 + $0x20] sm:$0xff]
      %v707 = vld [vmem:[%s5 + $0x28] sm:$0xff]
      %v708 = vld [vmem:[%s5 + $0x30] sm:$0xff]
      %v709 = vld [vmem:[%s5 + $0x38] sm:$0xff]
      %v710 = vld [vmem:[%s5 + $0x40] sm:$0xff]
      %v711 = vld [vmem:[%s5 + $0x48] sm:$0xff]
      %v712 = vld [vmem:[%s5 + $0x50] sm:$0xff]
      %v713 = vld [vmem:[%s5 + $0x58] sm:$0xff]
      %v714 = vld [vmem:[%s5 + $0x60] sm:$0xff]
      %v715 = vld [vmem:[%s5 + $0x68] sm:$0xff]
      %v716 = vld [vmem:[%s5 + $0x70] sm:$0xff]
      %v717 = vld [vmem:[%s5 + $0x78] sm:$0xff]
      %718 = vmatprep.subr.mxu0 0.0
      %719 = vmatpush1.msra.mxu0 %v670
      %720 = vmatprep.subr.mxu0 0.0
      %721 = vmatpush1.msra.mxu0 %v671
      %722 = vmatprep.subr.mxu0 0.0
      %723 = vmatpush1.msra.mxu0 %v672
      %724 = vmatprep.subr.mxu0 0.0
      %725 = vmatpush1.msra.mxu0 %v673
      %726 = vmatprep.subr.mxu0 0.0
      %727 = vmatpush1.msra.mxu0 %v674
      %728 = vmatprep.subr.mxu0 0.0
      %729 = vmatpush1.msra.mxu0 %v675
      %730 = vmatprep.subr.mxu0 0.0
      %731 = vmatpush1.msra.mxu0 %v676
      %732 = vmatprep.subr.mxu0 0.0
      %733 = vmatpush1.msra.mxu0 %v677
      %734 = vmatprep.subr.mxu0 0.0
      %735 = vmatpush1.msra.mxu0 %v678
      %736 = vmatprep.subr.mxu0 0.0
      %737 = vmatpush1.msra.mxu0 %v679
      %738 = vmatprep.subr.mxu0 0.0
      %739 = vmatpush1.msra.mxu0 %v680
      %740 = vmatprep.subr.mxu0 0.0
      %741 = vmatpush1.msra.mxu0 %v681
      %742 = vmatprep.subr.mxu0 0.0
      %743 = vmatpush1.msra.mxu0 %v682
      %744 = vmatprep.subr.mxu0 0.0
      %745 = vmatpush1.msra.mxu0 %v683
      %746 = vmatprep.subr.mxu0 0.0
      %747 = vmatpush1.msra.mxu0 %v684
      %748 = vmatprep.subr.mxu0 0.0
      %749 = vmatpush1.msra.mxu0 %v685
      %750 = vmatprep.subr.mxu0 0.0
      %751 = vmatpush1.msra.mxu0 %v686
      %752 = vmatprep.subr.mxu0 0.0
      %753 = vmatpush1.msra.mxu0 %v687
      %754 = vmatprep.subr.mxu0 0.0
      %755 = vmatpush1.msra.mxu0 %v688
      %756 = vmatprep.subr.mxu0 0.0
      %757 = vmatpush1.msra.mxu0 %v689
      %758 = vmatprep.subr.mxu0 0.0
      %759 = vmatpush1.msra.mxu0 %v690
      %760 = vmatprep.subr.mxu0 0.0
      %761 = vmatpush1.msra.mxu0 %v691
      %762 = vmatprep.subr.mxu0 0.0
      %763 = vmatpush1.msra.mxu0 %v692
      %764 = vmatprep.subr.mxu0 0.0
      %765 = vmatpush1.msra.mxu0 %v693
      %766 = vmatprep.subr.mxu0 0.0
      %767 = vmatpush1.msra.mxu0 %v694
      %768 = vmatprep.subr.mxu0 0.0
      %769 = vmatpush1.msra.mxu0 %v695
      %770 = vmatprep.subr.mxu0 0.0
      %771 = vmatpush1.msra.mxu0 %v696
      %772 = vmatprep.subr.mxu0 0.0
      %773 = vmatpush1.msra.mxu0 %v697
      %774 = vmatprep.subr.mxu0 0.0
      %775 = vmatpush1.msra.mxu0 %v698
      %776 = vmatprep.subr.mxu0 0.0
      %777 = vmatpush1.msra.mxu0 %v699
      %778 = vmatprep.subr.mxu0 0.0
      %779 = vmatpush1.msra.mxu0 %v700
      %780 = vmatprep.subr.mxu0 0.0
      %781 = vmatpush1.msra.mxu0 %v701
      %782 = vmatprep.mubr.f32.mxu0 %v703
      %783 = vmatmul.mubr.f32.gmra.mrb[0].mxu0 %v702
      %v784 = vpop.f32.mrb[0].mxu0
      %v785 = vadd.f32 0.0, %v784
      %v786 = vpop.f32.mrb[0].mxu0
      %787 = vmatprep.mubr.f32.mxu0 %v705
      %788 = vmatmul.mubr.f32.gmra.mrb[0].mxu0 %v704
      %v789 = vpop.f32.mrb[0].mxu0
      %v790 = vadd.f32 0.0, %v789
      %v791 = vpop.f32.mrb[0].mxu0
      %792 = vmatprep.mubr.f32.mxu0 %v707
      %793 = vmatmul.mubr.f32.gmra.mrb[0].mxu0 %v706
      %v794 = vpop.f32.mrb[0].mxu0
      %v795 = vadd.f32 0.0, %v794
      %v796 = vpop.f32.mrb[0].mxu0
      %797 = vmatprep.mubr.f32.mxu0 %v709
      %798 = vmatmul.mubr.f32.gmra.mrb[0].mxu0 %v708
      %v799 = vpop.f32.mrb[0].mxu0
      %v800 = vadd.f32 0.0, %v799
      %v801 = vpop.f32.mrb[0].mxu0
      %802 = vmatprep.mubr.f32.mxu0 %v711
      %803 = vmatmul.mubr.f32.gmra.mrb[0].mxu0 %v710
      %v804 = vpop.f32.mrb[0].mxu0
      %v805 = vadd.f32 0.0, %v804
      %v806 = vpop.f32.mrb[0].mxu0
      %807 = vmatprep.mubr.f32.mxu0 %v713
      %808 = vmatmul.mubr.f32.gmra.mrb[0].mxu0 %v712
      %v809 = vpop.f32.mrb[0].mxu0
      %v810 = vadd.f32 0.0, %v809
      %v811 = vpop.f32.mrb[0].mxu0
      %812 = vmatprep.mubr.f32.mxu0 %v715
      %813 = vmatmul.mubr.f32.gmra.mrb[0].mxu0 %v714
      %v814 = vpop.f32.mrb[0].mxu0
      %v815 = vadd.f32 0.0, %v814
      %v816 = vpop.f32.mrb[0].mxu0
      %817 = vmatprep.mubr.f32.mxu0 %v717
      %818 = vmatmul.mubr.f32.gmra.mrb[0].mxu0 %v716
      %v819 = vpop.f32.mrb[0].mxu0
      %v820 = vadd.f32 0.0, %v819
      %v821 = vpop.f32.mrb[0].mxu0
      %822 = vdwg.mxu0
      %v823 = vld [vmem:[%s3] sm:$0xff]
      %v824 = vld [vmem:[%s3 + $0x8] sm:$0xff]
      %v825 = vld [vmem:[%s3 + $0x10] sm:$0xff]
      %v826 = vld [vmem:[%s3 + $0x18] sm:$0xff]
      %vm827 = vcmask 261120
      %v829 = vsel %vm827, %v785, 0
      %v832 = vsel %vm827, %v790, 0
      %v835 = vsel %vm827, %v795, 0
      %v838 = vsel %vm827, %v800, 0
      %v841 = vsel %vm827, %v805, 0
      %v844 = vsel %vm827, %v810, 0
      %v847 = vsel %vm827, %v815, 0
      %v850 = vsel %vm827, %v820, 0
      %852 = vmatprep.subr.mxu0 0.0
      %853 = vmatpush1.msra.mxu0 %v823
      %854 = vmatprep.subr.mxu0 0.0
      %855 = vmatpush1.msra.mxu0 %v824
      %856 = vmatprep.subr.mxu0 0.0
      %857 = vmatpush1.msra.mxu0 %v825
      %858 = vmatprep.subr.mxu0 0.0
      %859 = vmatpush1.msra.mxu0 %v826
      %860 = vmatprep.subr.mxu0 0.0
      %861 = vmatpush1.msra.mxu0 0.0
      %862 = vmatprep.subr.mxu0 0.0
      %863 = vmatpush1.msra.mxu0 0.0
      %864 = vmatprep.subr.mxu0 0.0
      %865 = vmatpush1.msra.mxu0 0.0
      %866 = vmatprep.subr.mxu0 0.0
      %867 = vmatpush1.msra.mxu0 0.0
      %868 = vmatprep.subr.mxu0 0.0
      %869 = vmatpush1.msra.mxu0 0.0
      %870 = vmatprep.subr.mxu0 0.0
      %871 = vmatpush1.msra.mxu0 0.0
      %872 = vmatprep.subr.mxu0 0.0
      %873 = vmatpush1.msra.mxu0 0.0
      %874 = vmatprep.subr.mxu0 0.0
      %875 = vmatpush1.msra.mxu0 0.0
      %876 = vmatprep.subr.mxu0 0.0
      %877 = vmatpush1.msra.mxu0 0.0
      %878 = vmatprep.subr.mxu0 0.0
      %879 = vmatpush1.msra.mxu0 0.0
      %880 = vmatprep.subr.mxu0 0.0
      %881 = vmatpush1.msra.mxu0 0.0
      %882 = vmatprep.subr.mxu0 0.0
      %883 = vmatpush1.msra.mxu0 0.0
      %884 = vmatprep.subr.mxu0 0.0
      %885 = vmatpush1.msra.mxu0 0.0
      %886 = vmatprep.subr.mxu0 0.0
      %887 = vmatpush1.msra.mxu0 0.0
      %888 = vmatprep.subr.mxu0 0.0
      %889 = vmatpush1.msra.mxu0 0.0
      %890 = vmatprep.subr.mxu0 0.0
      %891 = vmatpush1.msra.mxu0 0.0
      %892 = vmatprep.subr.mxu0 0.0
      %893 = vmatpush1.msra.mxu0 0.0
      %894 = vmatprep.subr.mxu0 0.0
      %895 = vmatpush1.msra.mxu0 0.0
      %896 = vmatprep.subr.mxu0 0.0
      %897 = vmatpush1.msra.mxu0 0.0
      %898 = vmatprep.subr.mxu0 0.0
      %899 = vmatpush1.msra.mxu0 0.0
      %900 = vmatprep.subr.mxu0 0.0
      %901 = vmatpush1.msra.mxu0 0.0
      %902 = vmatprep.subr.mxu0 0.0
      %903 = vmatpush1.msra.mxu0 0.0
      %904 = vmatprep.subr.mxu0 0.0
      %905 = vmatpush1.msra.mxu0 0.0
      %906 = vmatprep.subr.mxu0 0.0
      %907 = vmatpush1.msra.mxu0 0.0
      %908 = vmatprep.subr.mxu0 0.0
      %909 = vmatpush1.msra.mxu0 0.0
      %910 = vmatprep.subr.mxu0 0.0
      %911 = vmatpush1.msra.mxu0 0.0
      %912 = vmatprep.subr.mxu0 0.0
      %913 = vmatpush1.msra.mxu0 0.0
      %914 = vmatprep.subr.mxu0 0.0
      %915 = vmatpush1.msra.mxu0 0.0
      %916 = vmatprep.mubr.f32.mxu0 0.0
      %917 = vmatmul.mubr.f32.gmra.mrb[0].mxu0 %v829
      %v918 = vpop.f32.mrb[0].mxu0
      %v919 = vadd.f32 0.0, %v918
      %v920 = vpop.f32.mrb[0].mxu0
      %921 = vmatprep.mubr.f32.mxu0 0.0
      %922 = vmatmul.mubr.f32.gmra.mrb[0].mxu0 %v832
      %v923 = vpop.f32.mrb[0].mxu0
      %v924 = vadd.f32 0.0, %v923
      %v925 = vpop.f32.mrb[0].mxu0
      %926 = vmatprep.mubr.f32.mxu0 0.0
      %927 = vmatmul.mubr.f32.gmra.mrb[0].mxu0 %v835
      %v928 = vpop.f32.mrb[0].mxu0
      %v929 = vadd.f32 0.0, %v928
      %v930 = vpop.f32.mrb[0].mxu0
      %931 = vmatprep.mubr.f32.mxu0 0.0
      %932 = vmatmul.mubr.f32.gmra.mrb[0].mxu0 %v838
      %v933 = vpop.f32.mrb[0].mxu0
      %v934 = vadd.f32 0.0, %v933
      %v935 = vpop.f32.mrb[0].mxu0
      %936 = vmatprep.mubr.f32.mxu0 0.0
      %937 = vmatmul.mubr.f32.gmra.mrb[0].mxu0 %v841
      %v938 = vpop.f32.mrb[0].mxu0
      %v939 = vadd.f32 0.0, %v938
      %v940 = vpop.f32.mrb[0].mxu0
      %941 = vmatprep.mubr.f32.mxu0 0.0
      %942 = vmatmul.mubr.f32.gmra.mrb[0].mxu0 %v844
      %v943 = vpop.f32.mrb[0].mxu0
      %v944 = vadd.f32 0.0, %v943
      %v945 = vpop.f32.mrb[0].mxu0
      %946 = vmatprep.mubr.f32.mxu0 0.0
      %947 = vmatmul.mubr.f32.gmra.mrb[0].mxu0 %v847
      %v948 = vpop.f32.mrb[0].mxu0
      %v949 = vadd.f32 0.0, %v948
      %v950 = vpop.f32.mrb[0].mxu0
      %951 = vmatprep.mubr.f32.mxu0 0.0
      %952 = vmatmul.mubr.f32.gmra.mrb[0].mxu0 %v850
      %v953 = vpop.f32.mrb[0].mxu0
      %v954 = vadd.f32 0.0, %v953
      %v955 = vpop.f32.mrb[0].mxu0
      %956 = vdwg.mxu0
      %v957 = vmax.f32 %v919, 0.0
      %v958 = vmax.f32 %v924, 0.0
      %v959 = vmax.f32 %v929, 0.0
      %v960 = vmax.f32 %v934, 0.0
      %v961 = vmax.f32 %v939, 0.0
      %v962 = vmax.f32 %v944, 0.0
      %v963 = vmax.f32 %v949, 0.0
      %v964 = vmax.f32 %v954, 0.0
      %v965 = vld [vmem:[%s6] sm:$0xff]
      %v966 = vld [vmem:[%s6 + $0x8] sm:$0xff]
      %vm967 = vcmask 523264
      %v969 = vsel %vm967, %v965, 0
      %v972 = vsel %vm967, %v966, 0
      %974 = vmatprep.subr.mxu0 0.0
      %975 = vmatpush1.msra.mxu0 %v957
      %976 = vmatprep.subr.mxu0 0.0
      %977 = vmatpush1.msra.mxu0 %v958
      %978 = vmatprep.subr.mxu0 0.0
      %979 = vmatpush1.msra.mxu0 %v959
      %980 = vmatprep.subr.mxu0 0.0
      %981 = vmatpush1.msra.mxu0 %v960
      %982 = vmatprep.subr.mxu0 0.0
      %983 = vmatpush1.msra.mxu0 %v961
      %984 = vmatprep.subr.mxu0 0.0
      %985 = vmatpush1.msra.mxu0 %v962
      %986 = vmatprep.subr.mxu0 0.0
      %987 = vmatpush1.msra.mxu0 %v963
      %988 = vmatprep.subr.mxu0 0.0
      %989 = vmatpush1.msra.mxu0 %v964
      %990 = vmatprep.subr.mxu0 0.0
      %991 = vmatpush1.msra.mxu0 0.0
      %992 = vmatprep.subr.mxu0 0.0
      %993 = vmatpush1.msra.mxu0 0.0
      %994 = vmatprep.subr.mxu0 0.0
      %995 = vmatpush1.msra.mxu0 0.0
      %996 = vmatprep.subr.mxu0 0.0
      %997 = vmatpush1.msra.mxu0 0.0
      %998 = vmatprep.subr.mxu0 0.0
      %999 = vmatpush1.msra.mxu0 0.0
      %1000 = vmatprep.subr.mxu0 0.0
      %1001 = vmatpush1.msra.mxu0 0.0
      %1002 = vmatprep.subr.mxu0 0.0
      %1003 = vmatpush1.msra.mxu0 0.0
      %1004 = vmatprep.subr.mxu0 0.0
      %1005 = vmatpush1.msra.mxu0 0.0
      %1006 = vmatprep.subr.mxu0 0.0
      %1007 = vmatpush1.msra.mxu0 0.0
      %1008 = vmatprep.subr.mxu0 0.0
      %1009 = vmatpush1.msra.mxu0 0.0
      %1010 = vmatprep.subr.mxu0 0.0
      %1011 = vmatpush1.msra.mxu0 0.0
      %1012 = vmatprep.subr.mxu0 0.0
      %1013 = vmatpush1.msra.mxu0 0.0
      %1014 = vmatprep.subr.mxu0 0.0
      %1015 = vmatpush1.msra.mxu0 0.0
      %1016 = vmatprep.subr.mxu0 0.0
      %1017 = vmatpush1.msra.mxu0 0.0
      %1018 = vmatprep.subr.mxu0 0.0
      %1019 = vmatpush1.msra.mxu0 0.0
      %1020 = vmatprep.subr.mxu0 0.0
      %1021 = vmatpush1.msra.mxu0 0.0
      %1022 = vmatprep.subr.mxu0 0.0
      %1023 = vmatpush1.msra.mxu0 0.0
      %1024 = vmatprep.subr.mxu0 0.0
      %1025 = vmatpush1.msra.mxu0 0.0
      %1026 = vmatprep.subr.mxu0 0.0
      %1027 = vmatpush1.msra.mxu0 0.0
      %1028 = vmatprep.subr.mxu0 0.0
      %1029 = vmatpush1.msra.mxu0 0.0
      %1030 = vmatprep.subr.mxu0 0.0
      %1031 = vmatpush1.msra.mxu0 0.0
      %1032 = vmatprep.subr.mxu0 0.0
      %1033 = vmatpush1.msra.mxu0 0.0
      %1034 = vmatprep.subr.mxu0 0.0
      %1035 = vmatpush1.msra.mxu0 0.0
      %1036 = vmatprep.subr.mxu0 0.0
      %1037 = vmatpush1.msra.mxu0 0.0
      %1038 = vmatprep.mubr.f32.mxu0 0.0
      %1039 = vmatmul.mubr.f32.gmra.mrb[0].mxu0 %v969
      %v1040 = vpop.f32.mrb[0].mxu0
      %v1041 = vadd.f32 0.0, %v1040
      %v1042 = vpop.f32.mrb[0].mxu0
      %1043 = vmatprep.mubr.f32.mxu0 0.0
      %1044 = vmatmul.mubr.f32.gmra.mrb[0].mxu0 %v972
      %v1045 = vpop.f32.mrb[0].mxu0
      %v1046 = vadd.f32 0.0, %v1045
      %v1047 = vpop.f32.mrb[0].mxu0
      %1048 = vdwg.mxu0
      %v1049 = vld [vmem:[%s4] sm:$0xff]
      %v1050 = vld [vmem:[%s4 + $0x8] sm:$0xff]
      %v1051 = vld [vmem:[%s4 + $0x10] sm:$0xff]
      %v1052 = vld [vmem:[%s4 + $0x18] sm:$0xff]
      %v1054 = vsel %vm827, %v1041, 0
      %v1057 = vsel %vm827, %v1046, 0
      %1059 = vmatprep.subr.mxu0 0.0
      %1060 = vmatpush1.msra.mxu0 %v1049
      %1061 = vmatprep.subr.mxu0 0.0
      %1062 = vmatpush1.msra.mxu0 %v1050
      %1063 = vmatprep.subr.mxu0 0.0
      %1064 = vmatpush1.msra.mxu0 %v1051
      %1065 = vmatprep.subr.mxu0 0.0
      %1066 = vmatpush1.msra.mxu0 %v1052
      %1067 = vmatprep.subr.mxu0 0.0
      %1068 = vmatpush1.msra.mxu0 0.0
      %1069 = vmatprep.subr.mxu0 0.0
      %1070 = vmatpush1.msra.mxu0 0.0
      %1071 = vmatprep.subr.mxu0 0.0
      %1072 = vmatpush1.msra.mxu0 0.0
      %1073 = vmatprep.subr.mxu0 0.0
      %1074 = vmatpush1.msra.mxu0 0.0
      %1075 = vmatprep.subr.mxu0 0.0
      %1076 = vmatpush1.msra.mxu0 0.0
      %1077 = vmatprep.subr.mxu0 0.0
      %1078 = vmatpush1.msra.mxu0 0.0
      %1079 = vmatprep.subr.mxu0 0.0
      %1080 = vmatpush1.msra.mxu0 0.0
      %1081 = vmatprep.subr.mxu0 0.0
      %1082 = vmatpush1.msra.mxu0 0.0
      %1083 = vmatprep.subr.mxu0 0.0
      %1084 = vmatpush1.msra.mxu0 0.0
      %1085 = vmatprep.subr.mxu0 0.0
      %1086 = vmatpush1.msra.mxu0 0.0
      %1087 = vmatprep.subr.mxu0 0.0
      %1088 = vmatpush1.msra.mxu0 0.0
      %1089 = vmatprep.subr.mxu0 0.0
      %1090 = vmatpush1.msra.mxu0 0.0
      %1091 = vmatprep.subr.mxu0 0.0
      %1092 = vmatpush1.msra.mxu0 0.0
      %1093 = vmatprep.subr.mxu0 0.0
      %1094 = vmatpush1.msra.mxu0 0.0
      %1095 = vmatprep.subr.mxu0 0.0
      %1096 = vmatpush1.msra.mxu0 0.0
      %1097 = vmatprep.subr.mxu0 0.0
      %1098 = vmatpush1.msra.mxu0 0.0
      %1099 = vmatprep.subr.mxu0 0.0
      %1100 = vmatpush1.msra.mxu0 0.0
      %1101 = vmatprep.subr.mxu0 0.0
      %1102 = vmatpush1.msra.mxu0 0.0
      %1103 = vmatprep.subr.mxu0 0.0
      %1104 = vmatpush1.msra.mxu0 0.0
      %1105 = vmatprep.subr.mxu0 0.0
      %1106 = vmatpush1.msra.mxu0 0.0
      %1107 = vmatprep.subr.mxu0 0.0
      %1108 = vmatpush1.msra.mxu0 0.0
      %1109 = vmatprep.subr.mxu0 0.0
      %1110 = vmatpush1.msra.mxu0 0.0
      %1111 = vmatprep.subr.mxu0 0.0
      %1112 = vmatpush1.msra.mxu0 0.0
      %1113 = vmatprep.subr.mxu0 0.0
      %1114 = vmatpush1.msra.mxu0 0.0
      %1115 = vmatprep.subr.mxu0 0.0
      %1116 = vmatpush1.msra.mxu0 0.0
      %1117 = vmatprep.subr.mxu0 0.0
      %1118 = vmatpush1.msra.mxu0 0.0
      %1119 = vmatprep.subr.mxu0 0.0
      %1120 = vmatpush1.msra.mxu0 0.0
      %1121 = vmatprep.subr.mxu0 0.0
      %1122 = vmatpush1.msra.mxu0 0.0
      %1123 = vmatprep.mubr.f32.mxu0 0.0
      %1124 = vmatmul.mubr.f32.gmra.mrb[0].mxu0 %v1054
      %v1125 = vpop.f32.mrb[0].mxu0
      %v1126 = vadd.f32 0.0, %v1125
      %v1127 = vpop.f32.mrb[0].mxu0
      %1128 = vmatprep.mubr.f32.mxu0 0.0
      %1129 = vmatmul.mubr.f32.gmra.mrb[0].mxu0 %v1057
      %v1130 = vpop.f32.mrb[0].mxu0
      %v1131 = vadd.f32 0.0, %v1130
      %v1132 = vpop.f32.mrb[0].mxu0
      %1133 = vdwg.mxu0
      %v1134 = vmax.f32 %v1126, 0.0
      %v1135 = vmax.f32 %v1131, 0.0
      %v1136 = vld [vmem:[%s7] sm:$0xf]
      %vm1137 = vcmask 130048
      %v1139 = vsel %vm1137, %v1136, 0
      %1141 = vmatprep.subr.mxu0 0.0
      %1142 = vmatpush1.msra.mxu0 %v1134
      %1143 = vmatprep.subr.mxu0 0.0
      %1144 = vmatpush1.msra.mxu0 %v1135
      %1145 = vmatprep.subr.mxu0 0.0
      %1146 = vmatpush1.msra.mxu0 0.0
      %1147 = vmatprep.subr.mxu0 0.0
      %1148 = vmatpush1.msra.mxu0 0.0
      %1149 = vmatprep.subr.mxu0 0.0
      %1150 = vmatpush1.msra.mxu0 0.0
      %1151 = vmatprep.subr.mxu0 0.0
      %1152 = vmatpush1.msra.mxu0 0.0
      %1153 = vmatprep.subr.mxu0 0.0
      %1154 = vmatpush1.msra.mxu0 0.0
      %1155 = vmatprep.subr.mxu0 0.0
      %1156 = vmatpush1.msra.mxu0 0.0
      %1157 = vmatprep.subr.mxu0 0.0
      %1158 = vmatpush1.msra.mxu0 0.0
      %1159 = vmatprep.subr.mxu0 0.0
      %1160 = vmatpush1.msra.mxu0 0.0
      %1161 = vmatprep.subr.mxu0 0.0
      %1162 = vmatpush1.msra.mxu0 0.0
      %1163 = vmatprep.subr.mxu0 0.0
      %1164 = vmatpush1.msra.mxu0 0.0
      %1165 = vmatprep.subr.mxu0 0.0
      %1166 = vmatpush1.msra.mxu0 0.0
      %1167 = vmatprep.subr.mxu0 0.0
      %1168 = vmatpush1.msra.mxu0 0.0
      %1169 = vmatprep.subr.mxu0 0.0
      %1170 = vmatpush1.msra.mxu0 0.0
      %1171 = vmatprep.subr.mxu0 0.0
      %1172 = vmatpush1.msra.mxu0 0.0
      %1173 = vmatprep.subr.mxu0 0.0
      %1174 = vmatpush1.msra.mxu0 0.0
      %1175 = vmatprep.subr.mxu0 0.0
      %1176 = vmatpush1.msra.mxu0 0.0
      %1177 = vmatprep.subr.mxu0 0.0
      %1178 = vmatpush1.msra.mxu0 0.0
      %1179 = vmatprep.subr.mxu0 0.0
      %1180 = vmatpush1.msra.mxu0 0.0
      %1181 = vmatprep.subr.mxu0 0.0
      %1182 = vmatpush1.msra.mxu0 0.0
      %1183 = vmatprep.subr.mxu0 0.0
      %1184 = vmatpush1.msra.mxu0 0.0
      %1185 = vmatprep.subr.mxu0 0.0
      %1186 = vmatpush1.msra.mxu0 0.0
      %1187 = vmatprep.subr.mxu0 0.0
      %1188 = vmatpush1.msra.mxu0 0.0
      %1189 = vmatprep.subr.mxu0 0.0
      %1190 = vmatpush1.msra.mxu0 0.0
      %1191 = vmatprep.subr.mxu0 0.0
      %1192 = vmatpush1.msra.mxu0 0.0
      %1193 = vmatprep.subr.mxu0 0.0
      %1194 = vmatpush1.msra.mxu0 0.0
      %1195 = vmatprep.subr.mxu0 0.0
      %1196 = vmatpush1.msra.mxu0 0.0
      %1197 = vmatprep.subr.mxu0 0.0
      %1198 = vmatpush1.msra.mxu0 0.0
      %1199 = vmatprep.subr.mxu0 0.0
      %1200 = vmatpush1.msra.mxu0 0.0
      %1201 = vmatprep.subr.mxu0 0.0
      %1202 = vmatpush1.msra.mxu0 0.0
      %1203 = vmatprep.subr.mxu0 0.0
      %1204 = vmatpush1.msra.mxu0 0.0
      %1205 = vmatprep.mubr.f32.mxu0 0.0
      %1206 = vmatmul.mubr.f32.gmra.mrb[0].mxu0 %v1139
      %v1207 = vpop.f32.mrb[0].mxu0
      %v1208 = vadd.f32 0.0, %v1207
      %v1209 = vpop.f32.mrb[0].mxu0
      %1210 = vdwg.mxu0
      %vm1211 = vcmask 257024
      %1212 = vst.msk [vmem:[%s303] sm:$0xf] %vm1211, %v1208
      %p1213 = scmp.lt.s32.totalorder %s19, 1
      %s1214 = scalar_select %p1213, %s19, 1
      %s1215 = smul.addr %s1214, 4
      %s1216 = scalar_lea.vmem %s8, %s1215
      // Predicated region
      $region53: #{kggrasp_forward.2} parent=51 // pred_check
        %p1217 = pneg %p210
      $region54: #{kggrasp_forward.2} parent=51 // pred_check_branch
        %1219 = sbr.rel (%p1217) target = $region56
      $region55: #{kggrasp_forward.2} parent=51 // pred_region
        _
      $region56: #{kggrasp_forward.2} parent=51 // pred_fallthru
        _
    $region52: #{kggrasp_forward.2} parent=5 // pred_fallthru
      _
    %p1220 = scmp.le.s32.totalorder 2, %s14
    // Predicated region
    $region57: #{kggrasp_forward.2} parent=5 // pred_check
      %p1221 = pneg %p1220
    $region58: #{kggrasp_forward.2} parent=5 // pred_check_branch
      %1223 = sbr.rel (%p1221) target = $region60
    $region59: #{kggrasp_forward.2} parent=5 // pred_region
      %s1224 = ssub.s32 %s14, 2
      // Predicated region
      $region61: #{kggrasp_forward.2} parent=59 // pred_check
        %p1225 = pneg %p216
      $region62: #{kggrasp_forward.2} parent=59 // pred_check_branch
        %1227 = sbr.rel (%p1225) target = $region64
      $region63: #{kggrasp_forward.2} parent=59 // pred_region
        %p1228 = scmp.lt.s32.totalorder %s20, 1
        %s1229 = scalar_select %p1228, %s20, 1
        %s1230 = smul.addr %s1229, 4
        %s1231 = scalar_lea.vmem %s8, %s1230
      $region64: #{kggrasp_forward.2} parent=59 // pred_fallthru
        _
    $region60: #{kggrasp_forward.2} parent=5 // pred_fallthru
      _
  $region6: #{kggrasp_forward.2} parent=0 // loop_footer
    %s18 = sadd.s32 1, %s14
  $region7: #{kggrasp_forward.2} parent=0 // loop_footer_branch
    %13 = sbr.rel target = $region3
  $region8: #{kggrasp_forward.2} parent=0 // loop_exit
    _

</llo_original>
